<compile_context>
chip_gen: v5e
topology: v5e:2x2
jax: 0.10.0
libtpu: 0.0.40
codegen_flags: <defaults>
</compile_context>

<pallas_src>
import functools

import jax
import jax.numpy as jnp
from jax import lax
from jax.experimental import pallas as pl
from jax.experimental.pallas import tpu as pltpu

EPS = 1e-5                      # PyTorch InstanceNorm2d default eps
MATMUL_DTYPE = jnp.bfloat16     # production default; jnp.float32 for exactness


def _conv3x3_same_flat(x, w_packed, matmul_dtype):
    """'same' 3x3 conv, stride 1.

    x:        (H, W, Cin) f32 value.
    w_packed: (3, 3*Cin, Cout), w_packed[dx] = w[:, dx].reshape(3*Cin, Cout)
              (dy-major rows).
    Returns the f32 result in flat (H*W, Cout) form.

    Pad along H only (cheap leading-axis concat), channel-concat the three dy
    row slabs once -> (H, W, 3*Cin) in the matmul dtype, then three
    (H*W, 3*Cin) x (3*Cin, Cout) MXU matmuls accumulated into a single f32
    accumulator; the W halo is applied by shifting the *input* slab with a
    zero-filled column for dx = 0 / 2 (no f32 output-side temporaries).
    """
    H, W, C = x.shape
    xm = x.astype(matmul_dtype)

    zrow = jnp.zeros((1, W, C), matmul_dtype)
    xs = jnp.concatenate([zrow, xm, zrow], axis=0)                # (H+2, W, C)
    # xs[dy:dy+H] is a contiguous leading-axis slice; W is a multiple of 8 in
    # production, so the (H, W, *) -> (H*W, *) merges below are tile-granular.
    slab = jnp.concatenate([xs[0:H], xs[1:H + 1], xs[2:H + 2]], axis=-1)  # (H, W, 3C)

    zcol = jnp.zeros((H, 1, 3 * C), matmul_dtype)

    def flat(t):
        return t.reshape(H * W, 3 * C)

    # dx = 1 (center tap): no W shift.
    acc = jnp.dot(flat(slab), w_packed[1], preferred_element_type=jnp.float32)
    # dx = 0: out[:, w] reads column w-1  -> shift the input slab right by one.
    shifted = jnp.concatenate([zcol, slab[:, :W - 1]], axis=1)
    acc = acc + jnp.dot(flat(shifted), w_packed[0],
                        preferred_element_type=jnp.float32)
    # dx = 2: out[:, w] reads column w+1  -> shift the input slab left by one.
    shifted = jnp.concatenate([slab[:, 1:], zcol], axis=1)
    acc = acc + jnp.dot(flat(shifted), w_packed[2],
                        preferred_element_type=jnp.float32)
    return acc                                                    # (H*W, Cout) f32


def _instance_norm_flat(y, g, b):
    """InstanceNorm2d (affine, biased var, eps=1e-5) on a flat (H*W, C) value.

    Single sweep for the statistics (sum and sum-of-squares); normalization
    folded into one per-channel scale + shift.
    """
    inv_hw = 1.0 / float(y.shape[0])
    mean = jnp.sum(y, axis=0, keepdims=True) * inv_hw             # (1, C)
    msq = jnp.sum(y * y, axis=0, keepdims=True) * inv_hw          # (1, C)
    var = msq - mean * mean                                       # biased
    scale = lax.rsqrt(var + EPS) * g                              # (1, C)
    shift = b - mean * scale                                      # (1, C)
    return y * scale + shift


def residual_block_kernel(x_ref, w1_ref, g1_ref, b1_ref, w2_ref, g2_ref, b2_ref,
                          out_ref, *, matmul_dtype):
    # x_ref/out_ref: (1, H, W, C) f32;  w*: (3, 3*C, C) packed;  g*/b*: (1, C).
    _, H, W, C = x_ref.shape
    x = x_ref[0]                                                  # (H, W, C) f32

    y = _conv3x3_same_flat(x, w1_ref[...], matmul_dtype)          # (H*W, C) f32
    y = jnp.maximum(_instance_norm_flat(y, g1_ref[...], b1_ref[...]), 0.0)

    z = _conv3x3_same_flat(y.reshape(H, W, C), w2_ref[...], matmul_dtype)
    z = _instance_norm_flat(z, g2_ref[...], b2_ref[...])

    out_ref[0] = (x + z.reshape(H, W, C)).astype(out_ref.dtype)   # residual add


def _pack_weight(w_hwio):
    """(3, 3, Cin, Cout) [dy, dx, ci, co] -> (3, 3*Cin, Cout) [dx, dy*Cin, co]."""
    kh, kw, cin, cout = w_hwio.shape
    return jnp.transpose(w_hwio, (1, 0, 2, 3)).reshape(kw, kh * cin, cout)


def _vmem_limit_bytes():
    try:
        cap = getattr(pltpu.get_tpu_info(), "vmem_capacity_bytes", None)
    except Exception:
        cap = None
    if cap is None:
        cap = 64 << 20            # conservative fallback (v7x per-TC capacity)
    return int(min(100 << 20, cap - (8 << 20)))


def residual_block(x_nhwc, w1, g1, b1, w2, g2, b2, *, matmul_dtype=MATMUL_DTYPE):
    """x_nhwc: (N, H, W, C) f32; w*: (3, 3, C, C); g*/b*: (1, C). Returns NHWC f32."""
    N, H, W, C = x_nhwc.shape
    w1p = _pack_weight(w1).astype(matmul_dtype)
    w2p = _pack_weight(w2).astype(matmul_dtype)

    kernel = functools.partial(residual_block_kernel, matmul_dtype=matmul_dtype)

    def build(single_buffer_consts):
        def const_spec(arr):
            nd = arr.ndim
            kwargs = {}
            if single_buffer_consts:
                # Grid-invariant operands: no double buffering needed.
                kwargs["pipeline_mode"] = pl.Buffered(1)
            return pl.BlockSpec(arr.shape, lambda n, _nd=nd: (0,) * _nd, **kwargs)

        return pl.pallas_call(
            kernel,
            out_shape=jax.ShapeDtypeStruct((N, H, W, C), jnp.float32),
            grid=(N,),
            in_specs=[
                pl.BlockSpec((1, H, W, C), lambda n: (n, 0, 0, 0)),
                const_spec(w1p), const_spec(g1), const_spec(b1),
                const_spec(w2p), const_spec(g2), const_spec(b2),
            ],
            out_specs=pl.BlockSpec((1, H, W, C), lambda n: (n, 0, 0, 0)),
            compiler_params=pltpu.CompilerParams(
                dimension_semantics=("parallel",),
                vmem_limit_bytes=_vmem_limit_bytes()),
        )

    args = (x_nhwc, w1p, g1, b1, w2p, g2, b2)
    try:
        return build(True)(*args)
    except Exception:
        # pipeline_mode=pl.Buffered(1) unsupported by this jax version: fall
        # back to default double-buffered constant operands (~2-4 MiB VMEM).
        return build(False)(*args)


# ---------------- pure-JAX reference (PyTorch NCHW semantics) ----------------
def residual_block_ref(x, w1, g1, b1, w2, g2, b2):
    def conv(t, w):
        return lax.conv_general_dilated(t, w, window_strides=(1, 1),
                                        padding=((1, 1), (1, 1)),
                                        dimension_numbers=("NCHW", "OIHW", "NCHW"))

    def inorm(t, g, b):
        mean = t.mean(axis=(2, 3), keepdims=True)
        var = ((t - mean) ** 2).mean(axis=(2, 3), keepdims=True)
        return ((t - mean) / jnp.sqrt(var + EPS)) * g[None, :, None, None] \
               + b[None, :, None, None]

    y = jnp.maximum(inorm(conv(x, w1), g1, b1), 0.0)
    y = inorm(conv(y, w2), g2, b2)
    return x + y


if __name__ == "__main__":
    key = jax.random.PRNGKey(0)
    k = jax.random.split(key, 7)
    N, C, H, W = 2, 4, 16, 16

    x_nchw = jax.random.normal(k[0], (N, C, H, W), jnp.float32)
    # deterministic synthetic parameters (Conv2d weights OIHW, bias=False;
    # InstanceNorm affine weight/bias)
    w1 = 0.2 * jax.random.normal(k[1], (C, C, 3, 3), jnp.float32)
    w2 = 0.2 * jax.random.normal(k[2], (C, C, 3, 3), jnp.float32)
    g1 = 1.0 + 0.1 * jax.random.normal(k[3], (C,), jnp.float32)
    b1 = 0.1 * jax.random.normal(k[4], (C,), jnp.float32)
    g2 = 1.0 + 0.1 * jax.random.normal(k[5], (C,), jnp.float32)
    b2 = 0.1 * jax.random.normal(k[6], (C,), jnp.float32)

    # layout plumbing: NCHW -> NHWC activations, OIHW -> (3,3,Cin,Cout) weights
    x_nhwc = jnp.transpose(x_nchw, (0, 2, 3, 1))
    w1_k = jnp.transpose(w1, (2, 3, 1, 0))
    w2_k = jnp.transpose(w2, (2, 3, 1, 0))

    ref = residual_block_ref(x_nchw, w1, g1, b1, w2, g2, b2)

    # 1) structural check: f32 matmul path vs the f32 reference (tight).
    out_f32 = residual_block(x_nhwc, w1_k, g1[None], b1[None],
                             w2_k, g2[None], b2[None],
                             matmul_dtype=jnp.float32)
    out_f32 = jnp.transpose(out_f32, (0, 3, 1, 2))
    jax.block_until_ready(out_f32)
    err_f32 = float(jnp.max(jnp.abs(out_f32 - ref)))
    assert out_f32.shape == (N, C, H, W)
    assert err_f32 < 1e-3, f"f32 path max abs error {err_f32}"

    # 2) production path: bf16 MXU inputs, f32 accumulation (loose tolerance
    #    because activations/weights are quantized to bf16 on the way in).
    out_bf16 = residual_block(x_nhwc, w1_k, g1[None], b1[None],
                              w2_k, g2[None], b2[None])
    out_bf16 = jnp.transpose(out_bf16, (0, 3, 1, 2))
    jax.block_until_ready(out_bf16)
    err_bf16 = float(jnp.max(jnp.abs(out_bf16 - ref)))
    assert err_bf16 < 1e-1, f"bf16 path max abs error {err_bf16}"

    # TODO(synk): InstanceNorm2d running_mean/running_var buffer updates are a
    # training-time side effect with no impact on the forward output; not modeled.
    print("KERNEL_OK")
</pallas_src>

<mosaic_0001>
module attributes {stable_mosaic.version = 11 : i64} {
  func.func @residual_block_kernel(%arg0: i32, %arg1: memref<1x16x16x4xf32, #tpu.memory_space<vmem>>, %arg2: memref<3x12x4xf32, #tpu.memory_space<vmem>>, %arg3: memref<1x4xf32, #tpu.memory_space<vmem>>, %arg4: memref<1x4xf32, #tpu.memory_space<vmem>>, %arg5: memref<3x12x4xf32, #tpu.memory_space<vmem>>, %arg6: memref<1x4xf32, #tpu.memory_space<vmem>>, %arg7: memref<1x4xf32, #tpu.memory_space<vmem>>, %arg8: memref<1x16x16x4xf32, #tpu.memory_space<vmem>>) attributes {dimension_semantics = [#tpu.dimension_semantics<parallel>], iteration_bounds = array<i64: 2>, scalar_prefetch = 0 : i64, scratch_operands = 0 : i64, tpu.core_type = #tpu.core_type<tc>, window_params = [{transform_indices = @transform_0, window_bounds = array<i64: 1, 16, 16, 4>}, {pipeline_mode = #tpu.pipeline_mode<synchronous>, transform_indices = @transform_1, window_bounds = array<i64: 3, 12, 4>}, {pipeline_mode = #tpu.pipeline_mode<synchronous>, transform_indices = @transform_2, window_bounds = array<i64: 1, 4>}, {pipeline_mode = #tpu.pipeline_mode<synchronous>, transform_indices = @transform_3, window_bounds = array<i64: 1, 4>}, {pipeline_mode = #tpu.pipeline_mode<synchronous>, transform_indices = @transform_4, window_bounds = array<i64: 3, 12, 4>}, {pipeline_mode = #tpu.pipeline_mode<synchronous>, transform_indices = @transform_5, window_bounds = array<i64: 1, 4>}, {pipeline_mode = #tpu.pipeline_mode<synchronous>, transform_indices = @transform_6, window_bounds = array<i64: 1, 4>}, {transform_indices = @transform_7, window_bounds = array<i64: 1, 16, 16, 4>}]} {
    %c0 = arith.constant 0 : index
    %c0_0 = arith.constant 0 : index
    %c0_1 = arith.constant 0 : index
    %c0_2 = arith.constant 0 : index
    %0 = vector.load %arg1[%c0, %c0_0, %c0_1, %c0_2] : memref<1x16x16x4xf32, #tpu.memory_space<vmem>>, vector<1x16x16x4xf32>
    %1 = vector.shape_cast %0 : vector<1x16x16x4xf32> to vector<16x16x4xf32>
    %c0_3 = arith.constant 0 : index
    %c0_4 = arith.constant 0 : index
    %c0_5 = arith.constant 0 : index
    %2 = vector.load %arg2[%c0_3, %c0_4, %c0_5] : memref<3x12x4xf32, #tpu.memory_space<vmem>>, vector<3x12x4xf32>
    %cst = arith.constant 0.000000e+00 : f32
    %3 = vector.broadcast %cst : f32 to vector<1x16x4xf32>
    %4 = tpu.concatenate %3, %1, %3 in 0 : vector<1x16x4xf32>, vector<16x16x4xf32>, vector<1x16x4xf32> -> vector<18x16x4xf32>
    %5 = vector.extract_strided_slice %4 {offsets = [0, 0, 0], sizes = [16, 16, 4], strides = [1, 1, 1]} : vector<18x16x4xf32> to vector<16x16x4xf32>
    %6 = vector.extract_strided_slice %4 {offsets = [1, 0, 0], sizes = [16, 16, 4], strides = [1, 1, 1]} : vector<18x16x4xf32> to vector<16x16x4xf32>
    %7 = vector.extract_strided_slice %4 {offsets = [2, 0, 0], sizes = [16, 16, 4], strides = [1, 1, 1]} : vector<18x16x4xf32> to vector<16x16x4xf32>
    %8 = tpu.concatenate %5, %6, %7 in 2 : vector<16x16x4xf32>, vector<16x16x4xf32>, vector<16x16x4xf32> -> vector<16x16x12xf32>
    %cst_6 = arith.constant 0.000000e+00 : f32
    %9 = vector.broadcast %cst_6 : f32 to vector<16x1x12xf32>
    %10 = vector.shape_cast %8 : vector<16x16x12xf32> to vector<256x12xf32>
    %11 = vector.extract_strided_slice %2 {offsets = [1, 0, 0], sizes = [1, 12, 4], strides = [1, 1, 1]} : vector<3x12x4xf32> to vector<1x12x4xf32>
    %12 = vector.shape_cast %11 : vector<1x12x4xf32> to vector<12x4xf32>
    %cst_7 = arith.constant dense<0.000000e+00> : vector<256x4xf32>
    %13 = tpu.matmul %10, %12, %cst_7 {dimension_numbers = #tpu.dot_dimension_numbers<[1], [0], [0], [1], [0, 0, 1, 1], [], []>} : vector<256x12xf32>, vector<12x4xf32>, vector<256x4xf32> -> vector<256x4xf32>
    %14 = vector.extract_strided_slice %8 {offsets = [0, 0, 0], sizes = [16, 15, 12], strides = [1, 1, 1]} : vector<16x16x12xf32> to vector<16x15x12xf32>
    %15 = tpu.concatenate %9, %14 in 1 : vector<16x1x12xf32>, vector<16x15x12xf32> -> vector<16x16x12xf32>
    %16 = vector.shape_cast %15 : vector<16x16x12xf32> to vector<256x12xf32>
    %17 = vector.extract_strided_slice %2 {offsets = [0, 0, 0], sizes = [1, 12, 4], strides = [1, 1, 1]} : vector<3x12x4xf32> to vector<1x12x4xf32>
    %18 = vector.shape_cast %17 : vector<1x12x4xf32> to vector<12x4xf32>
    %cst_8 = arith.constant dense<0.000000e+00> : vector<256x4xf32>
    %19 = tpu.matmul %16, %18, %cst_8 {dimension_numbers = #tpu.dot_dimension_numbers<[1], [0], [0], [1], [0, 0, 1, 1], [], []>} : vector<256x12xf32>, vector<12x4xf32>, vector<256x4xf32> -> vector<256x4xf32>
    %20 = arith.addf %13, %19 : vector<256x4xf32>
    %21 = vector.extract_strided_slice %8 {offsets = [0, 1, 0], sizes = [16, 15, 12], strides = [1, 1, 1]} : vector<16x16x12xf32> to vector<16x15x12xf32>
    %22 = tpu.concatenate %21, %9 in 1 : vector<16x15x12xf32>, vector<16x1x12xf32> -> vector<16x16x12xf32>
    %23 = vector.shape_cast %22 : vector<16x16x12xf32> to vector<256x12xf32>
    %24 = vector.extract_strided_slice %2 {offsets = [2, 0, 0], sizes = [1, 12, 4], strides = [1, 1, 1]} : vector<3x12x4xf32> to vector<1x12x4xf32>
    %25 = vector.shape_cast %24 : vector<1x12x4xf32> to vector<12x4xf32>
    %cst_9 = arith.constant dense<0.000000e+00> : vector<256x4xf32>
    %26 = tpu.matmul %23, %25, %cst_9 {dimension_numbers = #tpu.dot_dimension_numbers<[1], [0], [0], [1], [0, 0, 1, 1], [], []>} : vector<256x12xf32>, vector<12x4xf32>, vector<256x4xf32> -> vector<256x4xf32>
    %27 = arith.addf %20, %26 : vector<256x4xf32>
    %c0_10 = arith.constant 0 : index
    %c0_11 = arith.constant 0 : index
    %28 = vector.load %arg3[%c0_10, %c0_11] : memref<1x4xf32, #tpu.memory_space<vmem>>, vector<1x4xf32>
    %c0_12 = arith.constant 0 : index
    %c0_13 = arith.constant 0 : index
    %29 = vector.load %arg4[%c0_12, %c0_13] : memref<1x4xf32, #tpu.memory_space<vmem>>, vector<1x4xf32>
    %cst_14 = arith.constant dense<0.000000e+00> : vector<4xf32>
    %30 = vector.multi_reduction <add>, %27, %cst_14 [0] : vector<256x4xf32> to vector<4xf32>
    %31 = vector.shape_cast %30 : vector<4xf32> to vector<1x4xf32>
    %cst_15 = arith.constant 3.906250e-03 : f32
    %32 = vector.broadcast %cst_15 : f32 to vector<1x4xf32>
    %33 = arith.mulf %31, %32 : vector<1x4xf32>
    %34 = arith.mulf %27, %27 : vector<256x4xf32>
    %cst_16 = arith.constant dense<0.000000e+00> : vector<4xf32>
    %35 = vector.multi_reduction <add>, %34, %cst_16 [0] : vector<256x4xf32> to vector<4xf32>
    %36 = vector.shape_cast %35 : vector<4xf32> to vector<1x4xf32>
    %cst_17 = arith.constant 3.906250e-03 : f32
    %37 = vector.broadcast %cst_17 : f32 to vector<1x4xf32>
    %38 = arith.mulf %36, %37 : vector<1x4xf32>
    %39 = arith.mulf %33, %33 : vector<1x4xf32>
    %40 = arith.subf %38, %39 : vector<1x4xf32>
    %cst_18 = arith.constant 9.99999974E-6 : f32
    %41 = vector.broadcast %cst_18 : f32 to vector<1x4xf32>
    %42 = arith.addf %40, %41 : vector<1x4xf32>
    %43 = math.rsqrt %42 : vector<1x4xf32>
    %44 = arith.mulf %43, %28 : vector<1x4xf32>
    %45 = arith.mulf %33, %44 : vector<1x4xf32>
    %46 = arith.subf %29, %45 : vector<1x4xf32>
    %47 = vector.broadcast %44 : vector<1x4xf32> to vector<256x4xf32>
    %48 = arith.mulf %27, %47 : vector<256x4xf32>
    %49 = vector.broadcast %46 : vector<1x4xf32> to vector<256x4xf32>
    %50 = arith.addf %48, %49 : vector<256x4xf32>
    %cst_19 = arith.constant 0.000000e+00 : f32
    %51 = vector.broadcast %cst_19 : f32 to vector<256x4xf32>
    %52 = arith.maximumf %50, %51 : vector<256x4xf32>
    %53 = vector.shape_cast %52 : vector<256x4xf32> to vector<16x16x4xf32>
    %c0_20 = arith.constant 0 : index
    %c0_21 = arith.constant 0 : index
    %c0_22 = arith.constant 0 : index
    %54 = vector.load %arg5[%c0_20, %c0_21, %c0_22] : memref<3x12x4xf32, #tpu.memory_space<vmem>>, vector<3x12x4xf32>
    %cst_23 = arith.constant 0.000000e+00 : f32
    %55 = vector.broadcast %cst_23 : f32 to vector<1x16x4xf32>
    %56 = tpu.concatenate %55, %53, %55 in 0 : vector<1x16x4xf32>, vector<16x16x4xf32>, vector<1x16x4xf32> -> vector<18x16x4xf32>
    %57 = vector.extract_strided_slice %56 {offsets = [0, 0, 0], sizes = [16, 16, 4], strides = [1, 1, 1]} : vector<18x16x4xf32> to vector<16x16x4xf32>
    %58 = vector.extract_strided_slice %56 {offsets = [1, 0, 0], sizes = [16, 16, 4], strides = [1, 1, 1]} : vector<18x16x4xf32> to vector<16x16x4xf32>
    %59 = vector.extract_strided_slice %56 {offsets = [2, 0, 0], sizes = [16, 16, 4], strides = [1, 1, 1]} : vector<18x16x4xf32> to vector<16x16x4xf32>
    %60 = tpu.concatenate %57, %58, %59 in 2 : vector<16x16x4xf32>, vector<16x16x4xf32>, vector<16x16x4xf32> -> vector<16x16x12xf32>
    %cst_24 = arith.constant 0.000000e+00 : f32
    %61 = vector.broadcast %cst_24 : f32 to vector<16x1x12xf32>
    %62 = vector.shape_cast %60 : vector<16x16x12xf32> to vector<256x12xf32>
    %63 = vector.extract_strided_slice %54 {offsets = [1, 0, 0], sizes = [1, 12, 4], strides = [1, 1, 1]} : vector<3x12x4xf32> to vector<1x12x4xf32>
    %64 = vector.shape_cast %63 : vector<1x12x4xf32> to vector<12x4xf32>
    %cst_25 = arith.constant dense<0.000000e+00> : vector<256x4xf32>
    %65 = tpu.matmul %62, %64, %cst_25 {dimension_numbers = #tpu.dot_dimension_numbers<[1], [0], [0], [1], [0, 0, 1, 1], [], []>} : vector<256x12xf32>, vector<12x4xf32>, vector<256x4xf32> -> vector<256x4xf32>
    %66 = vector.extract_strided_slice %60 {offsets = [0, 0, 0], sizes = [16, 15, 12], strides = [1, 1, 1]} : vector<16x16x12xf32> to vector<16x15x12xf32>
    %67 = tpu.concatenate %61, %66 in 1 : vector<16x1x12xf32>, vector<16x15x12xf32> -> vector<16x16x12xf32>
    %68 = vector.shape_cast %67 : vector<16x16x12xf32> to vector<256x12xf32>
    %69 = vector.extract_strided_slice %54 {offsets = [0, 0, 0], sizes = [1, 12, 4], strides = [1, 1, 1]} : vector<3x12x4xf32> to vector<1x12x4xf32>
    %70 = vector.shape_cast %69 : vector<1x12x4xf32> to vector<12x4xf32>
    %cst_26 = arith.constant dense<0.000000e+00> : vector<256x4xf32>
    %71 = tpu.matmul %68, %70, %cst_26 {dimension_numbers = #tpu.dot_dimension_numbers<[1], [0], [0], [1], [0, 0, 1, 1], [], []>} : vector<256x12xf32>, vector<12x4xf32>, vector<256x4xf32> -> vector<256x4xf32>
    %72 = arith.addf %65, %71 : vector<256x4xf32>
    %73 = vector.extract_strided_slice %60 {offsets = [0, 1, 0], sizes = [16, 15, 12], strides = [1, 1, 1]} : vector<16x16x12xf32> to vector<16x15x12xf32>
    %74 = tpu.concatenate %73, %61 in 1 : vector<16x15x12xf32>, vector<16x1x12xf32> -> vector<16x16x12xf32>
    %75 = vector.shape_cast %74 : vector<16x16x12xf32> to vector<256x12xf32>
    %76 = vector.extract_strided_slice %54 {offsets = [2, 0, 0], sizes = [1, 12, 4], strides = [1, 1, 1]} : vector<3x12x4xf32> to vector<1x12x4xf32>
    %77 = vector.shape_cast %76 : vector<1x12x4xf32> to vector<12x4xf32>
    %cst_27 = arith.constant dense<0.000000e+00> : vector<256x4xf32>
    %78 = tpu.matmul %75, %77, %cst_27 {dimension_numbers = #tpu.dot_dimension_numbers<[1], [0], [0], [1], [0, 0, 1, 1], [], []>} : vector<256x12xf32>, vector<12x4xf32>, vector<256x4xf32> -> vector<256x4xf32>
    %79 = arith.addf %72, %78 : vector<256x4xf32>
    %c0_28 = arith.constant 0 : index
    %c0_29 = arith.constant 0 : index
    %80 = vector.load %arg6[%c0_28, %c0_29] : memref<1x4xf32, #tpu.memory_space<vmem>>, vector<1x4xf32>
    %c0_30 = arith.constant 0 : index
    %c0_31 = arith.constant 0 : index
    %81 = vector.load %arg7[%c0_30, %c0_31] : memref<1x4xf32, #tpu.memory_space<vmem>>, vector<1x4xf32>
    %cst_32 = arith.constant dense<0.000000e+00> : vector<4xf32>
    %82 = vector.multi_reduction <add>, %79, %cst_32 [0] : vector<256x4xf32> to vector<4xf32>
    %83 = vector.shape_cast %82 : vector<4xf32> to vector<1x4xf32>
    %cst_33 = arith.constant 3.906250e-03 : f32
    %84 = vector.broadcast %cst_33 : f32 to vector<1x4xf32>
    %85 = arith.mulf %83, %84 : vector<1x4xf32>
    %86 = arith.mulf %79, %79 : vector<256x4xf32>
    %cst_34 = arith.constant dense<0.000000e+00> : vector<4xf32>
    %87 = vector.multi_reduction <add>, %86, %cst_34 [0] : vector<256x4xf32> to vector<4xf32>
    %88 = vector.shape_cast %87 : vector<4xf32> to vector<1x4xf32>
    %cst_35 = arith.constant 3.906250e-03 : f32
    %89 = vector.broadcast %cst_35 : f32 to vector<1x4xf32>
    %90 = arith.mulf %88, %89 : vector<1x4xf32>
    %91 = arith.mulf %85, %85 : vector<1x4xf32>
    %92 = arith.subf %90, %91 : vector<1x4xf32>
    %cst_36 = arith.constant 9.99999974E-6 : f32
    %93 = vector.broadcast %cst_36 : f32 to vector<1x4xf32>
    %94 = arith.addf %92, %93 : vector<1x4xf32>
    %95 = math.rsqrt %94 : vector<1x4xf32>
    %96 = arith.mulf %95, %80 : vector<1x4xf32>
    %97 = arith.mulf %85, %96 : vector<1x4xf32>
    %98 = arith.subf %81, %97 : vector<1x4xf32>
    %99 = vector.broadcast %96 : vector<1x4xf32> to vector<256x4xf32>
    %100 = arith.mulf %79, %99 : vector<256x4xf32>
    %101 = vector.broadcast %98 : vector<1x4xf32> to vector<256x4xf32>
    %102 = arith.addf %100, %101 : vector<256x4xf32>
    %103 = vector.shape_cast %102 : vector<256x4xf32> to vector<16x16x4xf32>
    %104 = arith.addf %1, %103 : vector<16x16x4xf32>
    %c0_37 = arith.constant 0 : index
    %c0_38 = arith.constant 0 : index
    %c0_39 = arith.constant 0 : index
    %c0_40 = arith.constant 0 : index
    %105 = vector.load %arg8[%c0_37, %c0_38, %c0_39, %c0_40] : memref<1x16x16x4xf32, #tpu.memory_space<vmem>>, vector<1x16x16x4xf32>
    %106 = vector.shape_cast %105 : vector<1x16x16x4xf32> to vector<16x16x4xf32>
    %107 = vector.shape_cast %104 : vector<16x16x4xf32> to vector<1x16x16x4xf32>
    tpu.vector_store %arg8[%c0_37, %c0_38, %c0_39, %c0_40], %107 {strides = array<i32>} : memref<1x16x16x4xf32, #tpu.memory_space<vmem>>, vector<1x16x16x4xf32>,
    return
  }
  func.func @transform_0(%arg0: i32) -> (i32, i32, i32, i32) {
    %c0_i32 = arith.constant 0 : i32
    %c0_i32_0 = arith.constant 0 : i32
    %c0_i32_1 = arith.constant 0 : i32
    %c0_i32_2 = arith.constant 0 : i32
    return %arg0, %c0_i32, %c0_i32_0, %c0_i32_1 : i32, i32, i32, i32
  }
  func.func @transform_1(%arg0: i32) -> (i32, i32, i32) {
    %c0_i32 = arith.constant 0 : i32
    %c0_i32_0 = arith.constant 0 : i32
    %c0_i32_1 = arith.constant 0 : i32
    %c0_i32_2 = arith.constant 0 : i32
    return %c0_i32, %c0_i32_0, %c0_i32_1 : i32, i32, i32
  }
  func.func @transform_2(%arg0: i32) -> (i32, i32) {
    %c0_i32 = arith.constant 0 : i32
    %c0_i32_0 = arith.constant 0 : i32
    %c0_i32_1 = arith.constant 0 : i32
    return %c0_i32, %c0_i32_0 : i32, i32
  }
  func.func @transform_3(%arg0: i32) -> (i32, i32) {
    %c0_i32 = arith.constant 0 : i32
    %c0_i32_0 = arith.constant 0 : i32
    %c0_i32_1 = arith.constant 0 : i32
    return %c0_i32, %c0_i32_0 : i32, i32
  }
  func.func @transform_4(%arg0: i32) -> (i32, i32, i32) {
    %c0_i32 = arith.constant 0 : i32
    %c0_i32_0 = arith.constant 0 : i32
    %c0_i32_1 = arith.constant 0 : i32
    %c0_i32_2 = arith.constant 0 : i32
    return %c0_i32, %c0_i32_0, %c0_i32_1 : i32, i32, i32
  }
  func.func @transform_5(%arg0: i32) -> (i32, i32) {
    %c0_i32 = arith.constant 0 : i32
    %c0_i32_0 = arith.constant 0 : i32
    %c0_i32_1 = arith.constant 0 : i32
    return %c0_i32, %c0_i32_0 : i32, i32
  }
  func.func @transform_6(%arg0: i32) -> (i32, i32) {
    %c0_i32 = arith.constant 0 : i32
    %c0_i32_0 = arith.constant 0 : i32
    %c0_i32_1 = arith.constant 0 : i32
    return %c0_i32, %c0_i32_0 : i32, i32
  }
  func.func @transform_7(%arg0: i32) -> (i32, i32, i32, i32) {
    %c0_i32 = arith.constant 0 : i32
    %c0_i32_0 = arith.constant 0 : i32
    %c0_i32_1 = arith.constant 0 : i32
    %c0_i32_2 = arith.constant 0 : i32
    return %arg0, %c0_i32, %c0_i32_0, %c0_i32_1 : i32, i32, i32, i32
  }
}

module attributes {stable_mosaic.version = 11 : i64} {
  func.func @residual_block_kernel(%arg0: i32, %arg1: memref<1x16x16x4xf32, #tpu.memory_space<vmem>>, %arg2: memref<3x12x4xf32, #tpu.memory_space<vmem>>, %arg3: memref<1x4xf32, #tpu.memory_space<vmem>>, %arg4: memref<1x4xf32, #tpu.memory_space<vmem>>, %arg5: memref<3x12x4xf32, #tpu.memory_space<vmem>>, %arg6: memref<1x4xf32, #tpu.memory_space<vmem>>, %arg7: memref<1x4xf32, #tpu.memory_space<vmem>>, %arg8: memref<1x16x16x4xf32, #tpu.memory_space<vmem>>) attributes {dimension_semantics = [#tpu.dimension_semantics<parallel>], iteration_bounds = array<i64: 2>, scalar_prefetch = 0 : i64, scratch_operands = 0 : i64, tpu.core_type = #tpu.core_type<tc>, window_params = [{transform_indices = @transform_0, window_bounds = array<i64: 1, 16, 16, 4>}, {pipeline_mode = #tpu.pipeline_mode<synchronous>, transform_indices = @transform_1, window_bounds = array<i64: 3, 12, 4>}, {pipeline_mode = #tpu.pipeline_mode<synchronous>, transform_indices = @transform_2, window_bounds = array<i64: 1, 4>}, {pipeline_mode = #tpu.pipeline_mode<synchronous>, transform_indices = @transform_3, window_bounds = array<i64: 1, 4>}, {pipeline_mode = #tpu.pipeline_mode<synchronous>, transform_indices = @transform_4, window_bounds = array<i64: 3, 12, 4>}, {pipeline_mode = #tpu.pipeline_mode<synchronous>, transform_indices = @transform_5, window_bounds = array<i64: 1, 4>}, {pipeline_mode = #tpu.pipeline_mode<synchronous>, transform_indices = @transform_6, window_bounds = array<i64: 1, 4>}, {transform_indices = @transform_7, window_bounds = array<i64: 1, 16, 16, 4>}]} {
    %c0 = arith.constant 0 : index
    %c0_0 = arith.constant 0 : index
    %c0_1 = arith.constant 0 : index
    %c0_2 = arith.constant 0 : index
    %0 = vector.load %arg1[%c0, %c0_0, %c0_1, %c0_2] : memref<1x16x16x4xf32, #tpu.memory_space<vmem>>, vector<1x16x16x4xf32>
    %1 = vector.shape_cast %0 : vector<1x16x16x4xf32> to vector<16x16x4xf32>
    %c0_3 = arith.constant 0 : index
    %c0_4 = arith.constant 0 : index
    %c0_5 = arith.constant 0 : index
    %2 = vector.load %arg2[%c0_3, %c0_4, %c0_5] : memref<3x12x4xf32, #tpu.memory_space<vmem>>, vector<3x12x4xf32>
    %cst = arith.constant 0.000000e+00 : f32
    %3 = vector.broadcast %cst : f32 to vector<1x16x4xf32>
    %4 = tpu.concatenate %3, %1, %3 in 0 : vector<1x16x4xf32>, vector<16x16x4xf32>, vector<1x16x4xf32> -> vector<18x16x4xf32>
    %5 = vector.extract_strided_slice %4 {offsets = [0, 0, 0], sizes = [16, 16, 4], strides = [1, 1, 1]} : vector<18x16x4xf32> to vector<16x16x4xf32>
    %6 = vector.extract_strided_slice %4 {offsets = [1, 0, 0], sizes = [16, 16, 4], strides = [1, 1, 1]} : vector<18x16x4xf32> to vector<16x16x4xf32>
    %7 = vector.extract_strided_slice %4 {offsets = [2, 0, 0], sizes = [16, 16, 4], strides = [1, 1, 1]} : vector<18x16x4xf32> to vector<16x16x4xf32>
    %8 = tpu.concatenate %5, %6, %7 in 2 : vector<16x16x4xf32>, vector<16x16x4xf32>, vector<16x16x4xf32> -> vector<16x16x12xf32>
    %cst_6 = arith.constant 0.000000e+00 : f32
    %9 = vector.broadcast %cst_6 : f32 to vector<16x1x12xf32>
    %10 = vector.shape_cast %8 : vector<16x16x12xf32> to vector<256x12xf32>
    %11 = vector.extract_strided_slice %2 {offsets = [1, 0, 0], sizes = [1, 12, 4], strides = [1, 1, 1]} : vector<3x12x4xf32> to vector<1x12x4xf32>
    %12 = vector.shape_cast %11 : vector<1x12x4xf32> to vector<12x4xf32>
    %cst_7 = arith.constant dense<0.000000e+00> : vector<256x4xf32>
    %13 = tpu.matmul %10, %12, %cst_7 {dimension_numbers = #tpu.dot_dimension_numbers<[1], [0], [0], [1], [0, 0, 1, 1], [], []>} : vector<256x12xf32>, vector<12x4xf32>, vector<256x4xf32> -> vector<256x4xf32>
    %14 = vector.extract_strided_slice %8 {offsets = [0, 0, 0], sizes = [16, 15, 12], strides = [1, 1, 1]} : vector<16x16x12xf32> to vector<16x15x12xf32>
    %15 = tpu.concatenate %9, %14 in 1 : vector<16x1x12xf32>, vector<16x15x12xf32> -> vector<16x16x12xf32>
    %16 = vector.shape_cast %15 : vector<16x16x12xf32> to vector<256x12xf32>
    %17 = vector.extract_strided_slice %2 {offsets = [0, 0, 0], sizes = [1, 12, 4], strides = [1, 1, 1]} : vector<3x12x4xf32> to vector<1x12x4xf32>
    %18 = vector.shape_cast %17 : vector<1x12x4xf32> to vector<12x4xf32>
    %cst_8 = arith.constant dense<0.000000e+00> : vector<256x4xf32>
    %19 = tpu.matmul %16, %18, %cst_8 {dimension_numbers = #tpu.dot_dimension_numbers<[1], [0], [0], [1], [0, 0, 1, 1], [], []>} : vector<256x12xf32>, vector<12x4xf32>, vector<256x4xf32> -> vector<256x4xf32>
    %20 = arith.addf %13, %19 : vector<256x4xf32>
    %21 = vector.extract_strided_slice %8 {offsets = [0, 1, 0], sizes = [16, 15, 12], strides = [1, 1, 1]} : vector<16x16x12xf32> to vector<16x15x12xf32>
    %22 = tpu.concatenate %21, %9 in 1 : vector<16x15x12xf32>, vector<16x1x12xf32> -> vector<16x16x12xf32>
    %23 = vector.shape_cast %22 : vector<16x16x12xf32> to vector<256x12xf32>
    %24 = vector.extract_strided_slice %2 {offsets = [2, 0, 0], sizes = [1, 12, 4], strides = [1, 1, 1]} : vector<3x12x4xf32> to vector<1x12x4xf32>
    %25 = vector.shape_cast %24 : vector<1x12x4xf32> to vector<12x4xf32>
    %cst_9 = arith.constant dense<0.000000e+00> : vector<256x4xf32>
    %26 = tpu.matmul %23, %25, %cst_9 {dimension_numbers = #tpu.dot_dimension_numbers<[1], [0], [0], [1], [0, 0, 1, 1], [], []>} : vector<256x12xf32>, vector<12x4xf32>, vector<256x4xf32> -> vector<256x4xf32>
    %27 = arith.addf %20, %26 : vector<256x4xf32>
    %c0_10 = arith.constant 0 : index
    %c0_11 = arith.constant 0 : index
    %28 = vector.load %arg3[%c0_10, %c0_11] : memref<1x4xf32, #tpu.memory_space<vmem>>, vector<1x4xf32>
    %c0_12 = arith.constant 0 : index
    %c0_13 = arith.constant 0 : index
    %29 = vector.load %arg4[%c0_12, %c0_13] : memref<1x4xf32, #tpu.memory_space<vmem>>, vector<1x4xf32>
    %cst_14 = arith.constant dense<0.000000e+00> : vector<4xf32>
    %30 = vector.multi_reduction <add>, %27, %cst_14 [0] : vector<256x4xf32> to vector<4xf32>
    %31 = vector.shape_cast %30 : vector<4xf32> to vector<1x4xf32>
    %cst_15 = arith.constant 3.906250e-03 : f32
    %32 = vector.broadcast %cst_15 : f32 to vector<1x4xf32>
    %33 = arith.mulf %31, %32 : vector<1x4xf32>
    %34 = arith.mulf %27, %27 : vector<256x4xf32>
    %cst_16 = arith.constant dense<0.000000e+00> : vector<4xf32>
    %35 = vector.multi_reduction <add>, %34, %cst_16 [0] : vector<256x4xf32> to vector<4xf32>
    %36 = vector.shape_cast %35 : vector<4xf32> to vector<1x4xf32>
    %cst_17 = arith.constant 3.906250e-03 : f32
    %37 = vector.broadcast %cst_17 : f32 to vector<1x4xf32>
    %38 = arith.mulf %36, %37 : vector<1x4xf32>
    %39 = arith.mulf %33, %33 : vector<1x4xf32>
    %40 = arith.subf %38, %39 : vector<1x4xf32>
    %cst_18 = arith.constant 9.99999974E-6 : f32
    %41 = vector.broadcast %cst_18 : f32 to vector<1x4xf32>
    %42 = arith.addf %40, %41 : vector<1x4xf32>
    %43 = math.rsqrt %42 : vector<1x4xf32>
    %44 = arith.mulf %43, %28 : vector<1x4xf32>
    %45 = arith.mulf %33, %44 : vector<1x4xf32>
    %46 = arith.subf %29, %45 : vector<1x4xf32>
    %47 = vector.broadcast %44 : vector<1x4xf32> to vector<256x4xf32>
    %48 = arith.mulf %27, %47 : vector<256x4xf32>
    %49 = vector.broadcast %46 : vector<1x4xf32> to vector<256x4xf32>
    %50 = arith.addf %48, %49 : vector<256x4xf32>
    %cst_19 = arith.constant 0.000000e+00 : f32
    %51 = vector.broadcast %cst_19 : f32 to vector<256x4xf32>
    %52 = arith.maximumf %50, %51 : vector<256x4xf32>
    %53 = vector.shape_cast %52 : vector<256x4xf32> to vector<16x16x4xf32>
    %c0_20 = arith.constant 0 : index
    %c0_21 = arith.constant 0 : index
    %c0_22 = arith.constant 0 : index
    %54 = vector.load %arg5[%c0_20, %c0_21, %c0_22] : memref<3x12x4xf32, #tpu.memory_space<vmem>>, vector<3x12x4xf32>
    %cst_23 = arith.constant 0.000000e+00 : f32
    %55 = vector.broadcast %cst_23 : f32 to vector<1x16x4xf32>
    %56 = tpu.concatenate %55, %53, %55 in 0 : vector<1x16x4xf32>, vector<16x16x4xf32>, vector<1x16x4xf32> -> vector<18x16x4xf32>
    %57 = vector.extract_strided_slice %56 {offsets = [0, 0, 0], sizes = [16, 16, 4], strides = [1, 1, 1]} : vector<18x16x4xf32> to vector<16x16x4xf32>
    %58 = vector.extract_strided_slice %56 {offsets = [1, 0, 0], sizes = [16, 16, 4], strides = [1, 1, 1]} : vector<18x16x4xf32> to vector<16x16x4xf32>
    %59 = vector.extract_strided_slice %56 {offsets = [2, 0, 0], sizes = [16, 16, 4], strides = [1, 1, 1]} : vector<18x16x4xf32> to vector<16x16x4xf32>
    %60 = tpu.concatenate %57, %58, %59 in 2 : vector<16x16x4xf32>, vector<16x16x4xf32>, vector<16x16x4xf32> -> vector<16x16x12xf32>
    %cst_24 = arith.constant 0.000000e+00 : f32
    %61 = vector.broadcast %cst_24 : f32 to vector<16x1x12xf32>
    %62 = vector.shape_cast %60 : vector<16x16x12xf32> to vector<256x12xf32>
    %63 = vector.extract_strided_slice %54 {offsets = [1, 0, 0], sizes = [1, 12, 4], strides = [1, 1, 1]} : vector<3x12x4xf32> to vector<1x12x4xf32>
    %64 = vector.shape_cast %63 : vector<1x12x4xf32> to vector<12x4xf32>
    %cst_25 = arith.constant dense<0.000000e+00> : vector<256x4xf32>
    %65 = tpu.matmul %62, %64, %cst_25 {dimension_numbers = #tpu.dot_dimension_numbers<[1], [0], [0], [1], [0, 0, 1, 1], [], []>} : vector<256x12xf32>, vector<12x4xf32>, vector<256x4xf32> -> vector<256x4xf32>
    %66 = vector.extract_strided_slice %60 {offsets = [0, 0, 0], sizes = [16, 15, 12], strides = [1, 1, 1]} : vector<16x16x12xf32> to vector<16x15x12xf32>
    %67 = tpu.concatenate %61, %66 in 1 : vector<16x1x12xf32>, vector<16x15x12xf32> -> vector<16x16x12xf32>
    %68 = vector.shape_cast %67 : vector<16x16x12xf32> to vector<256x12xf32>
    %69 = vector.extract_strided_slice %54 {offsets = [0, 0, 0], sizes = [1, 12, 4], strides = [1, 1, 1]} : vector<3x12x4xf32> to vector<1x12x4xf32>
    %70 = vector.shape_cast %69 : vector<1x12x4xf32> to vector<12x4xf32>
    %cst_26 = arith.constant dense<0.000000e+00> : vector<256x4xf32>
    %71 = tpu.matmul %68, %70, %cst_26 {dimension_numbers = #tpu.dot_dimension_numbers<[1], [0], [0], [1], [0, 0, 1, 1], [], []>} : vector<256x12xf32>, vector<12x4xf32>, vector<256x4xf32> -> vector<256x4xf32>
    %72 = arith.addf %65, %71 : vector<256x4xf32>
    %73 = vector.extract_strided_slice %60 {offsets = [0, 1, 0], sizes = [16, 15, 12], strides = [1, 1, 1]} : vector<16x16x12xf32> to vector<16x15x12xf32>
    %74 = tpu.concatenate %73, %61 in 1 : vector<16x15x12xf32>, vector<16x1x12xf32> -> vector<16x16x12xf32>
    %75 = vector.shape_cast %74 : vector<16x16x12xf32> to vector<256x12xf32>
    %76 = vector.extract_strided_slice %54 {offsets = [2, 0, 0], sizes = [1, 12, 4], strides = [1, 1, 1]} : vector<3x12x4xf32> to vector<1x12x4xf32>
    %77 = vector.shape_cast %76 : vector<1x12x4xf32> to vector<12x4xf32>
    %cst_27 = arith.constant dense<0.000000e+00> : vector<256x4xf32>
    %78 = tpu.matmul %75, %77, %cst_27 {dimension_numbers = #tpu.dot_dimension_numbers<[1], [0], [0], [1], [0, 0, 1, 1], [], []>} : vector<256x12xf32>, vector<12x4xf32>, vector<256x4xf32> -> vector<256x4xf32>
    %79 = arith.addf %72, %78 : vector<256x4xf32>
    %c0_28 = arith.constant 0 : index
    %c0_29 = arith.constant 0 : index
    %80 = vector.load %arg6[%c0_28, %c0_29] : memref<1x4xf32, #tpu.memory_space<vmem>>, vector<1x4xf32>
    %c0_30 = arith.constant 0 : index
    %c0_31 = arith.constant 0 : index
    %81 = vector.load %arg7[%c0_30, %c0_31] : memref<1x4xf32, #tpu.memory_space<vmem>>, vector<1x4xf32>
    %cst_32 = arith.constant dense<0.000000e+00> : vector<4xf32>
    %82 = vector.multi_reduction <add>, %79, %cst_32 [0] : vector<256x4xf32> to vector<4xf32>
    %83 = vector.shape_cast %82 : vector<4xf32> to vector<1x4xf32>
    %cst_33 = arith.constant 3.906250e-03 : f32
    %84 = vector.broadcast %cst_33 : f32 to vector<1x4xf32>
    %85 = arith.mulf %83, %84 : vector<1x4xf32>
    %86 = arith.mulf %79, %79 : vector<256x4xf32>
    %cst_34 = arith.constant dense<0.000000e+00> : vector<4xf32>
    %87 = vector.multi_reduction <add>, %86, %cst_34 [0] : vector<256x4xf32> to vector<4xf32>
    %88 = vector.shape_cast %87 : vector<4xf32> to vector<1x4xf32>
    %cst_35 = arith.constant 3.906250e-03 : f32
    %89 = vector.broadcast %cst_35 : f32 to vector<1x4xf32>
    %90 = arith.mulf %88, %89 : vector<1x4xf32>
    %91 = arith.mulf %85, %85 : vector<1x4xf32>
    %92 = arith.subf %90, %91 : vector<1x4xf32>
    %cst_36 = arith.constant 9.99999974E-6 : f32
    %93 = vector.broadcast %cst_36 : f32 to vector<1x4xf32>
    %94 = arith.addf %92, %93 : vector<1x4xf32>
    %95 = math.rsqrt %94 : vector<1x4xf32>
    %96 = arith.mulf %95, %80 : vector<1x4xf32>
    %97 = arith.mulf %85, %96 : vector<1x4xf32>
    %98 = arith.subf %81, %97 : vector<1x4xf32>
    %99 = vector.broadcast %96 : vector<1x4xf32> to vector<256x4xf32>
    %100 = arith.mulf %79, %99 : vector<256x4xf32>
    %101 = vector.broadcast %98 : vector<1x4xf32> to vector<256x4xf32>
    %102 = arith.addf %100, %101 : vector<256x4xf32>
    %103 = vector.shape_cast %102 : vector<256x4xf32> to vector<16x16x4xf32>
    %104 = arith.addf %1, %103 : vector<16x16x4xf32>
    %c0_37 = arith.constant 0 : index
    %c0_38 = arith.constant 0 : index
    %c0_39 = arith.constant 0 : index
    %c0_40 = arith.constant 0 : index
    %105 = vector.load %arg8[%c0_37, %c0_38, %c0_39, %c0_40] : memref<1x16x16x4xf32, #tpu.memory_space<vmem>>, vector<1x16x16x4xf32>
    %106 = vector.shape_cast %105 : vector<1x16x16x4xf32> to vector<16x16x4xf32>
    %107 = vector.shape_cast %104 : vector<16x16x4xf32> to vector<1x16x16x4xf32>
    tpu.vector_store %arg8[%c0_37, %c0_38, %c0_39, %c0_40], %107 {strides = array<i32>} : memref<1x16x16x4xf32, #tpu.memory_space<vmem>>, vector<1x16x16x4xf32>,
    return
  }
  func.func @transform_0(%arg0: i32) -> (i32, i32, i32, i32) {
    %c0_i32 = arith.constant 0 : i32
    %c0_i32_0 = arith.constant 0 : i32
    %c0_i32_1 = arith.constant 0 : i32
    %c0_i32_2 = arith.constant 0 : i32
    return %arg0, %c0_i32, %c0_i32_0, %c0_i32_1 : i32, i32, i32, i32
  }
  func.func @transform_1(%arg0: i32) -> (i32, i32, i32) {
    %c0_i32 = arith.constant 0 : i32
    %c0_i32_0 = arith.constant 0 : i32
    %c0_i32_1 = arith.constant 0 : i32
    %c0_i32_2 = arith.constant 0 : i32
    return %c0_i32, %c0_i32_0, %c0_i32_1 : i32, i32, i32
  }
  func.func @transform_2(%arg0: i32) -> (i32, i32) {
    %c0_i32 = arith.constant 0 : i32
    %c0_i32_0 = arith.constant 0 : i32
    %c0_i32_1 = arith.constant 0 : i32
    return %c0_i32, %c0_i32_0 : i32, i32
  }
  func.func @transform_3(%arg0: i32) -> (i32, i32) {
    %c0_i32 = arith.constant 0 : i32
    %c0_i32_0 = arith.constant 0 : i32
    %c0_i32_1 = arith.constant 0 : i32
    return %c0_i32, %c0_i32_0 : i32, i32
  }
  func.func @transform_4(%arg0: i32) -> (i32, i32, i32) {
    %c0_i32 = arith.constant 0 : i32
    %c0_i32_0 = arith.constant 0 : i32
    %c0_i32_1 = arith.constant 0 : i32
    %c0_i32_2 = arith.constant 0 : i32
    return %c0_i32, %c0_i32_0, %c0_i32_1 : i32, i32, i32
  }
  func.func @transform_5(%arg0: i32) -> (i32, i32) {
    %c0_i32 = arith.constant 0 : i32
    %c0_i32_0 = arith.constant 0 : i32
    %c0_i32_1 = arith.constant 0 : i32
    return %c0_i32, %c0_i32_0 : i32, i32
  }
  func.func @transform_6(%arg0: i32) -> (i32, i32) {
    %c0_i32 = arith.constant 0 : i32
    %c0_i32_0 = arith.constant 0 : i32
    %c0_i32_1 = arith.constant 0 : i32
    return %c0_i32, %c0_i32_0 : i32, i32
  }
  func.func @transform_7(%arg0: i32) -> (i32, i32, i32, i32) {
    %c0_i32 = arith.constant 0 : i32
    %c0_i32_0 = arith.constant 0 : i32
    %c0_i32_1 = arith.constant 0 : i32
    %c0_i32_2 = arith.constant 0 : i32
    return %arg0, %c0_i32, %c0_i32_0, %c0_i32_1 : i32, i32, i32, i32
  }
}

</mosaic_0001>

<llo_original>
// kernel: tpu_custom_call.1
$region0: #{tpu_custom_call.1}
  #allocation0 [shape = 'u32[]', space=smem, size = 0x4, offset = 0x4, fixed_abs, tag = 'smem constant byte address 0x4 - core index']
  #allocation1 [shape = 'u32[72,128]{1,0:T(1,128)}', space=vmem, size = 0x9000, scoped, tag = 'internal scratch']
  %s0 = inlined_call_operand.vmem [shape: f32[2,16,16,4], index: 0, kind: input, shape index: {}]
  %s1 = inlined_call_operand.vmem [shape: f32[3,12,4], index: 1, kind: input, shape index: {}]
  %s2 = inlined_call_operand.vmem [shape: f32[1,4], index: 2, kind: input, shape index: {}]
  %s3 = inlined_call_operand.vmem [shape: f32[1,4], index: 3, kind: input, shape index: {}]
  %s4 = inlined_call_operand.vmem [shape: f32[3,12,4], index: 4, kind: input, shape index: {}]
  %s5 = inlined_call_operand.vmem [shape: f32[1,4], index: 5, kind: input, shape index: {}]
  %s6 = inlined_call_operand.vmem [shape: f32[1,4], index: 6, kind: input, shape index: {}]
  %s7 = inlined_call_operand.vmem [shape: f32[2,16,16,4], index: 7, kind: output, shape index: {}]
  %s8 = sld [smem:[#allocation0]]
  $region61: #{tpu_custom_call.1} parent=0
    _
  %s10 = ssub.s32 1, %s8
  %s11 = scalar_select 0, %s10, %s8
  loop: start=0, step=1, limit=4
  $region2: #{tpu_custom_call.1} parent=0 // loop_pre_header
    _
  $region3: #{tpu_custom_call.1} parent=0 // loop_header
    %s13 = sphi 0, %s17
    %p14 = scmp.ge.s32.totalorder %s13, 4
    %s23 = sphi 0, %s25
    %s26 = sphi 0, %s23
    %s27 = sphi 0, %s26
    %s43 = sphi 0, %s27
    %s47 = sphi 0, %s47
    %s49 = sphi 0, %s47
    %s50 = sphi 0, %s49
    %s64 = sphi 0, %s50
    %s68 = sphi 0, %s68
    %s70 = sphi 0, %s68
    %s71 = sphi 0, %s70
    %s85 = sphi 0, %s71
    %s89 = sphi 0, %s89
    %s91 = sphi 0, %s89
    %s92 = sphi 0, %s91
    %s106 = sphi 0, %s92
    %s110 = sphi 0, %s110
    %s112 = sphi 0, %s110
    %s113 = sphi 0, %s112
    %s127 = sphi 0, %s113
    %s131 = sphi 0, %s131
    %s133 = sphi 0, %s131
    %s134 = sphi 0, %s133
    %s148 = sphi 0, %s134
    %s152 = sphi 0, %s152
    %s154 = sphi 0, %s152
    %s155 = sphi 0, %s154
    %s169 = sphi 0, %s155
    %s175 = sphi 0, %s177
    %s178 = sphi 0, %s175
    %s179 = sphi 0, %s178
    %s195 = sphi 0, %s179
  $region4: #{tpu_custom_call.1} parent=0 // loop_header_branch
    %16 = sbr.rel (%p14) target = $region8
  $region5: #{tpu_custom_call.1} parent=0 // loop_body
    %s18 = ssub.s32 %s13, 1
    %s19 = ssub.s32 %s13, 2
    %s20 = sadd.s32 %s13, 1
    %s21 = ssub.s32 %s13, %s20
    %p22 = scmp.eq.s32.totalorder %s21, 0
    %s24 = sadd.s32 %s23, 1
    %s25 = scalar_select %p22, %s23, %s24
    %p28 = pneg %p22
    %p29 = scmp.eq.s32.totalorder %s13, 1
    %p30 = por %p28, %p29
    %p31 = scmp.ne.s32.totalorder %s23, %s26
    %p32 = scmp.eq.s32.totalorder %s13, 0
    %p33 = por %p31, %p32
    %p34 = scmp.ne.s32.totalorder %s23, %s26
    %p35 = scmp.eq.s32.totalorder %s18, 1
    %p36 = por %p34, %p35
    %p37 = scmp.ne.s32.totalorder %s26, %s27
    %p38 = scmp.eq.s32.totalorder %s18, 0
    %p39 = por %p37, %p38
    %p40 = scmp.ne.s32.totalorder %s26, %s27
    %p41 = scmp.eq.s32.totalorder %s19, 1
    %p42 = por %p40, %p41
    %p44 = scmp.ne.s32.totalorder %s27, %s43
    %p45 = scmp.eq.s32.totalorder %s19, 0
    %p46 = por %p44, %p45
    %s48 = sadd.s32 %s47, 1
    %p51 = scmp.eq.s32.totalorder %s13, 1
    %p52 = scmp.ne.s32.totalorder %s47, %s49
    %p53 = scmp.eq.s32.totalorder %s13, 0
    %p54 = por %p52, %p53
    %p55 = scmp.ne.s32.totalorder %s47, %s49
    %p56 = scmp.eq.s32.totalorder %s18, 1
    %p57 = por %p55, %p56
    %p58 = scmp.ne.s32.totalorder %s49, %s50
    %p59 = scmp.eq.s32.totalorder %s18, 0
    %p60 = por %p58, %p59
    %p61 = scmp.ne.s32.totalorder %s49, %s50
    %p62 = scmp.eq.s32.totalorder %s19, 1
    %p63 = por %p61, %p62
    %p65 = scmp.ne.s32.totalorder %s50, %s64
    %p66 = scmp.eq.s32.totalorder %s19, 0
    %p67 = por %p65, %p66
    %s69 = sadd.s32 %s68, 1
    %p72 = scmp.eq.s32.totalorder %s13, 1
    %p73 = scmp.ne.s32.totalorder %s68, %s70
    %p74 = scmp.eq.s32.totalorder %s13, 0
    %p75 = por %p73, %p74
    %p76 = scmp.ne.s32.totalorder %s68, %s70
    %p77 = scmp.eq.s32.totalorder %s18, 1
    %p78 = por %p76, %p77
    %p79 = scmp.ne.s32.totalorder %s70, %s71
    %p80 = scmp.eq.s32.totalorder %s18, 0
    %p81 = por %p79, %p80
    %p82 = scmp.ne.s32.totalorder %s70, %s71
    %p83 = scmp.eq.s32.totalorder %s19, 1
    %p84 = por %p82, %p83
    %p86 = scmp.ne.s32.totalorder %s71, %s85
    %p87 = scmp.eq.s32.totalorder %s19, 0
    %p88 = por %p86, %p87
    %s90 = sadd.s32 %s89, 1
    %p93 = scmp.eq.s32.totalorder %s13, 1
    %p94 = scmp.ne.s32.totalorder %s89, %s91
    %p95 = scmp.eq.s32.totalorder %s13, 0
    %p96 = por %p94, %p95
    %p97 = scmp.ne.s32.totalorder %s89, %s91
    %p98 = scmp.eq.s32.totalorder %s18, 1
    %p99 = por %p97, %p98
    %p100 = scmp.ne.s32.totalorder %s91, %s92
    %p101 = scmp.eq.s32.totalorder %s18, 0
    %p102 = por %p100, %p101
    %p103 = scmp.ne.s32.totalorder %s91, %s92
    %p104 = scmp.eq.s32.totalorder %s19, 1
    %p105 = por %p103, %p104
    %p107 = scmp.ne.s32.totalorder %s92, %s106
    %p108 = scmp.eq.s32.totalorder %s19, 0
    %p109 = por %p107, %p108
    %s111 = sadd.s32 %s110, 1
    %p114 = scmp.eq.s32.totalorder %s13, 1
    %p115 = scmp.ne.s32.totalorder %s110, %s112
    %p116 = scmp.eq.s32.totalorder %s13, 0
    %p117 = por %p115, %p116
    %p118 = scmp.ne.s32.totalorder %s110, %s112
    %p119 = scmp.eq.s32.totalorder %s18, 1
    %p120 = por %p118, %p119
    %p121 = scmp.ne.s32.totalorder %s112, %s113
    %p122 = scmp.eq.s32.totalorder %s18, 0
    %p123 = por %p121, %p122
    %p124 = scmp.ne.s32.totalorder %s112, %s113
    %p125 = scmp.eq.s32.totalorder %s19, 1
    %p126 = por %p124, %p125
    %p128 = scmp.ne.s32.totalorder %s113, %s127
    %p129 = scmp.eq.s32.totalorder %s19, 0
    %p130 = por %p128, %p129
    %s132 = sadd.s32 %s131, 1
    %p135 = scmp.eq.s32.totalorder %s13, 1
    %p136 = scmp.ne.s32.totalorder %s131, %s133
    %p137 = scmp.eq.s32.totalorder %s13, 0
    %p138 = por %p136, %p137
    %p139 = scmp.ne.s32.totalorder %s131, %s133
    %p140 = scmp.eq.s32.totalorder %s18, 1
    %p141 = por %p139, %p140
    %p142 = scmp.ne.s32.totalorder %s133, %s134
    %p143 = scmp.eq.s32.totalorder %s18, 0
    %p144 = por %p142, %p143
    %p145 = scmp.ne.s32.totalorder %s133, %s134
    %p146 = scmp.eq.s32.totalorder %s19, 1
    %p147 = por %p145, %p146
    %p149 = scmp.ne.s32.totalorder %s134, %s148
    %p150 = scmp.eq.s32.totalorder %s19, 0
    %p151 = por %p149, %p150
    %s153 = sadd.s32 %s152, 1
    %p156 = scmp.eq.s32.totalorder %s13, 1
    %p157 = scmp.ne.s32.totalorder %s152, %s154
    %p158 = scmp.eq.s32.totalorder %s13, 0
    %p159 = por %p157, %p158
    %p160 = scmp.ne.s32.totalorder %s152, %s154
    %p161 = scmp.eq.s32.totalorder %s18, 1
    %p162 = por %p160, %p161
    %p163 = scmp.ne.s32.totalorder %s154, %s155
    %p164 = scmp.eq.s32.totalorder %s18, 0
    %p165 = por %p163, %p164
    %p166 = scmp.ne.s32.totalorder %s154, %s155
    %p167 = scmp.eq.s32.totalorder %s19, 1
    %p168 = por %p166, %p167
    %p170 = scmp.ne.s32.totalorder %s155, %s169
    %p171 = scmp.eq.s32.totalorder %s19, 0
    %p172 = por %p170, %p171
    %s173 = ssub.s32 %s13, %s20
    %p174 = scmp.eq.s32.totalorder %s173, 0
    %s176 = sadd.s32 %s175, 1
    %s177 = scalar_select %p174, %s175, %s176
    %p180 = pneg %p174
    %p181 = scmp.eq.s32.totalorder %s13, 1
    %p182 = por %p180, %p181
    %p183 = scmp.ne.s32.totalorder %s175, %s178
    %p184 = scmp.eq.s32.totalorder %s13, 0
    %p185 = por %p183, %p184
    %p186 = scmp.ne.s32.totalorder %s175, %s178
    %p187 = scmp.eq.s32.totalorder %s18, 1
    %p188 = por %p186, %p187
    %p189 = scmp.ne.s32.totalorder %s178, %s179
    %p190 = scmp.eq.s32.totalorder %s18, 0
    %p191 = por %p189, %p190
    %p192 = scmp.ne.s32.totalorder %s178, %s179
    %p193 = scmp.eq.s32.totalorder %s19, 1
    %p194 = por %p192, %p193
    %p196 = scmp.ne.s32.totalorder %s179, %s195
    %p197 = scmp.eq.s32.totalorder %s19, 0
    %p198 = por %p196, %p197
    %p199 = scmp.le.s32.totalorder 1, %s13
    %p200 = scmp.lt.s32.totalorder %s13, 3
    %p201 = pnand %p199, %p200
    %p202 = pneg %p201
    // Predicated region
    $region9: #{tpu_custom_call.1} parent=5 // pred_check
      _
    $region10: #{tpu_custom_call.1} parent=5 // pred_check_branch
      %204 = sbr.rel (%p201) target = $region12
    $region11: #{tpu_custom_call.1} parent=5 // pred_region
      %s205 = ssub.s32 %s13, 1
      // Predicated region
      $region13: #{tpu_custom_call.1} parent=11 // pred_check
        %p206 = pneg %p60
      $region14: #{tpu_custom_call.1} parent=11 // pred_check_branch
        %208 = sbr.rel (%p206) target = $region16
      $region15: #{tpu_custom_call.1} parent=11 // pred_region
        _
      $region16: #{tpu_custom_call.1} parent=11 // pred_fallthru
        _
      // Predicated region
      $region17: #{tpu_custom_call.1} parent=11 // pred_check
        %p209 = pneg %p81
      $region18: #{tpu_custom_call.1} parent=11 // pred_check_branch
        %211 = sbr.rel (%p209) target = $region20
      $region19: #{tpu_custom_call.1} parent=11 // pred_region
        _
      $region20: #{tpu_custom_call.1} parent=11 // pred_fallthru
        _
      // Predicated region
      $region21: #{tpu_custom_call.1} parent=11 // pred_check
        %p212 = pneg %p102
      $region22: #{tpu_custom_call.1} parent=11 // pred_check_branch
        %214 = sbr.rel (%p212) target = $region24
      $region23: #{tpu_custom_call.1} parent=11 // pred_region
        _
      $region24: #{tpu_custom_call.1} parent=11 // pred_fallthru
        _
      // Predicated region
      $region25: #{tpu_custom_call.1} parent=11 // pred_check
        %p215 = pneg %p123
      $region26: #{tpu_custom_call.1} parent=11 // pred_check_branch
        %217 = sbr.rel (%p215) target = $region28
      $region27: #{tpu_custom_call.1} parent=11 // pred_region
        _
      $region28: #{tpu_custom_call.1} parent=11 // pred_fallthru
        _
      // Predicated region
      $region29: #{tpu_custom_call.1} parent=11 // pred_check
        %p218 = pneg %p144
      $region30: #{tpu_custom_call.1} parent=11 // pred_check_branch
        %220 = sbr.rel (%p218) target = $region32
      $region31: #{tpu_custom_call.1} parent=11 // pred_region
        _
      $region32: #{tpu_custom_call.1} parent=11 // pred_fallthru
        _
      // Predicated region
      $region33: #{tpu_custom_call.1} parent=11 // pred_check
        %p221 = pneg %p165
      $region34: #{tpu_custom_call.1} parent=11 // pred_check_branch
        %223 = sbr.rel (%p221) target = $region36
      $region35: #{tpu_custom_call.1} parent=11 // pred_region
        _
      $region36: #{tpu_custom_call.1} parent=11 // pred_fallthru
        _
    $region12: #{tpu_custom_call.1} parent=5 // pred_fallthru
      _
    %p224 = scmp.lt.s32.totalorder %s13, 2
    // Predicated region
    $region37: #{tpu_custom_call.1} parent=5 // pred_check
      %p225 = pneg %p224
    $region38: #{tpu_custom_call.1} parent=5 // pred_check_branch
      %227 = sbr.rel (%p225) target = $region40
    $region39: #{tpu_custom_call.1} parent=5 // pred_region
      // Predicated region
      $region41: #{tpu_custom_call.1} parent=39 // pred_check
        %p228 = pneg %p33
      $region42: #{tpu_custom_call.1} parent=39 // pred_check_branch
        %230 = sbr.rel (%p228) target = $region44
      $region43: #{tpu_custom_call.1} parent=39 // pred_region
        %p231 = scmp.lt.s32.totalorder %s13, 1
        %s232 = scalar_select %p231, %s13, 1
        %s233 = smul.addr %s232, 32
        %s234 = smul.addr %s233, 8
        %s235 = scalar_lea.vmem %s0, %s234
      $region44: #{tpu_custom_call.1} parent=39 // pred_fallthru
        _
    $region40: #{tpu_custom_call.1} parent=5 // pred_fallthru
      _
    %p236 = scmp.le.s32.totalorder 1, %s13
    %p237 = scmp.lt.s32.totalorder %s13, 3
    %p238 = pnand %p236, %p237
    %p239 = pneg %p238
    // Predicated region
    $region45: #{tpu_custom_call.1} parent=5 // pred_check
      _
    $region46: #{tpu_custom_call.1} parent=5 // pred_check_branch
      %241 = sbr.rel (%p238) target = $region48
    $region47: #{tpu_custom_call.1} parent=5 // pred_region
      %s242 = ssub.s32 %s13, 1
      %p243 = scmp.lt.s32.totalorder %s18, 1
      %s244 = scalar_select %p243, %s18, 1
      %s245 = smul.addr %s244, 32
      %s246 = smul.addr %s245, 8
      %s247 = scalar_lea.vmem %s0, %s246
      %p248 = pneg %p39
      %p249 = pneg %p36
      %p250 = pneg %p60
      %p251 = pneg %p57
      %p252 = pneg %p81
      %p253 = pneg %p78
      %p254 = pneg %p102
      %p255 = pneg %p99
      %p256 = pneg %p123
      %p257 = pneg %p120
      %p258 = pneg %p144
      %p259 = pneg %p141
      %p260 = pneg %p165
      %p261 = pneg %p162
      %p262 = pneg %p191
      %p263 = pneg %p188
      %p264 = scmp.lt.s32.totalorder %s18, 1
      %s265 = scalar_select %p264, %s18, 1
      %s266 = smul.addr %s265, 32
      %s267 = smul.addr %s266, 8
      %s268 = scalar_lea.vmem %s7, %s267
      %p269 = scmp.lt.s32.totalorder %s18, 1
      %s270 = scalar_select %p269, %s18, 1
      %s271 = smul.addr %s270, 32
      %s272 = smul.addr %s271, 8
      %s273 = scalar_lea.vmem %s0, %s272
      %p274 = scmp.lt.s32.totalorder %s18, 1
      %s275 = scalar_select %p274, %s18, 1
      %s276 = smul.addr %s275, 32
      %s277 = smul.addr %s276, 8
      %s278 = scalar_lea.vmem %s7, %s277
      %v279 = vld [vmem:[%s273] sm:$0xff]
      %v280 = vld [vmem:[%s273 + $0x8] sm:$0xff]
      %v281 = vld [vmem:[%s273 + $0x10] sm:$0xff]
      %v282 = vld [vmem:[%s273 + $0x18] sm:$0xff]
      %v283 = vld [vmem:[%s273 + $0x20] sm:$0xff]
      %v284 = vld [vmem:[%s273 + $0x28] sm:$0xff]
      %v285 = vld [vmem:[%s273 + $0x30] sm:$0xff]
      %v286 = vld [vmem:[%s273 + $0x38] sm:$0xff]
      %v287 = vld [vmem:[%s273 + $0x40] sm:$0xff]
      %v288 = vld [vmem:[%s273 + $0x48] sm:$0xff]
      %v289 = vld [vmem:[%s273 + $0x50] sm:$0xff]
      %v290 = vld [vmem:[%s273 + $0x58] sm:$0xff]
      %v291 = vld [vmem:[%s273 + $0x60] sm:$0xff]
      %v292 = vld [vmem:[%s273 + $0x68] sm:$0xff]
      %v293 = vld [vmem:[%s273 + $0x70] sm:$0xff]
      %v294 = vld [vmem:[%s273 + $0x78] sm:$0xff]
      %v295 = vld [vmem:[%s273 + $0x80] sm:$0xff]
      %v296 = vld [vmem:[%s273 + $0x88] sm:$0xff]
      %v297 = vld [vmem:[%s273 + $0x90] sm:$0xff]
      %v298 = vld [vmem:[%s273 + $0x98] sm:$0xff]
      %v299 = vld [vmem:[%s273 + $0xa0] sm:$0xff]
      %v300 = vld [vmem:[%s273 + $0xa8] sm:$0xff]
      %v301 = vld [vmem:[%s273 + $0xb0] sm:$0xff]
      %v302 = vld [vmem:[%s273 + $0xb8] sm:$0xff]
      %v303 = vld [vmem:[%s273 + $0xc0] sm:$0xff]
      %v304 = vld [vmem:[%s273 + $0xc8] sm:$0xff]
      %v305 = vld [vmem:[%s273 + $0xd0] sm:$0xff]
      %v306 = vld [vmem:[%s273 + $0xd8] sm:$0xff]
      %v307 = vld [vmem:[%s273 + $0xe0] sm:$0xff]
      %v308 = vld [vmem:[%s273 + $0xe8] sm:$0xff]
      %v309 = vld [vmem:[%s273 + $0xf0] sm:$0xff]
      %v310 = vld [vmem:[%s273 + $0xf8] sm:$0xff]
      %v311 = vld [vmem:[%s1] sm:$0xff]
      %v312 = vld [vmem:[%s1 + $0x8] sm:$0xf]
      %v313 = vld [vmem:[%s1 + $0x10] sm:$0xff]
      %v314 = vld [vmem:[%s1 + $0x18] sm:$0xf]
      %v315 = vld [vmem:[%s1 + $0x20] sm:$0xff]
      %v316 = vld [vmem:[%s1 + $0x28] sm:$0xf]
      %349 = vrot.lane.b32.xlu0 %v279, 4
      %v350 = vpop.permute.xlu0 %349
      %351 = vrot.lane.b32.xlu0 %v280, 4
      %v352 = vpop.permute.xlu0 %351
      %353 = vrot.lane.b32.xlu0 %v281, 4
      %v354 = vpop.permute.xlu0 %353
      %355 = vrot.lane.b32.xlu0 %v282, 4
      %v356 = vpop.permute.xlu0 %355
      %357 = vrot.lane.b32.xlu0 %v283, 4
      %v358 = vpop.permute.xlu0 %357
      %359 = vrot.lane.b32.xlu0 %v284, 4
      %v360 = vpop.permute.xlu0 %359
      %361 = vrot.lane.b32.xlu0 %v285, 4
      %v362 = vpop.permute.xlu0 %361
      %363 = vrot.lane.b32.xlu0 %v286, 4
      %v364 = vpop.permute.xlu0 %363
      %365 = vrot.lane.b32.xlu0 %v287, 4
      %v366 = vpop.permute.xlu0 %365
      %367 = vrot.lane.b32.xlu0 %v288, 4
      %v368 = vpop.permute.xlu0 %367
      %369 = vrot.lane.b32.xlu0 %v289, 4
      %v370 = vpop.permute.xlu0 %369
      %371 = vrot.lane.b32.xlu0 %v290, 4
      %v372 = vpop.permute.xlu0 %371
      %373 = vrot.lane.b32.xlu0 %v291, 4
      %v374 = vpop.permute.xlu0 %373
      %375 = vrot.lane.b32.xlu0 %v292, 4
      %v376 = vpop.permute.xlu0 %375
      %377 = vrot.lane.b32.xlu0 %v293, 4
      %v378 = vpop.permute.xlu0 %377
      %379 = vrot.lane.b32.xlu0 %v294, 4
      %v380 = vpop.permute.xlu0 %379
      %381 = vrot.lane.b32.xlu0 %v295, 4
      %v382 = vpop.permute.xlu0 %381
      %383 = vrot.lane.b32.xlu0 %v296, 4
      %v384 = vpop.permute.xlu0 %383
      %385 = vrot.lane.b32.xlu0 %v297, 4
      %v386 = vpop.permute.xlu0 %385
      %387 = vrot.lane.b32.xlu0 %v298, 4
      %v388 = vpop.permute.xlu0 %387
      %389 = vrot.lane.b32.xlu0 %v299, 4
      %v390 = vpop.permute.xlu0 %389
      %391 = vrot.lane.b32.xlu0 %v300, 4
      %v392 = vpop.permute.xlu0 %391
      %393 = vrot.lane.b32.xlu0 %v301, 4
      %v394 = vpop.permute.xlu0 %393
      %395 = vrot.lane.b32.xlu0 %v302, 4
      %v396 = vpop.permute.xlu0 %395
      %397 = vrot.lane.b32.xlu0 %v303, 4
      %v398 = vpop.permute.xlu0 %397
      %399 = vrot.lane.b32.xlu0 %v304, 4
      %v400 = vpop.permute.xlu0 %399
      %401 = vrot.lane.b32.xlu0 %v305, 4
      %v402 = vpop.permute.xlu0 %401
      %403 = vrot.lane.b32.xlu0 %v306, 4
      %v404 = vpop.permute.xlu0 %403
      %405 = vrot.lane.b32.xlu0 %v307, 4
      %v406 = vpop.permute.xlu0 %405
      %407 = vrot.lane.b32.xlu0 %v308, 4
      %v408 = vpop.permute.xlu0 %407
      %409 = vrot.lane.b32.xlu0 %v309, 4
      %v410 = vpop.permute.xlu0 %409
      %411 = vrot.lane.b32.xlu0 %v310, 4
      %v412 = vpop.permute.xlu0 %411
      %446 = vrot.lane.b32.xlu0 %v281, 8
      %v447 = vpop.permute.xlu0 %446
      %448 = vrot.lane.b32.xlu0 %v282, 8
      %v449 = vpop.permute.xlu0 %448
      %450 = vrot.lane.b32.xlu0 %v283, 8
      %v451 = vpop.permute.xlu0 %450
      %452 = vrot.lane.b32.xlu0 %v284, 8
      %v453 = vpop.permute.xlu0 %452
      %454 = vrot.lane.b32.xlu0 %v285, 8
      %v455 = vpop.permute.xlu0 %454
      %456 = vrot.lane.b32.xlu0 %v286, 8
      %v457 = vpop.permute.xlu0 %456
      %458 = vrot.lane.b32.xlu0 %v287, 8
      %v459 = vpop.permute.xlu0 %458
      %460 = vrot.lane.b32.xlu0 %v288, 8
      %v461 = vpop.permute.xlu0 %460
      %462 = vrot.lane.b32.xlu0 %v289, 8
      %v463 = vpop.permute.xlu0 %462
      %464 = vrot.lane.b32.xlu0 %v290, 8
      %v465 = vpop.permute.xlu0 %464
      %466 = vrot.lane.b32.xlu0 %v291, 8
      %v467 = vpop.permute.xlu0 %466
      %468 = vrot.lane.b32.xlu0 %v292, 8
      %v469 = vpop.permute.xlu0 %468
      %470 = vrot.lane.b32.xlu0 %v293, 8
      %v471 = vpop.permute.xlu0 %470
      %472 = vrot.lane.b32.xlu0 %v294, 8
      %v473 = vpop.permute.xlu0 %472
      %474 = vrot.lane.b32.xlu0 %v295, 8
      %v475 = vpop.permute.xlu0 %474
      %476 = vrot.lane.b32.xlu0 %v296, 8
      %v477 = vpop.permute.xlu0 %476
      %478 = vrot.lane.b32.xlu0 %v297, 8
      %v479 = vpop.permute.xlu0 %478
      %480 = vrot.lane.b32.xlu0 %v298, 8
      %v481 = vpop.permute.xlu0 %480
      %482 = vrot.lane.b32.xlu0 %v299, 8
      %v483 = vpop.permute.xlu0 %482
      %484 = vrot.lane.b32.xlu0 %v300, 8
      %v485 = vpop.permute.xlu0 %484
      %486 = vrot.lane.b32.xlu0 %v301, 8
      %v487 = vpop.permute.xlu0 %486
      %488 = vrot.lane.b32.xlu0 %v302, 8
      %v489 = vpop.permute.xlu0 %488
      %490 = vrot.lane.b32.xlu0 %v303, 8
      %v491 = vpop.permute.xlu0 %490
      %492 = vrot.lane.b32.xlu0 %v304, 8
      %v493 = vpop.permute.xlu0 %492
      %494 = vrot.lane.b32.xlu0 %v305, 8
      %v495 = vpop.permute.xlu0 %494
      %496 = vrot.lane.b32.xlu0 %v306, 8
      %v497 = vpop.permute.xlu0 %496
      %498 = vrot.lane.b32.xlu0 %v307, 8
      %v499 = vpop.permute.xlu0 %498
      %500 = vrot.lane.b32.xlu0 %v308, 8
      %v501 = vpop.permute.xlu0 %500
      %502 = vrot.lane.b32.xlu0 %v309, 8
      %v503 = vpop.permute.xlu0 %502
      %504 = vrot.lane.b32.xlu0 %v310, 8
      %v505 = vpop.permute.xlu0 %504
      %506 = vrot.lane.b32.xlu0 0.0, 8
      %v507 = vpop.permute.xlu0 %506
      %vm539 = vcmask 31744
      %v540 = vsel %vm539, 0.0, %v350
      %v541 = vsel %vm539, 0.0, %v352
      %v542 = vsel %vm539, %v279, %v354
      %v543 = vsel %vm539, %v280, %v356
      %v544 = vsel %vm539, %v281, %v358
      %v545 = vsel %vm539, %v282, %v360
      %v546 = vsel %vm539, %v283, %v362
      %v547 = vsel %vm539, %v284, %v364
      %v548 = vsel %vm539, %v285, %v366
      %v549 = vsel %vm539, %v286, %v368
      %v550 = vsel %vm539, %v287, %v370
      %v551 = vsel %vm539, %v288, %v372
      %v552 = vsel %vm539, %v289, %v374
      %v553 = vsel %vm539, %v290, %v376
      %v554 = vsel %vm539, %v291, %v378
      %v555 = vsel %vm539, %v292, %v380
      %v556 = vsel %vm539, %v293, %v382
      %v557 = vsel %vm539, %v294, %v384
      %v558 = vsel %vm539, %v295, %v386
      %v559 = vsel %vm539, %v296, %v388
      %v560 = vsel %vm539, %v297, %v390
      %v561 = vsel %vm539, %v298, %v392
      %v562 = vsel %vm539, %v299, %v394
      %v563 = vsel %vm539, %v300, %v396
      %v564 = vsel %vm539, %v301, %v398
      %v565 = vsel %vm539, %v302, %v400
      %v566 = vsel %vm539, %v303, %v402
      %v567 = vsel %vm539, %v304, %v404
      %v568 = vsel %vm539, %v305, %v406
      %v569 = vsel %vm539, %v306, %v408
      %v570 = vsel %vm539, %v307, %v410
      %v571 = vsel %vm539, %v308, %v412
      %vm572 = vcmask 64512
      %v573 = vsel %vm572, %v540, %v447
      %v574 = vsel %vm572, %v541, %v449
      %v575 = vsel %vm572, %v542, %v451
      %v576 = vsel %vm572, %v543, %v453
      %v577 = vsel %vm572, %v544, %v455
      %v578 = vsel %vm572, %v545, %v457
      %v579 = vsel %vm572, %v546, %v459
      %v580 = vsel %vm572, %v547, %v461
      %v581 = vsel %vm572, %v548, %v463
      %v582 = vsel %vm572, %v549, %v465
      %v583 = vsel %vm572, %v550, %v467
      %v584 = vsel %vm572, %v551, %v469
      %v585 = vsel %vm572, %v552, %v471
      %v586 = vsel %vm572, %v553, %v473
      %v587 = vsel %vm572, %v554, %v475
      %v588 = vsel %vm572, %v555, %v477
      %v589 = vsel %vm572, %v556, %v479
      %v590 = vsel %vm572, %v557, %v481
      %v591 = vsel %vm572, %v558, %v483
      %v592 = vsel %vm572, %v559, %v485
      %v593 = vsel %vm572, %v560, %v487
      %v594 = vsel %vm572, %v561, %v489
      %v595 = vsel %vm572, %v562, %v491
      %v596 = vsel %vm572, %v563, %v493
      %v597 = vsel %vm572, %v564, %v495
      %v598 = vsel %vm572, %v565, %v497
      %v599 = vsel %vm572, %v566, %v499
      %v600 = vsel %vm572, %v567, %v501
      %v601 = vsel %vm572, %v568, %v503
      %v602 = vsel %vm572, %v569, %v505
      %v603 = vsel %vm572, %v570, %v507
      %v604 = vsel %vm572, %v571, %v507
      %vm637 = vcmask 1040384
      %v638 = vrot.slane %v573, 7
      %v639 = vrot.slane %v574, 7
      %v640 = vsel %vm637, %v638, %v639
      %v641 = vrot.slane %v575, 7
      %v642 = vrot.slane %v576, 7
      %v643 = vsel %vm637, %v641, %v642
      %v644 = vrot.slane %v577, 7
      %v645 = vrot.slane %v578, 7
      %v646 = vsel %vm637, %v644, %v645
      %v647 = vrot.slane %v579, 7
      %v648 = vrot.slane %v580, 7
      %v649 = vsel %vm637, %v647, %v648
      %v650 = vrot.slane %v581, 7
      %v651 = vrot.slane %v582, 7
      %v652 = vsel %vm637, %v650, %v651
      %v653 = vrot.slane %v583, 7
      %v654 = vrot.slane %v584, 7
      %v655 = vsel %vm637, %v653, %v654
      %v656 = vrot.slane %v585, 7
      %v657 = vrot.slane %v586, 7
      %v658 = vsel %vm637, %v656, %v657
      %v659 = vrot.slane %v587, 7
      %v660 = vrot.slane %v588, 7
      %v661 = vsel %vm637, %v659, %v660
      %v662 = vrot.slane %v589, 7
      %v663 = vrot.slane %v590, 7
      %v664 = vsel %vm637, %v662, %v663
      %v665 = vrot.slane %v591, 7
      %v666 = vrot.slane %v592, 7
      %v667 = vsel %vm637, %v665, %v666
      %v668 = vrot.slane %v593, 7
      %v669 = vrot.slane %v594, 7
      %v670 = vsel %vm637, %v668, %v669
      %v671 = vrot.slane %v595, 7
      %v672 = vrot.slane %v596, 7
      %v673 = vsel %vm637, %v671, %v672
      %v674 = vrot.slane %v597, 7
      %v675 = vrot.slane %v598, 7
      %v676 = vsel %vm637, %v674, %v675
      %v677 = vrot.slane %v599, 7
      %v678 = vrot.slane %v600, 7
      %v679 = vsel %vm637, %v677, %v678
      %v680 = vrot.slane %v601, 7
      %v681 = vrot.slane %v602, 7
      %v682 = vsel %vm637, %v680, %v681
      %v683 = vrot.slane %v603, 7
      %v684 = vrot.slane %v604, 7
      %v685 = vsel %vm637, %v683, %v684
      %v702 = vsel %vm637, 0.0, %v638
      %v703 = vsel %vm637, 0.0, %v641
      %v704 = vsel %vm637, 0.0, %v644
      %v705 = vsel %vm637, 0.0, %v647
      %v706 = vsel %vm637, 0.0, %v650
      %v707 = vsel %vm637, 0.0, %v653
      %v708 = vsel %vm637, 0.0, %v656
      %v709 = vsel %vm637, 0.0, %v659
      %v710 = vsel %vm637, 0.0, %v662
      %v711 = vsel %vm637, 0.0, %v665
      %v712 = vsel %vm637, 0.0, %v668
      %v713 = vsel %vm637, 0.0, %v671
      %v714 = vsel %vm637, 0.0, %v674
      %v715 = vsel %vm637, 0.0, %v677
      %v716 = vsel %vm637, 0.0, %v680
      %v717 = vsel %vm637, 0.0, %v683
      %vm718 = vcmask 97280
      %v720 = vsel %vm718, %v702, 0
      %v722 = vsel %vm718, %v640, 0
      %v725 = vsel %vm718, %v703, 0
      %v727 = vsel %vm718, %v643, 0
      %v730 = vsel %vm718, %v704, 0
      %v732 = vsel %vm718, %v646, 0
      %v735 = vsel %vm718, %v705, 0
      %v737 = vsel %vm718, %v649, 0
      %v740 = vsel %vm718, %v706, 0
      %v742 = vsel %vm718, %v652, 0
      %v745 = vsel %vm718, %v707, 0
      %v747 = vsel %vm718, %v655, 0
      %v750 = vsel %vm718, %v708, 0
      %v752 = vsel %vm718, %v658, 0
      %v755 = vsel %vm718, %v709, 0
      %v757 = vsel %vm718, %v661, 0
      %v760 = vsel %vm718, %v710, 0
      %v762 = vsel %vm718, %v664, 0
      %v765 = vsel %vm718, %v711, 0
      %v767 = vsel %vm718, %v667, 0
      %v770 = vsel %vm718, %v712, 0
      %v772 = vsel %vm718, %v670, 0
      %v775 = vsel %vm718, %v713, 0
      %v777 = vsel %vm718, %v673, 0
      %v780 = vsel %vm718, %v714, 0
      %v782 = vsel %vm718, %v676, 0
      %v785 = vsel %vm718, %v715, 0
      %v787 = vsel %vm718, %v679, 0
      %v790 = vsel %vm718, %v716, 0
      %v792 = vsel %vm718, %v682, 0
      %v795 = vsel %vm718, %v717, 0
      %v797 = vsel %vm718, %v685, 0
      %vm799 = vcmask 1043456
      %v801 = vsel %vm799, %v312, 0
      %803 = vmatpush.msra.mxu0 0.0
      %804 = vmatpush.msra.mxu0 0.0
      %805 = vmatpush.msra.mxu0 0.0
      %806 = vmatpush.msra.mxu0 0.0
      %807 = vmatpush.msra.mxu0 0.0
      %808 = vmatpush.msra.mxu0 0.0
      %809 = vmatpush.msra.mxu0 0.0
      %810 = vmatpush.msra.mxu0 0.0
      %811 = vmatpush.msra.mxu0 0.0
      %812 = vmatpush.msra.mxu0 0.0
      %813 = vmatpush.msra.mxu0 0.0
      %814 = vmatpush.msra.mxu0 0.0
      %815 = vmatpush.msra.mxu0 0.0
      %816 = vmatpush.msra.mxu0 0.0
      %817 = vmatpush.msra.mxu0 %v801
      %818 = vmatpush.msra.mxu0 %v311
      %819 = vmatmul.f32.gmra.mxu0 %v720
      %v820 = vpop.f32.mrf.mxu0
      %v821 = vadd.f32 0.0, %v820
      %822 = vmatmul.f32.gmra.mxu0 %v722
      %v823 = vpop.f32.mrf.mxu0
      %v824 = vadd.f32 0.0, %v823
      %825 = vmatmul.f32.gmra.mxu0 %v725
      %v826 = vpop.f32.mrf.mxu0
      %v827 = vadd.f32 0.0, %v826
      %828 = vmatmul.f32.gmra.mxu0 %v727
      %v829 = vpop.f32.mrf.mxu0
      %v830 = vadd.f32 0.0, %v829
      %831 = vmatmul.f32.gmra.mxu0 %v730
      %v832 = vpop.f32.mrf.mxu0
      %v833 = vadd.f32 0.0, %v832
      %834 = vmatmul.f32.gmra.mxu0 %v732
      %v835 = vpop.f32.mrf.mxu0
      %v836 = vadd.f32 0.0, %v835
      %837 = vmatmul.f32.gmra.mxu0 %v735
      %v838 = vpop.f32.mrf.mxu0
      %v839 = vadd.f32 0.0, %v838
      %840 = vmatmul.f32.gmra.mxu0 %v737
      %v841 = vpop.f32.mrf.mxu0
      %v842 = vadd.f32 0.0, %v841
      %843 = vmatmul.f32.gmra.mxu0 %v740
      %v844 = vpop.f32.mrf.mxu0
      %v845 = vadd.f32 0.0, %v844
      %846 = vmatmul.f32.gmra.mxu0 %v742
      %v847 = vpop.f32.mrf.mxu0
      %v848 = vadd.f32 0.0, %v847
      %849 = vmatmul.f32.gmra.mxu0 %v745
      %v850 = vpop.f32.mrf.mxu0
      %v851 = vadd.f32 0.0, %v850
      %852 = vmatmul.f32.gmra.mxu0 %v747
      %v853 = vpop.f32.mrf.mxu0
      %v854 = vadd.f32 0.0, %v853
      %855 = vmatmul.f32.gmra.mxu0 %v750
      %v856 = vpop.f32.mrf.mxu0
      %v857 = vadd.f32 0.0, %v856
      %858 = vmatmul.f32.gmra.mxu0 %v752
      %v859 = vpop.f32.mrf.mxu0
      %v860 = vadd.f32 0.0, %v859
      %861 = vmatmul.f32.gmra.mxu0 %v755
      %v862 = vpop.f32.mrf.mxu0
      %v863 = vadd.f32 0.0, %v862
      %864 = vmatmul.f32.gmra.mxu0 %v757
      %v865 = vpop.f32.mrf.mxu0
      %v866 = vadd.f32 0.0, %v865
      %867 = vmatmul.f32.gmra.mxu0 %v760
      %v868 = vpop.f32.mrf.mxu0
      %v869 = vadd.f32 0.0, %v868
      %870 = vmatmul.f32.gmra.mxu0 %v762
      %v871 = vpop.f32.mrf.mxu0
      %v872 = vadd.f32 0.0, %v871
      %873 = vmatmul.f32.gmra.mxu0 %v765
      %v874 = vpop.f32.mrf.mxu0
      %v875 = vadd.f32 0.0, %v874
      %876 = vmatmul.f32.gmra.mxu0 %v767
      %v877 = vpop.f32.mrf.mxu0
      %v878 = vadd.f32 0.0, %v877
      %879 = vmatmul.f32.gmra.mxu0 %v770
      %v880 = vpop.f32.mrf.mxu0
      %v881 = vadd.f32 0.0, %v880
      %882 = vmatmul.f32.gmra.mxu0 %v772
      %v883 = vpop.f32.mrf.mxu0
      %v884 = vadd.f32 0.0, %v883
      %885 = vmatmul.f32.gmra.mxu0 %v775
      %v886 = vpop.f32.mrf.mxu0
      %v887 = vadd.f32 0.0, %v886
      %888 = vmatmul.f32.gmra.mxu0 %v777
      %v889 = vpop.f32.mrf.mxu0
      %v890 = vadd.f32 0.0, %v889
      %891 = vmatmul.f32.gmra.mxu0 %v780
      %v892 = vpop.f32.mrf.mxu0
      %v893 = vadd.f32 0.0, %v892
      %894 = vmatmul.f32.gmra.mxu0 %v782
      %v895 = vpop.f32.mrf.mxu0
      %v896 = vadd.f32 0.0, %v895
      %897 = vmatmul.f32.gmra.mxu0 %v785
      %v898 = vpop.f32.mrf.mxu0
      %v899 = vadd.f32 0.0, %v898
      %900 = vmatmul.f32.gmra.mxu0 %v787
      %v901 = vpop.f32.mrf.mxu0
      %v902 = vadd.f32 0.0, %v901
      %903 = vmatmul.f32.gmra.mxu0 %v790
      %v904 = vpop.f32.mrf.mxu0
      %v905 = vadd.f32 0.0, %v904
      %906 = vmatmul.f32.gmra.mxu0 %v792
      %v907 = vpop.f32.mrf.mxu0
      %v908 = vadd.f32 0.0, %v907
      %909 = vmatmul.f32.gmra.mxu0 %v795
      %v910 = vpop.f32.mrf.mxu0
      %v911 = vadd.f32 0.0, %v910
      %912 = vmatmul.f32.gmra.mxu0 %v797
      %v913 = vpop.f32.mrf.mxu0
      %v914 = vadd.f32 0.0, %v913
      %915 = vdwg.mxu0
      %v916 = vsel %vm718, %v573, 0
      %v918 = vsel %vm718, %v574, 0
      %v920 = vsel %vm718, %v575, 0
      %v922 = vsel %vm718, %v576, 0
      %v924 = vsel %vm718, %v577, 0
      %v926 = vsel %vm718, %v578, 0
      %v928 = vsel %vm718, %v579, 0
      %v930 = vsel %vm718, %v580, 0
      %v932 = vsel %vm718, %v581, 0
      %v934 = vsel %vm718, %v582, 0
      %v936 = vsel %vm718, %v583, 0
      %v938 = vsel %vm718, %v584, 0
      %v940 = vsel %vm718, %v585, 0
      %v942 = vsel %vm718, %v586, 0
      %v944 = vsel %vm718, %v587, 0
      %v946 = vsel %vm718, %v588, 0
      %v948 = vsel %vm718, %v589, 0
      %v950 = vsel %vm718, %v590, 0
      %v952 = vsel %vm718, %v591, 0
      %v954 = vsel %vm718, %v592, 0
      %v956 = vsel %vm718, %v593, 0
      %v958 = vsel %vm718, %v594, 0
      %v960 = vsel %vm718, %v595, 0
      %v962 = vsel %vm718, %v596, 0
      %v964 = vsel %vm718, %v597, 0
      %v966 = vsel %vm718, %v598, 0
      %v968 = vsel %vm718, %v599, 0
      %v970 = vsel %vm718, %v600, 0
      %v972 = vsel %vm718, %v601, 0
      %v974 = vsel %vm718, %v602, 0
      %v976 = vsel %vm718, %v603, 0
      %v978 = vsel %vm718, %v604, 0
      %v981 = vsel %vm799, %v314, 0
      %983 = vmatpush.msra.mxu0 0.0
      %984 = vmatpush.msra.mxu0 0.0
      %985 = vmatpush.msra.mxu0 0.0
      %986 = vmatpush.msra.mxu0 0.0
      %987 = vmatpush.msra.mxu0 0.0
      %988 = vmatpush.msra.mxu0 0.0
      %989 = vmatpush.msra.mxu0 0.0
      %990 = vmatpush.msra.mxu0 0.0
      %991 = vmatpush.msra.mxu0 0.0
      %992 = vmatpush.msra.mxu0 0.0
      %993 = vmatpush.msra.mxu0 0.0
      %994 = vmatpush.msra.mxu0 0.0
      %995 = vmatpush.msra.mxu0 0.0
      %996 = vmatpush.msra.mxu0 0.0
      %997 = vmatpush.msra.mxu0 %v981
      %998 = vmatpush.msra.mxu0 %v313
      %999 = vmatmul.f32.gmra.mxu0 %v916
      %v1000 = vpop.f32.mrf.mxu0
      %v1001 = vadd.f32 %v821, %v1000
      %1002 = vmatmul.f32.gmra.mxu0 %v918
      %v1003 = vpop.f32.mrf.mxu0
      %v1004 = vadd.f32 %v824, %v1003
      %1005 = vmatmul.f32.gmra.mxu0 %v920
      %v1006 = vpop.f32.mrf.mxu0
      %v1007 = vadd.f32 %v827, %v1006
      %1008 = vmatmul.f32.gmra.mxu0 %v922
      %v1009 = vpop.f32.mrf.mxu0
      %v1010 = vadd.f32 %v830, %v1009
      %1011 = vmatmul.f32.gmra.mxu0 %v924
      %v1012 = vpop.f32.mrf.mxu0
      %v1013 = vadd.f32 %v833, %v1012
      %1014 = vmatmul.f32.gmra.mxu0 %v926
      %v1015 = vpop.f32.mrf.mxu0
      %v1016 = vadd.f32 %v836, %v1015
      %1017 = vmatmul.f32.gmra.mxu0 %v928
      %v1018 = vpop.f32.mrf.mxu0
      %v1019 = vadd.f32 %v839, %v1018
      %1020 = vmatmul.f32.gmra.mxu0 %v930
      %v1021 = vpop.f32.mrf.mxu0
      %v1022 = vadd.f32 %v842, %v1021
      %1023 = vmatmul.f32.gmra.mxu0 %v932
      %v1024 = vpop.f32.mrf.mxu0
      %v1025 = vadd.f32 %v845, %v1024
      %1026 = vmatmul.f32.gmra.mxu0 %v934
      %v1027 = vpop.f32.mrf.mxu0
      %v1028 = vadd.f32 %v848, %v1027
      %1029 = vmatmul.f32.gmra.mxu0 %v936
      %v1030 = vpop.f32.mrf.mxu0
      %v1031 = vadd.f32 %v851, %v1030
      %1032 = vmatmul.f32.gmra.mxu0 %v938
      %v1033 = vpop.f32.mrf.mxu0
      %v1034 = vadd.f32 %v854, %v1033
      %1035 = vmatmul.f32.gmra.mxu0 %v940
      %v1036 = vpop.f32.mrf.mxu0
      %v1037 = vadd.f32 %v857, %v1036
      %1038 = vmatmul.f32.gmra.mxu0 %v942
      %v1039 = vpop.f32.mrf.mxu0
      %v1040 = vadd.f32 %v860, %v1039
      %1041 = vmatmul.f32.gmra.mxu0 %v944
      %v1042 = vpop.f32.mrf.mxu0
      %v1043 = vadd.f32 %v863, %v1042
      %1044 = vmatmul.f32.gmra.mxu0 %v946
      %v1045 = vpop.f32.mrf.mxu0
      %v1046 = vadd.f32 %v866, %v1045
      %1047 = vmatmul.f32.gmra.mxu0 %v948
      %v1048 = vpop.f32.mrf.mxu0
      %v1049 = vadd.f32 %v869, %v1048
      %1050 = vmatmul.f32.gmra.mxu0 %v950
      %v1051 = vpop.f32.mrf.mxu0
      %v1052 = vadd.f32 %v872, %v1051
      %1053 = vmatmul.f32.gmra.mxu0 %v952
      %v1054 = vpop.f32.mrf.mxu0
      %v1055 = vadd.f32 %v875, %v1054
      %1056 = vmatmul.f32.gmra.mxu0 %v954
      %v1057 = vpop.f32.mrf.mxu0
      %v1058 = vadd.f32 %v878, %v1057
      %1059 = vmatmul.f32.gmra.mxu0 %v956
      %v1060 = vpop.f32.mrf.mxu0
      %v1061 = vadd.f32 %v881, %v1060
      %1062 = vmatmul.f32.gmra.mxu0 %v958
      %v1063 = vpop.f32.mrf.mxu0
      %v1064 = vadd.f32 %v884, %v1063
      %1065 = vmatmul.f32.gmra.mxu0 %v960
      %v1066 = vpop.f32.mrf.mxu0
      %v1067 = vadd.f32 %v887, %v1066
      %1068 = vmatmul.f32.gmra.mxu0 %v962
      %v1069 = vpop.f32.mrf.mxu0
      %v1070 = vadd.f32 %v890, %v1069
      %1071 = vmatmul.f32.gmra.mxu0 %v964
      %v1072 = vpop.f32.mrf.mxu0
      %v1073 = vadd.f32 %v893, %v1072
      %1074 = vmatmul.f32.gmra.mxu0 %v966
      %v1075 = vpop.f32.mrf.mxu0
      %v1076 = vadd.f32 %v896, %v1075
      %1077 = vmatmul.f32.gmra.mxu0 %v968
      %v1078 = vpop.f32.mrf.mxu0
      %v1079 = vadd.f32 %v899, %v1078
      %1080 = vmatmul.f32.gmra.mxu0 %v970
      %v1081 = vpop.f32.mrf.mxu0
      %v1082 = vadd.f32 %v902, %v1081
      %1083 = vmatmul.f32.gmra.mxu0 %v972
      %v1084 = vpop.f32.mrf.mxu0
      %v1085 = vadd.f32 %v905, %v1084
      %1086 = vmatmul.f32.gmra.mxu0 %v974
      %v1087 = vpop.f32.mrf.mxu0
      %v1088 = vadd.f32 %v908, %v1087
      %1089 = vmatmul.f32.gmra.mxu0 %v976
      %v1090 = vpop.f32.mrf.mxu0
      %v1091 = vadd.f32 %v911, %v1090
      %1092 = vmatmul.f32.gmra.mxu0 %v978
      %v1093 = vpop.f32.mrf.mxu0
      %v1094 = vadd.f32 %v914, %v1093
      %1095 = vdwg.mxu0
      %vm1096 = vcmask 1046528
      %v1097 = vrot.slane %v573, 1
      %v1098 = vrot.slane %v574, 1
      %v1099 = vsel %vm1096, %v1097, %v1098
      %v1100 = vrot.slane %v575, 1
      %v1101 = vrot.slane %v576, 1
      %v1102 = vsel %vm1096, %v1100, %v1101
      %v1103 = vrot.slane %v577, 1
      %v1104 = vrot.slane %v578, 1
      %v1105 = vsel %vm1096, %v1103, %v1104
      %v1106 = vrot.slane %v579, 1
      %v1107 = vrot.slane %v580, 1
      %v1108 = vsel %vm1096, %v1106, %v1107
      %v1109 = vrot.slane %v581, 1
      %v1110 = vrot.slane %v582, 1
      %v1111 = vsel %vm1096, %v1109, %v1110
      %v1112 = vrot.slane %v583, 1
      %v1113 = vrot.slane %v584, 1
      %v1114 = vsel %vm1096, %v1112, %v1113
      %v1115 = vrot.slane %v585, 1
      %v1116 = vrot.slane %v586, 1
      %v1117 = vsel %vm1096, %v1115, %v1116
      %v1118 = vrot.slane %v587, 1
      %v1119 = vrot.slane %v588, 1
      %v1120 = vsel %vm1096, %v1118, %v1119
      %v1121 = vrot.slane %v589, 1
      %v1122 = vrot.slane %v590, 1
      %v1123 = vsel %vm1096, %v1121, %v1122
      %v1124 = vrot.slane %v591, 1
      %v1125 = vrot.slane %v592, 1
      %v1126 = vsel %vm1096, %v1124, %v1125
      %v1127 = vrot.slane %v593, 1
      %v1128 = vrot.slane %v594, 1
      %v1129 = vsel %vm1096, %v1127, %v1128
      %v1130 = vrot.slane %v595, 1
      %v1131 = vrot.slane %v596, 1
      %v1132 = vsel %vm1096, %v1130, %v1131
      %v1133 = vrot.slane %v597, 1
      %v1134 = vrot.slane %v598, 1
      %v1135 = vsel %vm1096, %v1133, %v1134
      %v1136 = vrot.slane %v599, 1
      %v1137 = vrot.slane %v600, 1
      %v1138 = vsel %vm1096, %v1136, %v1137
      %v1139 = vrot.slane %v601, 1
      %v1140 = vrot.slane %v602, 1
      %v1141 = vsel %vm1096, %v1139, %v1140
      %v1142 = vrot.slane %v603, 1
      %v1143 = vrot.slane %v604, 1
      %v1144 = vsel %vm1096, %v1142, %v1143
      %v1161 = vsel %vm1096, %v1098, 0.0
      %v1162 = vsel %vm1096, %v1101, 0.0
      %v1163 = vsel %vm1096, %v1104, 0.0
      %v1164 = vsel %vm1096, %v1107, 0.0
      %v1165 = vsel %vm1096, %v1110, 0.0
      %v1166 = vsel %vm1096, %v1113, 0.0
      %v1167 = vsel %vm1096, %v1116, 0.0
      %v1168 = vsel %vm1096, %v1119, 0.0
      %v1169 = vsel %vm1096, %v1122, 0.0
      %v1170 = vsel %vm1096, %v1125, 0.0
      %v1171 = vsel %vm1096, %v1128, 0.0
      %v1172 = vsel %vm1096, %v1131, 0.0
      %v1173 = vsel %vm1096, %v1134, 0.0
      %v1174 = vsel %vm1096, %v1137, 0.0
      %v1175 = vsel %vm1096, %v1140, 0.0
      %v1176 = vsel %vm1096, %v1143, 0.0
      %v1177 = vsel %vm718, %v1099, 0
      %v1180 = vsel %vm718, %v1161, 0
      %v1182 = vsel %vm718, %v1102, 0
      %v1185 = vsel %vm718, %v1162, 0
      %v1187 = vsel %vm718, %v1105, 0
      %v1190 = vsel %vm718, %v1163, 0
      %v1192 = vsel %vm718, %v1108, 0
      %v1195 = vsel %vm718, %v1164, 0
      %v1197 = vsel %vm718, %v1111, 0
      %v1200 = vsel %vm718, %v1165, 0
      %v1202 = vsel %vm718, %v1114, 0
      %v1205 = vsel %vm718, %v1166, 0
      %v1207 = vsel %vm718, %v1117, 0
      %v1210 = vsel %vm718, %v1167, 0
      %v1212 = vsel %vm718, %v1120, 0
      %v1215 = vsel %vm718, %v1168, 0
      %v1217 = vsel %vm718, %v1123, 0
      %v1220 = vsel %vm718, %v1169, 0
      %v1222 = vsel %vm718, %v1126, 0
      %v1225 = vsel %vm718, %v1170, 0
      %v1227 = vsel %vm718, %v1129, 0
      %v1230 = vsel %vm718, %v1171, 0
      %v1232 = vsel %vm718, %v1132, 0
      %v1235 = vsel %vm718, %v1172, 0
      %v1237 = vsel %vm718, %v1135, 0
      %v1240 = vsel %vm718, %v1173, 0
      %v1242 = vsel %vm718, %v1138, 0
      %v1245 = vsel %vm718, %v1174, 0
      %v1247 = vsel %vm718, %v1141, 0
      %v1250 = vsel %vm718, %v1175, 0
      %v1252 = vsel %vm718, %v1144, 0
      %v1255 = vsel %vm718, %v1176, 0
      %v1258 = vsel %vm799, %v316, 0
      %1260 = vmatpush.msra.mxu0 0.0
      %1261 = vmatpush.msra.mxu0 0.0
      %1262 = vmatpush.msra.mxu0 0.0
      %1263 = vmatpush.msra.mxu0 0.0
      %1264 = vmatpush.msra.mxu0 0.0
      %1265 = vmatpush.msra.mxu0 0.0
      %1266 = vmatpush.msra.mxu0 0.0
      %1267 = vmatpush.msra.mxu0 0.0
      %1268 = vmatpush.msra.mxu0 0.0
      %1269 = vmatpush.msra.mxu0 0.0
      %1270 = vmatpush.msra.mxu0 0.0
      %1271 = vmatpush.msra.mxu0 0.0
      %1272 = vmatpush.msra.mxu0 0.0
      %1273 = vmatpush.msra.mxu0 0.0
      %1274 = vmatpush.msra.mxu0 %v1258
      %1275 = vmatpush.msra.mxu0 %v315
      %1276 = vmatmul.f32.gmra.mxu0 %v1177
      %v1277 = vpop.f32.mrf.mxu0
      %v1278 = vadd.f32 0.0, %v1277
      %1279 = vmatmul.f32.gmra.mxu0 %v1180
      %v1280 = vpop.f32.mrf.mxu0
      %v1281 = vadd.f32 0.0, %v1280
      %1282 = vmatmul.f32.gmra.mxu0 %v1182
      %v1283 = vpop.f32.mrf.mxu0
      %v1284 = vadd.f32 0.0, %v1283
      %1285 = vmatmul.f32.gmra.mxu0 %v1185
      %v1286 = vpop.f32.mrf.mxu0
      %v1287 = vadd.f32 0.0, %v1286
      %1288 = vmatmul.f32.gmra.mxu0 %v1187
      %v1289 = vpop.f32.mrf.mxu0
      %v1290 = vadd.f32 0.0, %v1289
      %1291 = vmatmul.f32.gmra.mxu0 %v1190
      %v1292 = vpop.f32.mrf.mxu0
      %v1293 = vadd.f32 0.0, %v1292
      %1294 = vmatmul.f32.gmra.mxu0 %v1192
      %v1295 = vpop.f32.mrf.mxu0
      %v1296 = vadd.f32 0.0, %v1295
      %1297 = vmatmul.f32.gmra.mxu0 %v1195
      %v1298 = vpop.f32.mrf.mxu0
      %v1299 = vadd.f32 0.0, %v1298
      %1300 = vmatmul.f32.gmra.mxu0 %v1197
      %v1301 = vpop.f32.mrf.mxu0
      %v1302 = vadd.f32 0.0, %v1301
      %1303 = vmatmul.f32.gmra.mxu0 %v1200
      %v1304 = vpop.f32.mrf.mxu0
      %v1305 = vadd.f32 0.0, %v1304
      %1306 = vmatmul.f32.gmra.mxu0 %v1202
      %v1307 = vpop.f32.mrf.mxu0
      %v1308 = vadd.f32 0.0, %v1307
      %1309 = vmatmul.f32.gmra.mxu0 %v1205
      %v1310 = vpop.f32.mrf.mxu0
      %v1311 = vadd.f32 0.0, %v1310
      %1312 = vmatmul.f32.gmra.mxu0 %v1207
      %v1313 = vpop.f32.mrf.mxu0
      %v1314 = vadd.f32 0.0, %v1313
      %1315 = vmatmul.f32.gmra.mxu0 %v1210
      %v1316 = vpop.f32.mrf.mxu0
      %v1317 = vadd.f32 0.0, %v1316
      %1318 = vmatmul.f32.gmra.mxu0 %v1212
      %v1319 = vpop.f32.mrf.mxu0
      %v1320 = vadd.f32 0.0, %v1319
      %1321 = vmatmul.f32.gmra.mxu0 %v1215
      %v1322 = vpop.f32.mrf.mxu0
      %v1323 = vadd.f32 0.0, %v1322
      %1324 = vmatmul.f32.gmra.mxu0 %v1217
      %v1325 = vpop.f32.mrf.mxu0
      %v1326 = vadd.f32 0.0, %v1325
      %1327 = vmatmul.f32.gmra.mxu0 %v1220
      %v1328 = vpop.f32.mrf.mxu0
      %v1329 = vadd.f32 0.0, %v1328
      %1330 = vmatmul.f32.gmra.mxu0 %v1222
      %v1331 = vpop.f32.mrf.mxu0
      %v1332 = vadd.f32 0.0, %v1331
      %1333 = vmatmul.f32.gmra.mxu0 %v1225
      %v1334 = vpop.f32.mrf.mxu0
      %v1335 = vadd.f32 0.0, %v1334
      %1336 = vmatmul.f32.gmra.mxu0 %v1227
      %v1337 = vpop.f32.mrf.mxu0
      %v1338 = vadd.f32 0.0, %v1337
      %1339 = vmatmul.f32.gmra.mxu0 %v1230
      %v1340 = vpop.f32.mrf.mxu0
      %v1341 = vadd.f32 0.0, %v1340
      %1342 = vmatmul.f32.gmra.mxu0 %v1232
      %v1343 = vpop.f32.mrf.mxu0
      %v1344 = vadd.f32 0.0, %v1343
      %1345 = vmatmul.f32.gmra.mxu0 %v1235
      %v1346 = vpop.f32.mrf.mxu0
      %v1347 = vadd.f32 0.0, %v1346
      %1348 = vmatmul.f32.gmra.mxu0 %v1237
      %v1349 = vpop.f32.mrf.mxu0
      %v1350 = vadd.f32 0.0, %v1349
      %1351 = vmatmul.f32.gmra.mxu0 %v1240
      %v1352 = vpop.f32.mrf.mxu0
      %v1353 = vadd.f32 0.0, %v1352
      %1354 = vmatmul.f32.gmra.mxu0 %v1242
      %v1355 = vpop.f32.mrf.mxu0
      %v1356 = vadd.f32 0.0, %v1355
      %1357 = vmatmul.f32.gmra.mxu0 %v1245
      %v1358 = vpop.f32.mrf.mxu0
      %v1359 = vadd.f32 0.0, %v1358
      %1360 = vmatmul.f32.gmra.mxu0 %v1247
      %v1361 = vpop.f32.mrf.mxu0
      %v1362 = vadd.f32 0.0, %v1361
      %1363 = vmatmul.f32.gmra.mxu0 %v1250
      %v1364 = vpop.f32.mrf.mxu0
      %v1365 = vadd.f32 0.0, %v1364
      %1366 = vmatmul.f32.gmra.mxu0 %v1252
      %v1367 = vpop.f32.mrf.mxu0
      %v1368 = vadd.f32 0.0, %v1367
      %1369 = vmatmul.f32.gmra.mxu0 %v1255
      %v1370 = vpop.f32.mrf.mxu0
      %v1371 = vadd.f32 0.0, %v1370
      %1372 = vdwg.mxu0
      %v1373 = vadd.f32 %v1001, %v1278
      %v1374 = vadd.f32 %v1004, %v1281
      %v1375 = vadd.f32 %v1007, %v1284
      %v1376 = vadd.f32 %v1010, %v1287
      %v1377 = vadd.f32 %v1013, %v1290
      %v1378 = vadd.f32 %v1016, %v1293
      %v1379 = vadd.f32 %v1019, %v1296
      %v1380 = vadd.f32 %v1022, %v1299
      %v1381 = vadd.f32 %v1025, %v1302
      %v1382 = vadd.f32 %v1028, %v1305
      %v1383 = vadd.f32 %v1031, %v1308
      %v1384 = vadd.f32 %v1034, %v1311
      %v1385 = vadd.f32 %v1037, %v1314
      %v1386 = vadd.f32 %v1040, %v1317
      %v1387 = vadd.f32 %v1043, %v1320
      %v1388 = vadd.f32 %v1046, %v1323
      %v1389 = vadd.f32 %v1049, %v1326
      %v1390 = vadd.f32 %v1052, %v1329
      %v1391 = vadd.f32 %v1055, %v1332
      %v1392 = vadd.f32 %v1058, %v1335
      %v1393 = vadd.f32 %v1061, %v1338
      %v1394 = vadd.f32 %v1064, %v1341
      %v1395 = vadd.f32 %v1067, %v1344
      %v1396 = vadd.f32 %v1070, %v1347
      %v1397 = vadd.f32 %v1073, %v1350
      %v1398 = vadd.f32 %v1076, %v1353
      %v1399 = vadd.f32 %v1079, %v1356
      %v1400 = vadd.f32 %v1082, %v1359
      %v1401 = vadd.f32 %v1085, %v1362
      %v1402 = vadd.f32 %v1088, %v1365
      %v1403 = vadd.f32 %v1091, %v1368
      %v1404 = vadd.f32 %v1094, %v1371
      %v1405 = vld [vmem:[%s2] sm:$0x1]
      %v1406 = vld [vmem:[%s3] sm:$0x1]
      %v1407 = vsel %vm539, %v1373, 0.0
      %v1408 = vsel %vm539, %v1374, 0.0
      %v1409 = vadd.f32 %v1407, %v1408
      %v1410 = vsel %vm539, %v1375, 0.0
      %v1411 = vadd.f32 %v1409, %v1410
      %v1412 = vsel %vm539, %v1376, 0.0
      %v1413 = vadd.f32 %v1411, %v1412
      %v1414 = vsel %vm539, %v1377, 0.0
      %v1415 = vadd.f32 %v1413, %v1414
      %v1416 = vsel %vm539, %v1378, 0.0
      %v1417 = vadd.f32 %v1415, %v1416
      %v1418 = vsel %vm539, %v1379, 0.0
      %v1419 = vadd.f32 %v1417, %v1418
      %v1420 = vsel %vm539, %v1380, 0.0
      %v1421 = vadd.f32 %v1419, %v1420
      %v1422 = vsel %vm539, %v1381, 0.0
      %v1423 = vadd.f32 %v1421, %v1422
      %v1424 = vsel %vm539, %v1382, 0.0
      %v1425 = vadd.f32 %v1423, %v1424
      %v1426 = vsel %vm539, %v1383, 0.0
      %v1427 = vadd.f32 %v1425, %v1426
      %v1428 = vsel %vm539, %v1384, 0.0
      %v1429 = vadd.f32 %v1427, %v1428
      %v1430 = vsel %vm539, %v1385, 0.0
      %v1431 = vadd.f32 %v1429, %v1430
      %v1432 = vsel %vm539, %v1386, 0.0
      %v1433 = vadd.f32 %v1431, %v1432
      %v1434 = vsel %vm539, %v1387, 0.0
      %v1435 = vadd.f32 %v1433, %v1434
      %v1436 = vsel %vm539, %v1388, 0.0
      %v1437 = vadd.f32 %v1435, %v1436
      %v1438 = vsel %vm539, %v1389, 0.0
      %v1439 = vadd.f32 %v1437, %v1438
      %v1440 = vsel %vm539, %v1390, 0.0
      %v1441 = vadd.f32 %v1439, %v1440
      %v1442 = vsel %vm539, %v1391, 0.0
      %v1443 = vadd.f32 %v1441, %v1442
      %v1444 = vsel %vm539, %v1392, 0.0
      %v1445 = vadd.f32 %v1443, %v1444
      %v1446 = vsel %vm539, %v1393, 0.0
      %v1447 = vadd.f32 %v1445, %v1446
      %v1448 = vsel %vm539, %v1394, 0.0
      %v1449 = vadd.f32 %v1447, %v1448
      %v1450 = vsel %vm539, %v1395, 0.0
      %v1451 = vadd.f32 %v1449, %v1450
      %v1452 = vsel %vm539, %v1396, 0.0
      %v1453 = vadd.f32 %v1451, %v1452
      %v1454 = vsel %vm539, %v1397, 0.0
      %v1455 = vadd.f32 %v1453, %v1454
      %v1456 = vsel %vm539, %v1398, 0.0
      %v1457 = vadd.f32 %v1455, %v1456
      %v1458 = vsel %vm539, %v1399, 0.0
      %v1459 = vadd.f32 %v1457, %v1458
      %v1460 = vsel %vm539, %v1400, 0.0
      %v1461 = vadd.f32 %v1459, %v1460
      %v1462 = vsel %vm539, %v1401, 0.0
      %v1463 = vadd.f32 %v1461, %v1462
      %v1464 = vsel %vm539, %v1402, 0.0
      %v1465 = vadd.f32 %v1463, %v1464
      %v1466 = vsel %vm539, %v1403, 0.0
      %v1467 = vadd.f32 %v1465, %v1466
      %v1468 = vsel %vm539, %v1404, 0.0
      %v1469 = vadd.f32 %v1467, %v1468
      %v1470 = vrot.slane %v1469, 4
      %v1471 = vadd.f32 %v1469, %v1470
      %v1472 = vrot.slane %v1471, 2
      %v1473 = vadd.f32 %v1471, %v1472
      %v1474 = vrot.slane %v1473, 1
      %v1475 = vadd.f32 %v1473, %v1474
      %v1476 = vmul.f32 %v1475, 0.00390625
      %v1477 = vmul.f32 %v1373, %v1373
      %v1478 = vmul.f32 %v1374, %v1374
      %v1479 = vmul.f32 %v1375, %v1375
      %v1480 = vmul.f32 %v1376, %v1376
      %v1481 = vmul.f32 %v1377, %v1377
      %v1482 = vmul.f32 %v1378, %v1378
      %v1483 = vmul.f32 %v1379, %v1379
      %v1484 = vmul.f32 %v1380, %v1380
      %v1485 = vmul.f32 %v1381, %v1381
      %v1486 = vmul.f32 %v1382, %v1382
      %v1487 = vmul.f32 %v1383, %v1383
      %v1488 = vmul.f32 %v1384, %v1384
      %v1489 = vmul.f32 %v1385, %v1385
      %v1490 = vmul.f32 %v1386, %v1386
      %v1491 = vmul.f32 %v1387, %v1387
      %v1492 = vmul.f32 %v1388, %v1388
      %v1493 = vmul.f32 %v1389, %v1389
      %v1494 = vmul.f32 %v1390, %v1390
      %v1495 = vmul.f32 %v1391, %v1391
      %v1496 = vmul.f32 %v1392, %v1392
      %v1497 = vmul.f32 %v1393, %v1393
      %v1498 = vmul.f32 %v1394, %v1394
      %v1499 = vmul.f32 %v1395, %v1395
      %v1500 = vmul.f32 %v1396, %v1396
      %v1501 = vmul.f32 %v1397, %v1397
      %v1502 = vmul.f32 %v1398, %v1398
      %v1503 = vmul.f32 %v1399, %v1399
      %v1504 = vmul.f32 %v1400, %v1400
      %v1505 = vmul.f32 %v1401, %v1401
      %v1506 = vmul.f32 %v1402, %v1402
      %v1507 = vmul.f32 %v1403, %v1403
      %v1508 = vmul.f32 %v1404, %v1404
      %v1509 = vsel %vm539, %v1477, 0.0
      %v1510 = vsel %vm539, %v1478, 0.0
      %v1511 = vadd.f32 %v1509, %v1510
      %v1512 = vsel %vm539, %v1479, 0.0
      %v1513 = vadd.f32 %v1511, %v1512
      %v1514 = vsel %vm539, %v1480, 0.0
      %v1515 = vadd.f32 %v1513, %v1514
      %v1516 = vsel %vm539, %v1481, 0.0
      %v1517 = vadd.f32 %v1515, %v1516
      %v1518 = vsel %vm539, %v1482, 0.0
      %v1519 = vadd.f32 %v1517, %v1518
      %v1520 = vsel %vm539, %v1483, 0.0
      %v1521 = vadd.f32 %v1519, %v1520
      %v1522 = vsel %vm539, %v1484, 0.0
      %v1523 = vadd.f32 %v1521, %v1522
      %v1524 = vsel %vm539, %v1485, 0.0
      %v1525 = vadd.f32 %v1523, %v1524
      %v1526 = vsel %vm539, %v1486, 0.0
      %v1527 = vadd.f32 %v1525, %v1526
      %v1528 = vsel %vm539, %v1487, 0.0
      %v1529 = vadd.f32 %v1527, %v1528
      %v1530 = vsel %vm539, %v1488, 0.0
      %v1531 = vadd.f32 %v1529, %v1530
      %v1532 = vsel %vm539, %v1489, 0.0
      %v1533 = vadd.f32 %v1531, %v1532
      %v1534 = vsel %vm539, %v1490, 0.0
      %v1535 = vadd.f32 %v1533, %v1534
      %v1536 = vsel %vm539, %v1491, 0.0
      %v1537 = vadd.f32 %v1535, %v1536
      %v1538 = vsel %vm539, %v1492, 0.0
      %v1539 = vadd.f32 %v1537, %v1538
      %v1540 = vsel %vm539, %v1493, 0.0
      %v1541 = vadd.f32 %v1539, %v1540
      %v1542 = vsel %vm539, %v1494, 0.0
      %v1543 = vadd.f32 %v1541, %v1542
      %v1544 = vsel %vm539, %v1495, 0.0
      %v1545 = vadd.f32 %v1543, %v1544
      %v1546 = vsel %vm539, %v1496, 0.0
      %v1547 = vadd.f32 %v1545, %v1546
      %v1548 = vsel %vm539, %v1497, 0.0
      %v1549 = vadd.f32 %v1547, %v1548
      %v1550 = vsel %vm539, %v1498, 0.0
      %v1551 = vadd.f32 %v1549, %v1550
      %v1552 = vsel %vm539, %v1499, 0.0
      %v1553 = vadd.f32 %v1551, %v1552
      %v1554 = vsel %vm539, %v1500, 0.0
      %v1555 = vadd.f32 %v1553, %v1554
      %v1556 = vsel %vm539, %v1501, 0.0
      %v1557 = vadd.f32 %v1555, %v1556
      %v1558 = vsel %vm539, %v1502, 0.0
      %v1559 = vadd.f32 %v1557, %v1558
      %v1560 = vsel %vm539, %v1503, 0.0
      %v1561 = vadd.f32 %v1559, %v1560
      %v1562 = vsel %vm539, %v1504, 0.0
      %v1563 = vadd.f32 %v1561, %v1562
      %v1564 = vsel %vm539, %v1505, 0.0
      %v1565 = vadd.f32 %v1563, %v1564
      %v1566 = vsel %vm539, %v1506, 0.0
      %v1567 = vadd.f32 %v1565, %v1566
      %v1568 = vsel %vm539, %v1507, 0.0
      %v1569 = vadd.f32 %v1567, %v1568
      %v1570 = vsel %vm539, %v1508, 0.0
      %v1571 = vadd.f32 %v1569, %v1570
      %v1572 = vrot.slane %v1571, 4
      %v1573 = vadd.f32 %v1571, %v1572
      %v1574 = vrot.slane %v1573, 2
      %v1575 = vadd.f32 %v1573, %v1574
      %v1576 = vrot.slane %v1575, 1
      %v1577 = vadd.f32 %v1575, %v1576
      %v1578 = vmul.f32 %v1577, 0.00390625
      %v1579 = vmul.f32 %v1476, %v1476
      %v1580 = vsub.f32 %v1578, %v1579
      %v1581 = vadd.f32 %v1580, 1e-05
      %v1582 = vrsqrt.pop %v1581
      %v1583 = vmul.f32 %v1582, %v1581
      %v1584 = vmul.f32 %v1583, %v1582
      %v1585 = vmul.f32 0.5, %v1584
      %v1586 = vsub.f32 1.5, %v1585
      %v1587 = vmul.f32 %v1582, %v1586
      %vm1588 = vweird.f32 %v1581
      %vm1589 = vweird.f32 %v1582
      %vm1590 = vmor %vm1588, %vm1589
      %v1591 = vsel %vm1590, %v1582, %v1587
      %v1592 = vmul.f32 %v1591, %v1405
      %v1593 = vmul.f32 %v1476, %v1592
      %v1594 = vsub.f32 %v1406, %v1593
      %v1595 = vperm.slane %v1592, 0
      %v1596 = vmul.f32 %v1373, %v1595
      %v1597 = vmul.f32 %v1374, %v1595
      %v1598 = vmul.f32 %v1375, %v1595
      %v1599 = vmul.f32 %v1376, %v1595
      %v1600 = vmul.f32 %v1377, %v1595
      %v1601 = vmul.f32 %v1378, %v1595
      %v1602 = vmul.f32 %v1379, %v1595
      %v1603 = vmul.f32 %v1380, %v1595
      %v1604 = vmul.f32 %v1381, %v1595
      %v1605 = vmul.f32 %v1382, %v1595
      %v1606 = vmul.f32 %v1383, %v1595
      %v1607 = vmul.f32 %v1384, %v1595
      %v1608 = vmul.f32 %v1385, %v1595
      %v1609 = vmul.f32 %v1386, %v1595
      %v1610 = vmul.f32 %v1387, %v1595
      %v1611 = vmul.f32 %v1388, %v1595
      %v1612 = vmul.f32 %v1389, %v1595
      %v1613 = vmul.f32 %v1390, %v1595
      %v1614 = vmul.f32 %v1391, %v1595
      %v1615 = vmul.f32 %v1392, %v1595
      %v1616 = vmul.f32 %v1393, %v1595
      %v1617 = vmul.f32 %v1394, %v1595
      %v1618 = vmul.f32 %v1395, %v1595
      %v1619 = vmul.f32 %v1396, %v1595
      %v1620 = vmul.f32 %v1397, %v1595
      %v1621 = vmul.f32 %v1398, %v1595
      %v1622 = vmul.f32 %v1399, %v1595
      %v1623 = vmul.f32 %v1400, %v1595
      %v1624 = vmul.f32 %v1401, %v1595
      %v1625 = vmul.f32 %v1402, %v1595
      %v1626 = vmul.f32 %v1403, %v1595
      %v1627 = vmul.f32 %v1404, %v1595
      %v1629 = vperm.slane %v1594, 0
      %v1631 = vadd.f32 %v1596, %v1629
      %v1632 = vadd.f32 %v1597, %v1629
      %v1633 = vadd.f32 %v1598, %v1629
      %v1634 = vadd.f32 %v1599, %v1629
      %v1635 = vadd.f32 %v1600, %v1629
      %v1636 = vadd.f32 %v1601, %v1629
      %v1637 = vadd.f32 %v1602, %v1629
      %v1638 = vadd.f32 %v1603, %v1629
      %v1639 = vadd.f32 %v1604, %v1629
      %v1640 = vadd.f32 %v1605, %v1629
      %v1641 = vadd.f32 %v1606, %v1629
      %v1642 = vadd.f32 %v1607, %v1629
      %v1643 = vadd.f32 %v1608, %v1629
      %v1644 = vadd.f32 %v1609, %v1629
      %v1645 = vadd.f32 %v1610, %v1629
      %v1646 = vadd.f32 %v1611, %v1629
      %v1647 = vadd.f32 %v1612, %v1629
      %v1648 = vadd.f32 %v1613, %v1629
      %v1649 = vadd.f32 %v1614, %v1629
      %v1650 = vadd.f32 %v1615, %v1629
      %v1651 = vadd.f32 %v1616, %v1629
      %v1652 = vadd.f32 %v1617, %v1629
      %v1653 = vadd.f32 %v1618, %v1629
      %v1654 = vadd.f32 %v1619, %v1629
      %v1655 = vadd.f32 %v1620, %v1629
      %v1656 = vadd.f32 %v1621, %v1629
      %v1657 = vadd.f32 %v1622, %v1629
      %v1658 = vadd.f32 %v1623, %v1629
      %v1659 = vadd.f32 %v1624, %v1629
      %v1660 = vadd.f32 %v1625, %v1629
      %v1661 = vadd.f32 %v1626, %v1629
      %v1662 = vadd.f32 %v1627, %v1629
      %v1663 = vmax.f32 %v1631, 0.0
      %v1664 = vmax.f32 %v1632, 0.0
      %v1665 = vmax.f32 %v1633, 0.0
      %v1666 = vmax.f32 %v1634, 0.0
      %v1667 = vmax.f32 %v1635, 0.0
      %v1668 = vmax.f32 %v1636, 0.0
      %v1669 = vmax.f32 %v1637, 0.0
      %v1670 = vmax.f32 %v1638, 0.0
      %v1671 = vmax.f32 %v1639, 0.0
      %v1672 = vmax.f32 %v1640, 0.0
      %v1673 = vmax.f32 %v1641, 0.0
      %v1674 = vmax.f32 %v1642, 0.0
      %v1675 = vmax.f32 %v1643, 0.0
      %v1676 = vmax.f32 %v1644, 0.0
      %v1677 = vmax.f32 %v1645, 0.0
      %v1678 = vmax.f32 %v1646, 0.0
      %v1679 = vmax.f32 %v1647, 0.0
      %v1680 = vmax.f32 %v1648, 0.0
      %v1681 = vmax.f32 %v1649, 0.0
      %v1682 = vmax.f32 %v1650, 0.0
      %v1683 = vmax.f32 %v1651, 0.0
      %v1684 = vmax.f32 %v1652, 0.0
      %v1685 = vmax.f32 %v1653, 0.0
      %v1686 = vmax.f32 %v1654, 0.0
      %v1687 = vmax.f32 %v1655, 0.0
      %v1688 = vmax.f32 %v1656, 0.0
      %v1689 = vmax.f32 %v1657, 0.0
      %v1690 = vmax.f32 %v1658, 0.0
      %v1691 = vmax.f32 %v1659, 0.0
      %v1692 = vmax.f32 %v1660, 0.0
      %v1693 = vmax.f32 %v1661, 0.0
      %v1694 = vmax.f32 %v1662, 0.0
      %v1695 = vld [vmem:[%s4] sm:$0xff]
      %v1696 = vld [vmem:[%s4 + $0x8] sm:$0xf]
      %v1697 = vld [vmem:[%s4 + $0x10] sm:$0xff]
      %v1698 = vld [vmem:[%s4 + $0x18] sm:$0xf]
      %v1699 = vld [vmem:[%s4 + $0x20] sm:$0xff]
      %v1700 = vld [vmem:[%s4 + $0x28] sm:$0xf]
      %1733 = vrot.lane.b32.xlu0 %v1663, 4
      %v1734 = vpop.permute.xlu0 %1733
      %1735 = vrot.lane.b32.xlu0 %v1664, 4
      %v1736 = vpop.permute.xlu0 %1735
      %1737 = vrot.lane.b32.xlu0 %v1665, 4
      %v1738 = vpop.permute.xlu0 %1737
      %1739 = vrot.lane.b32.xlu0 %v1666, 4
      %v1740 = vpop.permute.xlu0 %1739
      %1741 = vrot.lane.b32.xlu0 %v1667, 4
      %v1742 = vpop.permute.xlu0 %1741
      %1743 = vrot.lane.b32.xlu0 %v1668, 4
      %v1744 = vpop.permute.xlu0 %1743
      %1745 = vrot.lane.b32.xlu0 %v1669, 4
      %v1746 = vpop.permute.xlu0 %1745
      %1747 = vrot.lane.b32.xlu0 %v1670, 4
      %v1748 = vpop.permute.xlu0 %1747
      %1749 = vrot.lane.b32.xlu0 %v1671, 4
      %v1750 = vpop.permute.xlu0 %1749
      %1751 = vrot.lane.b32.xlu0 %v1672, 4
      %v1752 = vpop.permute.xlu0 %1751
      %1753 = vrot.lane.b32.xlu0 %v1673, 4
      %v1754 = vpop.permute.xlu0 %1753
      %1755 = vrot.lane.b32.xlu0 %v1674, 4
      %v1756 = vpop.permute.xlu0 %1755
      %1757 = vrot.lane.b32.xlu0 %v1675, 4
      %v1758 = vpop.permute.xlu0 %1757
      %1759 = vrot.lane.b32.xlu0 %v1676, 4
      %v1760 = vpop.permute.xlu0 %1759
      %1761 = vrot.lane.b32.xlu0 %v1677, 4
      %v1762 = vpop.permute.xlu0 %1761
      %1763 = vrot.lane.b32.xlu0 %v1678, 4
      %v1764 = vpop.permute.xlu0 %1763
      %1765 = vrot.lane.b32.xlu0 %v1679, 4
      %v1766 = vpop.permute.xlu0 %1765
      %1767 = vrot.lane.b32.xlu0 %v1680, 4
      %v1768 = vpop.permute.xlu0 %1767
      %1769 = vrot.lane.b32.xlu0 %v1681, 4
      %v1770 = vpop.permute.xlu0 %1769
      %1771 = vrot.lane.b32.xlu0 %v1682, 4
      %v1772 = vpop.permute.xlu0 %1771
      %1773 = vrot.lane.b32.xlu0 %v1683, 4
      %v1774 = vpop.permute.xlu0 %1773
      %1775 = vrot.lane.b32.xlu0 %v1684, 4
      %v1776 = vpop.permute.xlu0 %1775
      %1777 = vrot.lane.b32.xlu0 %v1685, 4
      %v1778 = vpop.permute.xlu0 %1777
      %1779 = vrot.lane.b32.xlu0 %v1686, 4
      %v1780 = vpop.permute.xlu0 %1779
      %1781 = vrot.lane.b32.xlu0 %v1687, 4
      %v1782 = vpop.permute.xlu0 %1781
      %1783 = vrot.lane.b32.xlu0 %v1688, 4
      %v1784 = vpop.permute.xlu0 %1783
      %1785 = vrot.lane.b32.xlu0 %v1689, 4
      %v1786 = vpop.permute.xlu0 %1785
      %1787 = vrot.lane.b32.xlu0 %v1690, 4
      %v1788 = vpop.permute.xlu0 %1787
      %1789 = vrot.lane.b32.xlu0 %v1691, 4
      %v1790 = vpop.permute.xlu0 %1789
      %1791 = vrot.lane.b32.xlu0 %v1692, 4
      %v1792 = vpop.permute.xlu0 %1791
      %1793 = vrot.lane.b32.xlu0 %v1693, 4
      %v1794 = vpop.permute.xlu0 %1793
      %1795 = vrot.lane.b32.xlu0 %v1694, 4
      %v1796 = vpop.permute.xlu0 %1795
      %1829 = vrot.lane.b32.xlu0 %v1665, 8
      %v1830 = vpop.permute.xlu0 %1829
      %1831 = vrot.lane.b32.xlu0 %v1666, 8
      %v1832 = vpop.permute.xlu0 %1831
      %1833 = vrot.lane.b32.xlu0 %v1667, 8
      %v1834 = vpop.permute.xlu0 %1833
      %1835 = vrot.lane.b32.xlu0 %v1668, 8
      %v1836 = vpop.permute.xlu0 %1835
      %1837 = vrot.lane.b32.xlu0 %v1669, 8
      %v1838 = vpop.permute.xlu0 %1837
      %1839 = vrot.lane.b32.xlu0 %v1670, 8
      %v1840 = vpop.permute.xlu0 %1839
      %1841 = vrot.lane.b32.xlu0 %v1671, 8
      %v1842 = vpop.permute.xlu0 %1841
      %1843 = vrot.lane.b32.xlu0 %v1672, 8
      %v1844 = vpop.permute.xlu0 %1843
      %1845 = vrot.lane.b32.xlu0 %v1673, 8
      %v1846 = vpop.permute.xlu0 %1845
      %1847 = vrot.lane.b32.xlu0 %v1674, 8
      %v1848 = vpop.permute.xlu0 %1847
      %1849 = vrot.lane.b32.xlu0 %v1675, 8
      %v1850 = vpop.permute.xlu0 %1849
      %1851 = vrot.lane.b32.xlu0 %v1676, 8
      %v1852 = vpop.permute.xlu0 %1851
      %1853 = vrot.lane.b32.xlu0 %v1677, 8
      %v1854 = vpop.permute.xlu0 %1853
      %1855 = vrot.lane.b32.xlu0 %v1678, 8
      %v1856 = vpop.permute.xlu0 %1855
      %1857 = vrot.lane.b32.xlu0 %v1679, 8
      %v1858 = vpop.permute.xlu0 %1857
      %1859 = vrot.lane.b32.xlu0 %v1680, 8
      %v1860 = vpop.permute.xlu0 %1859
      %1861 = vrot.lane.b32.xlu0 %v1681, 8
      %v1862 = vpop.permute.xlu0 %1861
      %1863 = vrot.lane.b32.xlu0 %v1682, 8
      %v1864 = vpop.permute.xlu0 %1863
      %1865 = vrot.lane.b32.xlu0 %v1683, 8
      %v1866 = vpop.permute.xlu0 %1865
      %1867 = vrot.lane.b32.xlu0 %v1684, 8
      %v1868 = vpop.permute.xlu0 %1867
      %1869 = vrot.lane.b32.xlu0 %v1685, 8
      %v1870 = vpop.permute.xlu0 %1869
      %1871 = vrot.lane.b32.xlu0 %v1686, 8
      %v1872 = vpop.permute.xlu0 %1871
      %1873 = vrot.lane.b32.xlu0 %v1687, 8
      %v1874 = vpop.permute.xlu0 %1873
      %1875 = vrot.lane.b32.xlu0 %v1688, 8
      %v1876 = vpop.permute.xlu0 %1875
      %1877 = vrot.lane.b32.xlu0 %v1689, 8
      %v1878 = vpop.permute.xlu0 %1877
      %1879 = vrot.lane.b32.xlu0 %v1690, 8
      %v1880 = vpop.permute.xlu0 %1879
      %1881 = vrot.lane.b32.xlu0 %v1691, 8
      %v1882 = vpop.permute.xlu0 %1881
      %1883 = vrot.lane.b32.xlu0 %v1692, 8
      %v1884 = vpop.permute.xlu0 %1883
      %1885 = vrot.lane.b32.xlu0 %v1693, 8
      %v1886 = vpop.permute.xlu0 %1885
      %1887 = vrot.lane.b32.xlu0 %v1694, 8
      %v1888 = vpop.permute.xlu0 %1887
      %v1919 = vsel %vm539, 0.0, %v1734
      %v1920 = vsel %vm539, 0.0, %v1736
      %v1921 = vsel %vm539, %v1663, %v1738
      %v1922 = vsel %vm539, %v1664, %v1740
      %v1923 = vsel %vm539, %v1665, %v1742
      %v1924 = vsel %vm539, %v1666, %v1744
      %v1925 = vsel %vm539, %v1667, %v1746
      %v1926 = vsel %vm539, %v1668, %v1748
      %v1927 = vsel %vm539, %v1669, %v1750
      %v1928 = vsel %vm539, %v1670, %v1752
      %v1929 = vsel %vm539, %v1671, %v1754
      %v1930 = vsel %vm539, %v1672, %v1756
      %v1931 = vsel %vm539, %v1673, %v1758
      %v1932 = vsel %vm539, %v1674, %v1760
      %v1933 = vsel %vm539, %v1675, %v1762
      %v1934 = vsel %vm539, %v1676, %v1764
      %v1935 = vsel %vm539, %v1677, %v1766
      %v1936 = vsel %vm539, %v1678, %v1768
      %v1937 = vsel %vm539, %v1679, %v1770
      %v1938 = vsel %vm539, %v1680, %v1772
      %v1939 = vsel %vm539, %v1681, %v1774
      %v1940 = vsel %vm539, %v1682, %v1776
      %v1941 = vsel %vm539, %v1683, %v1778
      %v1942 = vsel %vm539, %v1684, %v1780
      %v1943 = vsel %vm539, %v1685, %v1782
      %v1944 = vsel %vm539, %v1686, %v1784
      %v1945 = vsel %vm539, %v1687, %v1786
      %v1946 = vsel %vm539, %v1688, %v1788
      %v1947 = vsel %vm539, %v1689, %v1790
      %v1948 = vsel %vm539, %v1690, %v1792
      %v1949 = vsel %vm539, %v1691, %v1794
      %v1950 = vsel %vm539, %v1692, %v1796
      %v1951 = vsel %vm572, %v1919, %v1830
      %v1952 = vsel %vm572, %v1920, %v1832
      %v1953 = vsel %vm572, %v1921, %v1834
      %v1954 = vsel %vm572, %v1922, %v1836
      %v1955 = vsel %vm572, %v1923, %v1838
      %v1956 = vsel %vm572, %v1924, %v1840
      %v1957 = vsel %vm572, %v1925, %v1842
      %v1958 = vsel %vm572, %v1926, %v1844
      %v1959 = vsel %vm572, %v1927, %v1846
      %v1960 = vsel %vm572, %v1928, %v1848
      %v1961 = vsel %vm572, %v1929, %v1850
      %v1962 = vsel %vm572, %v1930, %v1852
      %v1963 = vsel %vm572, %v1931, %v1854
      %v1964 = vsel %vm572, %v1932, %v1856
      %v1965 = vsel %vm572, %v1933, %v1858
      %v1966 = vsel %vm572, %v1934, %v1860
      %v1967 = vsel %vm572, %v1935, %v1862
      %v1968 = vsel %vm572, %v1936, %v1864
      %v1969 = vsel %vm572, %v1937, %v1866
      %v1970 = vsel %vm572, %v1938, %v1868
      %v1971 = vsel %vm572, %v1939, %v1870
      %v1972 = vsel %vm572, %v1940, %v1872
      %v1973 = vsel %vm572, %v1941, %v1874
      %v1974 = vsel %vm572, %v1942, %v1876
      %v1975 = vsel %vm572, %v1943, %v1878
      %v1976 = vsel %vm572, %v1944, %v1880
      %v1977 = vsel %vm572, %v1945, %v1882
      %v1978 = vsel %vm572, %v1946, %v1884
      %v1979 = vsel %vm572, %v1947, %v1886
      %v1980 = vsel %vm572, %v1948, %v1888
      %v1981 = vsel %vm572, %v1949, %v507
      %v1982 = vsel %vm572, %v1950, %v507
      %v2015 = vrot.slane %v1951, 7
      %v2016 = vrot.slane %v1952, 7
      %v2017 = vsel %vm637, %v2015, %v2016
      %v2018 = vrot.slane %v1953, 7
      %v2019 = vrot.slane %v1954, 7
      %v2020 = vsel %vm637, %v2018, %v2019
      %v2021 = vrot.slane %v1955, 7
      %v2022 = vrot.slane %v1956, 7
      %v2023 = vsel %vm637, %v2021, %v2022
      %v2024 = vrot.slane %v1957, 7
      %v2025 = vrot.slane %v1958, 7
      %v2026 = vsel %vm637, %v2024, %v2025
      %v2027 = vrot.slane %v1959, 7
      %v2028 = vrot.slane %v1960, 7
      %v2029 = vsel %vm637, %v2027, %v2028
      %v2030 = vrot.slane %v1961, 7
      %v2031 = vrot.slane %v1962, 7
      %v2032 = vsel %vm637, %v2030, %v2031
      %v2033 = vrot.slane %v1963, 7
      %v2034 = vrot.slane %v1964, 7
      %v2035 = vsel %vm637, %v2033, %v2034
      %v2036 = vrot.slane %v1965, 7
      %v2037 = vrot.slane %v1966, 7
      %v2038 = vsel %vm637, %v2036, %v2037
      %v2039 = vrot.slane %v1967, 7
      %v2040 = vrot.slane %v1968, 7
      %v2041 = vsel %vm637, %v2039, %v2040
      %v2042 = vrot.slane %v1969, 7
      %v2043 = vrot.slane %v1970, 7
      %v2044 = vsel %vm637, %v2042, %v2043
      %v2045 = vrot.slane %v1971, 7
      %v2046 = vrot.slane %v1972, 7
      %v2047 = vsel %vm637, %v2045, %v2046
      %v2048 = vrot.slane %v1973, 7
      %v2049 = vrot.slane %v1974, 7
      %v2050 = vsel %vm637, %v2048, %v2049
      %v2051 = vrot.slane %v1975, 7
      %v2052 = vrot.slane %v1976, 7
      %v2053 = vsel %vm637, %v2051, %v2052
      %v2054 = vrot.slane %v1977, 7
      %v2055 = vrot.slane %v1978, 7
      %v2056 = vsel %vm637, %v2054, %v2055
      %v2057 = vrot.slane %v1979, 7
      %v2058 = vrot.slane %v1980, 7
      %v2059 = vsel %vm637, %v2057, %v2058
      %v2060 = vrot.slane %v1981, 7
      %v2061 = vrot.slane %v1982, 7
      %v2062 = vsel %vm637, %v2060, %v2061
      %v2079 = vsel %vm637, 0.0, %v2015
      %v2080 = vsel %vm637, 0.0, %v2018
      %v2081 = vsel %vm637, 0.0, %v2021
      %v2082 = vsel %vm637, 0.0, %v2024
      %v2083 = vsel %vm637, 0.0, %v2027
      %v2084 = vsel %vm637, 0.0, %v2030
      %v2085 = vsel %vm637, 0.0, %v2033
      %v2086 = vsel %vm637, 0.0, %v2036
      %v2087 = vsel %vm637, 0.0, %v2039
      %v2088 = vsel %vm637, 0.0, %v2042
      %v2089 = vsel %vm637, 0.0, %v2045
      %v2090 = vsel %vm637, 0.0, %v2048
      %v2091 = vsel %vm637, 0.0, %v2051
      %v2092 = vsel %vm637, 0.0, %v2054
      %v2093 = vsel %vm637, 0.0, %v2057
      %v2094 = vsel %vm637, 0.0, %v2060
      %v2096 = vsel %vm718, %v2079, 0
      %v2098 = vsel %vm718, %v2017, 0
      %v2101 = vsel %vm718, %v2080, 0
      %v2103 = vsel %vm718, %v2020, 0
      %v2106 = vsel %vm718, %v2081, 0
      %v2108 = vsel %vm718, %v2023, 0
      %v2111 = vsel %vm718, %v2082, 0
      %v2113 = vsel %vm718, %v2026, 0
      %v2116 = vsel %vm718, %v2083, 0
      %v2118 = vsel %vm718, %v2029, 0
      %v2121 = vsel %vm718, %v2084, 0
      %v2123 = vsel %vm718, %v2032, 0
      %v2126 = vsel %vm718, %v2085, 0
      %v2128 = vsel %vm718, %v2035, 0
      %v2131 = vsel %vm718, %v2086, 0
      %v2133 = vsel %vm718, %v2038, 0
      %v2136 = vsel %vm718, %v2087, 0
      %v2138 = vsel %vm718, %v2041, 0
      %v2141 = vsel %vm718, %v2088, 0
      %v2143 = vsel %vm718, %v2044, 0
      %v2146 = vsel %vm718, %v2089, 0
      %v2148 = vsel %vm718, %v2047, 0
      %v2151 = vsel %vm718, %v2090, 0
      %v2153 = vsel %vm718, %v2050, 0
      %v2156 = vsel %vm718, %v2091, 0
      %v2158 = vsel %vm718, %v2053, 0
      %v2161 = vsel %vm718, %v2092, 0
      %v2163 = vsel %vm718, %v2056, 0
      %v2166 = vsel %vm718, %v2093, 0
      %v2168 = vsel %vm718, %v2059, 0
      %v2171 = vsel %vm718, %v2094, 0
      %v2173 = vsel %vm718, %v2062, 0
      %v2176 = vsel %vm799, %v1696, 0
      %2178 = vmatpush.msra.mxu0 0.0
      %2179 = vmatpush.msra.mxu0 0.0
      %2180 = vmatpush.msra.mxu0 0.0
      %2181 = vmatpush.msra.mxu0 0.0
      %2182 = vmatpush.msra.mxu0 0.0
      %2183 = vmatpush.msra.mxu0 0.0
      %2184 = vmatpush.msra.mxu0 0.0
      %2185 = vmatpush.msra.mxu0 0.0
      %2186 = vmatpush.msra.mxu0 0.0
      %2187 = vmatpush.msra.mxu0 0.0
      %2188 = vmatpush.msra.mxu0 0.0
      %2189 = vmatpush.msra.mxu0 0.0
      %2190 = vmatpush.msra.mxu0 0.0
      %2191 = vmatpush.msra.mxu0 0.0
      %2192 = vmatpush.msra.mxu0 %v2176
      %2193 = vmatpush.msra.mxu0 %v1695
      %2194 = vmatmul.f32.gmra.mxu0 %v2096
      %v2195 = vpop.f32.mrf.mxu0
      %v2196 = vadd.f32 0.0, %v2195
      %2197 = vmatmul.f32.gmra.mxu0 %v2098
      %v2198 = vpop.f32.mrf.mxu0
      %v2199 = vadd.f32 0.0, %v2198
      %2200 = vmatmul.f32.gmra.mxu0 %v2101
      %v2201 = vpop.f32.mrf.mxu0
      %v2202 = vadd.f32 0.0, %v2201
      %2203 = vmatmul.f32.gmra.mxu0 %v2103
      %v2204 = vpop.f32.mrf.mxu0
      %v2205 = vadd.f32 0.0, %v2204
      %2206 = vmatmul.f32.gmra.mxu0 %v2106
      %v2207 = vpop.f32.mrf.mxu0
      %v2208 = vadd.f32 0.0, %v2207
      %2209 = vmatmul.f32.gmra.mxu0 %v2108
      %v2210 = vpop.f32.mrf.mxu0
      %v2211 = vadd.f32 0.0, %v2210
      %2212 = vmatmul.f32.gmra.mxu0 %v2111
      %v2213 = vpop.f32.mrf.mxu0
      %v2214 = vadd.f32 0.0, %v2213
      %2215 = vmatmul.f32.gmra.mxu0 %v2113
      %v2216 = vpop.f32.mrf.mxu0
      %v2217 = vadd.f32 0.0, %v2216
      %2218 = vmatmul.f32.gmra.mxu0 %v2116
      %v2219 = vpop.f32.mrf.mxu0
      %v2220 = vadd.f32 0.0, %v2219
      %2221 = vmatmul.f32.gmra.mxu0 %v2118
      %v2222 = vpop.f32.mrf.mxu0
      %v2223 = vadd.f32 0.0, %v2222
      %2224 = vmatmul.f32.gmra.mxu0 %v2121
      %v2225 = vpop.f32.mrf.mxu0
      %v2226 = vadd.f32 0.0, %v2225
      %2227 = vmatmul.f32.gmra.mxu0 %v2123
      %v2228 = vpop.f32.mrf.mxu0
      %v2229 = vadd.f32 0.0, %v2228
      %2230 = vmatmul.f32.gmra.mxu0 %v2126
      %v2231 = vpop.f32.mrf.mxu0
      %v2232 = vadd.f32 0.0, %v2231
      %2233 = vmatmul.f32.gmra.mxu0 %v2128
      %v2234 = vpop.f32.mrf.mxu0
      %v2235 = vadd.f32 0.0, %v2234
      %2236 = vmatmul.f32.gmra.mxu0 %v2131
      %v2237 = vpop.f32.mrf.mxu0
      %v2238 = vadd.f32 0.0, %v2237
      %2239 = vmatmul.f32.gmra.mxu0 %v2133
      %v2240 = vpop.f32.mrf.mxu0
      %v2241 = vadd.f32 0.0, %v2240
      %2242 = vmatmul.f32.gmra.mxu0 %v2136
      %v2243 = vpop.f32.mrf.mxu0
      %v2244 = vadd.f32 0.0, %v2243
      %2245 = vmatmul.f32.gmra.mxu0 %v2138
      %v2246 = vpop.f32.mrf.mxu0
      %v2247 = vadd.f32 0.0, %v2246
      %2248 = vmatmul.f32.gmra.mxu0 %v2141
      %v2249 = vpop.f32.mrf.mxu0
      %v2250 = vadd.f32 0.0, %v2249
      %2251 = vmatmul.f32.gmra.mxu0 %v2143
      %v2252 = vpop.f32.mrf.mxu0
      %v2253 = vadd.f32 0.0, %v2252
      %2254 = vmatmul.f32.gmra.mxu0 %v2146
      %v2255 = vpop.f32.mrf.mxu0
      %v2256 = vadd.f32 0.0, %v2255
      %2257 = vmatmul.f32.gmra.mxu0 %v2148
      %v2258 = vpop.f32.mrf.mxu0
      %v2259 = vadd.f32 0.0, %v2258
      %2260 = vmatmul.f32.gmra.mxu0 %v2151
      %v2261 = vpop.f32.mrf.mxu0
      %v2262 = vadd.f32 0.0, %v2261
      %2263 = vmatmul.f32.gmra.mxu0 %v2153
      %v2264 = vpop.f32.mrf.mxu0
      %v2265 = vadd.f32 0.0, %v2264
      %2266 = vmatmul.f32.gmra.mxu0 %v2156
      %v2267 = vpop.f32.mrf.mxu0
      %v2268 = vadd.f32 0.0, %v2267
      %2269 = vmatmul.f32.gmra.mxu0 %v2158
      %v2270 = vpop.f32.mrf.mxu0
      %v2271 = vadd.f32 0.0, %v2270
      %2272 = vmatmul.f32.gmra.mxu0 %v2161
      %v2273 = vpop.f32.mrf.mxu0
      %v2274 = vadd.f32 0.0, %v2273
      %2275 = vmatmul.f32.gmra.mxu0 %v2163
      %v2276 = vpop.f32.mrf.mxu0
      %v2277 = vadd.f32 0.0, %v2276
      %2278 = vmatmul.f32.gmra.mxu0 %v2166
      %v2279 = vpop.f32.mrf.mxu0
      %v2280 = vadd.f32 0.0, %v2279
      %2281 = vmatmul.f32.gmra.mxu0 %v2168
      %v2282 = vpop.f32.mrf.mxu0
      %v2283 = vadd.f32 0.0, %v2282
      %2284 = vmatmul.f32.gmra.mxu0 %v2171
      %v2285 = vpop.f32.mrf.mxu0
      %v2286 = vadd.f32 0.0, %v2285
      %2287 = vmatmul.f32.gmra.mxu0 %v2173
      %v2288 = vpop.f32.mrf.mxu0
      %v2289 = vadd.f32 0.0, %v2288
      %2290 = vdwg.mxu0
      %v2291 = vsel %vm718, %v1951, 0
      %v2293 = vsel %vm718, %v1952, 0
      %v2295 = vsel %vm718, %v1953, 0
      %v2297 = vsel %vm718, %v1954, 0
      %v2299 = vsel %vm718, %v1955, 0
      %v2301 = vsel %vm718, %v1956, 0
      %v2303 = vsel %vm718, %v1957, 0
      %v2305 = vsel %vm718, %v1958, 0
      %v2307 = vsel %vm718, %v1959, 0
      %v2309 = vsel %vm718, %v1960, 0
      %v2311 = vsel %vm718, %v1961, 0
      %v2313 = vsel %vm718, %v1962, 0
      %v2315 = vsel %vm718, %v1963, 0
      %v2317 = vsel %vm718, %v1964, 0
      %v2319 = vsel %vm718, %v1965, 0
      %v2321 = vsel %vm718, %v1966, 0
      %v2323 = vsel %vm718, %v1967, 0
      %v2325 = vsel %vm718, %v1968, 0
      %v2327 = vsel %vm718, %v1969, 0
      %v2329 = vsel %vm718, %v1970, 0
      %v2331 = vsel %vm718, %v1971, 0
      %v2333 = vsel %vm718, %v1972, 0
      %v2335 = vsel %vm718, %v1973, 0
      %v2337 = vsel %vm718, %v1974, 0
      %v2339 = vsel %vm718, %v1975, 0
      %v2341 = vsel %vm718, %v1976, 0
      %v2343 = vsel %vm718, %v1977, 0
      %v2345 = vsel %vm718, %v1978, 0
      %v2347 = vsel %vm718, %v1979, 0
      %v2349 = vsel %vm718, %v1980, 0
      %v2351 = vsel %vm718, %v1981, 0
      %v2353 = vsel %vm718, %v1982, 0
      %v2356 = vsel %vm799, %v1698, 0
      %2358 = vmatpush.msra.mxu0 0.0
      %2359 = vmatpush.msra.mxu0 0.0
      %2360 = vmatpush.msra.mxu0 0.0
      %2361 = vmatpush.msra.mxu0 0.0
      %2362 = vmatpush.msra.mxu0 0.0
      %2363 = vmatpush.msra.mxu0 0.0
      %2364 = vmatpush.msra.mxu0 0.0
      %2365 = vmatpush.msra.mxu0 0.0
      %2366 = vmatpush.msra.mxu0 0.0
      %2367 = vmatpush.msra.mxu0 0.0
      %2368 = vmatpush.msra.mxu0 0.0
      %2369 = vmatpush.msra.mxu0 0.0
      %2370 = vmatpush.msra.mxu0 0.0
      %2371 = vmatpush.msra.mxu0 0.0
      %2372 = vmatpush.msra.mxu0 %v2356
      %2373 = vmatpush.msra.mxu0 %v1697
      %2374 = vmatmul.f32.gmra.mxu0 %v2291
      %v2375 = vpop.f32.mrf.mxu0
      %v2376 = vadd.f32 %v2196, %v2375
      %2377 = vmatmul.f32.gmra.mxu0 %v2293
      %v2378 = vpop.f32.mrf.mxu0
      %v2379 = vadd.f32 %v2199, %v2378
      %2380 = vmatmul.f32.gmra.mxu0 %v2295
      %v2381 = vpop.f32.mrf.mxu0
      %v2382 = vadd.f32 %v2202, %v2381
      %2383 = vmatmul.f32.gmra.mxu0 %v2297
      %v2384 = vpop.f32.mrf.mxu0
      %v2385 = vadd.f32 %v2205, %v2384
      %2386 = vmatmul.f32.gmra.mxu0 %v2299
      %v2387 = vpop.f32.mrf.mxu0
      %v2388 = vadd.f32 %v2208, %v2387
      %2389 = vmatmul.f32.gmra.mxu0 %v2301
      %v2390 = vpop.f32.mrf.mxu0
      %v2391 = vadd.f32 %v2211, %v2390
      %2392 = vmatmul.f32.gmra.mxu0 %v2303
      %v2393 = vpop.f32.mrf.mxu0
      %v2394 = vadd.f32 %v2214, %v2393
      %2395 = vmatmul.f32.gmra.mxu0 %v2305
      %v2396 = vpop.f32.mrf.mxu0
      %v2397 = vadd.f32 %v2217, %v2396
      %2398 = vmatmul.f32.gmra.mxu0 %v2307
      %v2399 = vpop.f32.mrf.mxu0
      %v2400 = vadd.f32 %v2220, %v2399
      %2401 = vmatmul.f32.gmra.mxu0 %v2309
      %v2402 = vpop.f32.mrf.mxu0
      %v2403 = vadd.f32 %v2223, %v2402
      %2404 = vmatmul.f32.gmra.mxu0 %v2311
      %v2405 = vpop.f32.mrf.mxu0
      %v2406 = vadd.f32 %v2226, %v2405
      %2407 = vmatmul.f32.gmra.mxu0 %v2313
      %v2408 = vpop.f32.mrf.mxu0
      %v2409 = vadd.f32 %v2229, %v2408
      %2410 = vmatmul.f32.gmra.mxu0 %v2315
      %v2411 = vpop.f32.mrf.mxu0
      %v2412 = vadd.f32 %v2232, %v2411
      %2413 = vmatmul.f32.gmra.mxu0 %v2317
      %v2414 = vpop.f32.mrf.mxu0
      %v2415 = vadd.f32 %v2235, %v2414
      %2416 = vmatmul.f32.gmra.mxu0 %v2319
      %v2417 = vpop.f32.mrf.mxu0
      %v2418 = vadd.f32 %v2238, %v2417
      %2419 = vmatmul.f32.gmra.mxu0 %v2321
      %v2420 = vpop.f32.mrf.mxu0
      %v2421 = vadd.f32 %v2241, %v2420
      %2422 = vmatmul.f32.gmra.mxu0 %v2323
      %v2423 = vpop.f32.mrf.mxu0
      %v2424 = vadd.f32 %v2244, %v2423
      %2425 = vmatmul.f32.gmra.mxu0 %v2325
      %v2426 = vpop.f32.mrf.mxu0
      %v2427 = vadd.f32 %v2247, %v2426
      %2428 = vmatmul.f32.gmra.mxu0 %v2327
      %v2429 = vpop.f32.mrf.mxu0
      %v2430 = vadd.f32 %v2250, %v2429
      %2431 = vmatmul.f32.gmra.mxu0 %v2329
      %v2432 = vpop.f32.mrf.mxu0
      %v2433 = vadd.f32 %v2253, %v2432
      %2434 = vmatmul.f32.gmra.mxu0 %v2331
      %v2435 = vpop.f32.mrf.mxu0
      %v2436 = vadd.f32 %v2256, %v2435
      %2437 = vmatmul.f32.gmra.mxu0 %v2333
      %v2438 = vpop.f32.mrf.mxu0
      %v2439 = vadd.f32 %v2259, %v2438
      %2440 = vmatmul.f32.gmra.mxu0 %v2335
      %v2441 = vpop.f32.mrf.mxu0
      %v2442 = vadd.f32 %v2262, %v2441
      %2443 = vmatmul.f32.gmra.mxu0 %v2337
      %v2444 = vpop.f32.mrf.mxu0
      %v2445 = vadd.f32 %v2265, %v2444
      %2446 = vmatmul.f32.gmra.mxu0 %v2339
      %v2447 = vpop.f32.mrf.mxu0
      %v2448 = vadd.f32 %v2268, %v2447
      %2449 = vmatmul.f32.gmra.mxu0 %v2341
      %v2450 = vpop.f32.mrf.mxu0
      %v2451 = vadd.f32 %v2271, %v2450
      %2452 = vmatmul.f32.gmra.mxu0 %v2343
      %v2453 = vpop.f32.mrf.mxu0
      %v2454 = vadd.f32 %v2274, %v2453
      %2455 = vmatmul.f32.gmra.mxu0 %v2345
      %v2456 = vpop.f32.mrf.mxu0
      %v2457 = vadd.f32 %v2277, %v2456
      %2458 = vmatmul.f32.gmra.mxu0 %v2347
      %v2459 = vpop.f32.mrf.mxu0
      %v2460 = vadd.f32 %v2280, %v2459
      %2461 = vmatmul.f32.gmra.mxu0 %v2349
      %v2462 = vpop.f32.mrf.mxu0
      %v2463 = vadd.f32 %v2283, %v2462
      %2464 = vmatmul.f32.gmra.mxu0 %v2351
      %v2465 = vpop.f32.mrf.mxu0
      %v2466 = vadd.f32 %v2286, %v2465
      %2467 = vmatmul.f32.gmra.mxu0 %v2353
      %v2468 = vpop.f32.mrf.mxu0
      %v2469 = vadd.f32 %v2289, %v2468
      %2470 = vdwg.mxu0
      %v2471 = vrot.slane %v1951, 1
      %v2472 = vrot.slane %v1952, 1
      %v2473 = vsel %vm1096, %v2471, %v2472
      %v2474 = vrot.slane %v1953, 1
      %v2475 = vrot.slane %v1954, 1
      %v2476 = vsel %vm1096, %v2474, %v2475
      %v2477 = vrot.slane %v1955, 1
      %v2478 = vrot.slane %v1956, 1
      %v2479 = vsel %vm1096, %v2477, %v2478
      %v2480 = vrot.slane %v1957, 1
      %v2481 = vrot.slane %v1958, 1
      %v2482 = vsel %vm1096, %v2480, %v2481
      %v2483 = vrot.slane %v1959, 1
      %v2484 = vrot.slane %v1960, 1
      %v2485 = vsel %vm1096, %v2483, %v2484
      %v2486 = vrot.slane %v1961, 1
      %v2487 = vrot.slane %v1962, 1
      %v2488 = vsel %vm1096, %v2486, %v2487
      %v2489 = vrot.slane %v1963, 1
      %v2490 = vrot.slane %v1964, 1
      %v2491 = vsel %vm1096, %v2489, %v2490
      %v2492 = vrot.slane %v1965, 1
      %v2493 = vrot.slane %v1966, 1
      %v2494 = vsel %vm1096, %v2492, %v2493
      %v2495 = vrot.slane %v1967, 1
      %v2496 = vrot.slane %v1968, 1
      %v2497 = vsel %vm1096, %v2495, %v2496
      %v2498 = vrot.slane %v1969, 1
      %v2499 = vrot.slane %v1970, 1
      %v2500 = vsel %vm1096, %v2498, %v2499
      %v2501 = vrot.slane %v1971, 1
      %v2502 = vrot.slane %v1972, 1
      %v2503 = vsel %vm1096, %v2501, %v2502
      %v2504 = vrot.slane %v1973, 1
      %v2505 = vrot.slane %v1974, 1
      %v2506 = vsel %vm1096, %v2504, %v2505
      %v2507 = vrot.slane %v1975, 1
      %v2508 = vrot.slane %v1976, 1
      %v2509 = vsel %vm1096, %v2507, %v2508
      %v2510 = vrot.slane %v1977, 1
      %v2511 = vrot.slane %v1978, 1
      %v2512 = vsel %vm1096, %v2510, %v2511
      %v2513 = vrot.slane %v1979, 1
      %v2514 = vrot.slane %v1980, 1
      %v2515 = vsel %vm1096, %v2513, %v2514
      %v2516 = vrot.slane %v1981, 1
      %v2517 = vrot.slane %v1982, 1
      %v2518 = vsel %vm1096, %v2516, %v2517
      %v2535 = vsel %vm1096, %v2472, 0.0
      %v2536 = vsel %vm1096, %v2475, 0.0
      %v2537 = vsel %vm1096, %v2478, 0.0
      %v2538 = vsel %vm1096, %v2481, 0.0
      %v2539 = vsel %vm1096, %v2484, 0.0
      %v2540 = vsel %vm1096, %v2487, 0.0
      %v2541 = vsel %vm1096, %v2490, 0.0
      %v2542 = vsel %vm1096, %v2493, 0.0
      %v2543 = vsel %vm1096, %v2496, 0.0
      %v2544 = vsel %vm1096, %v2499, 0.0
      %v2545 = vsel %vm1096, %v2502, 0.0
      %v2546 = vsel %vm1096, %v2505, 0.0
      %v2547 = vsel %vm1096, %v2508, 0.0
      %v2548 = vsel %vm1096, %v2511, 0.0
      %v2549 = vsel %vm1096, %v2514, 0.0
      %v2550 = vsel %vm1096, %v2517, 0.0
      %v2551 = vsel %vm718, %v2473, 0
      %v2554 = vsel %vm718, %v2535, 0
      %v2556 = vsel %vm718, %v2476, 0
      %v2559 = vsel %vm718, %v2536, 0
      %v2561 = vsel %vm718, %v2479, 0
      %v2564 = vsel %vm718, %v2537, 0
      %v2566 = vsel %vm718, %v2482, 0
      %v2569 = vsel %vm718, %v2538, 0
      %v2571 = vsel %vm718, %v2485, 0
      %v2574 = vsel %vm718, %v2539, 0
      %v2576 = vsel %vm718, %v2488, 0
      %v2579 = vsel %vm718, %v2540, 0
      %v2581 = vsel %vm718, %v2491, 0
      %v2584 = vsel %vm718, %v2541, 0
      %v2586 = vsel %vm718, %v2494, 0
      %v2589 = vsel %vm718, %v2542, 0
      %v2591 = vsel %vm718, %v2497, 0
      %v2594 = vsel %vm718, %v2543, 0
      %v2596 = vsel %vm718, %v2500, 0
      %v2599 = vsel %vm718, %v2544, 0
      %v2601 = vsel %vm718, %v2503, 0
      %v2604 = vsel %vm718, %v2545, 0
      %v2606 = vsel %vm718, %v2506, 0
      %v2609 = vsel %vm718, %v2546, 0
      %v2611 = vsel %vm718, %v2509, 0
      %v2614 = vsel %vm718, %v2547, 0
      %v2616 = vsel %vm718, %v2512, 0
      %v2619 = vsel %vm718, %v2548, 0
      %v2621 = vsel %vm718, %v2515, 0
      %v2624 = vsel %vm718, %v2549, 0
      %v2626 = vsel %vm718, %v2518, 0
      %v2629 = vsel %vm718, %v2550, 0
      %v2632 = vsel %vm799, %v1700, 0
      %2634 = vmatpush.msra.mxu0 0.0
      %2635 = vmatpush.msra.mxu0 0.0
      %2636 = vmatpush.msra.mxu0 0.0
      %2637 = vmatpush.msra.mxu0 0.0
      %2638 = vmatpush.msra.mxu0 0.0
      %2639 = vmatpush.msra.mxu0 0.0
      %2640 = vmatpush.msra.mxu0 0.0
      %2641 = vmatpush.msra.mxu0 0.0
      %2642 = vmatpush.msra.mxu0 0.0
      %2643 = vmatpush.msra.mxu0 0.0
      %2644 = vmatpush.msra.mxu0 0.0
      %2645 = vmatpush.msra.mxu0 0.0
      %2646 = vmatpush.msra.mxu0 0.0
      %2647 = vmatpush.msra.mxu0 0.0
      %2648 = vmatpush.msra.mxu0 %v2632
      %2649 = vmatpush.msra.mxu0 %v1699
      %2650 = vmatmul.f32.gmra.mxu0 %v2551
      %v2651 = vpop.f32.mrf.mxu0
      %v2652 = vadd.f32 0.0, %v2651
      %2653 = vmatmul.f32.gmra.mxu0 %v2554
      %v2654 = vpop.f32.mrf.mxu0
      %v2655 = vadd.f32 0.0, %v2654
      %2656 = vmatmul.f32.gmra.mxu0 %v2556
      %v2657 = vpop.f32.mrf.mxu0
      %v2658 = vadd.f32 0.0, %v2657
      %2659 = vmatmul.f32.gmra.mxu0 %v2559
      %v2660 = vpop.f32.mrf.mxu0
      %v2661 = vadd.f32 0.0, %v2660
      %2662 = vmatmul.f32.gmra.mxu0 %v2561
      %v2663 = vpop.f32.mrf.mxu0
      %v2664 = vadd.f32 0.0, %v2663
      %2665 = vmatmul.f32.gmra.mxu0 %v2564
      %v2666 = vpop.f32.mrf.mxu0
      %v2667 = vadd.f32 0.0, %v2666
      %2668 = vmatmul.f32.gmra.mxu0 %v2566
      %v2669 = vpop.f32.mrf.mxu0
      %v2670 = vadd.f32 0.0, %v2669
      %2671 = vmatmul.f32.gmra.mxu0 %v2569
      %v2672 = vpop.f32.mrf.mxu0
      %v2673 = vadd.f32 0.0, %v2672
      %2674 = vmatmul.f32.gmra.mxu0 %v2571
      %v2675 = vpop.f32.mrf.mxu0
      %v2676 = vadd.f32 0.0, %v2675
      %2677 = vmatmul.f32.gmra.mxu0 %v2574
      %v2678 = vpop.f32.mrf.mxu0
      %v2679 = vadd.f32 0.0, %v2678
      %2680 = vmatmul.f32.gmra.mxu0 %v2576
      %v2681 = vpop.f32.mrf.mxu0
      %v2682 = vadd.f32 0.0, %v2681
      %2683 = vmatmul.f32.gmra.mxu0 %v2579
      %v2684 = vpop.f32.mrf.mxu0
      %v2685 = vadd.f32 0.0, %v2684
      %2686 = vmatmul.f32.gmra.mxu0 %v2581
      %v2687 = vpop.f32.mrf.mxu0
      %v2688 = vadd.f32 0.0, %v2687
      %2689 = vmatmul.f32.gmra.mxu0 %v2584
      %v2690 = vpop.f32.mrf.mxu0
      %v2691 = vadd.f32 0.0, %v2690
      %2692 = vmatmul.f32.gmra.mxu0 %v2586
      %v2693 = vpop.f32.mrf.mxu0
      %v2694 = vadd.f32 0.0, %v2693
      %2695 = vmatmul.f32.gmra.mxu0 %v2589
      %v2696 = vpop.f32.mrf.mxu0
      %v2697 = vadd.f32 0.0, %v2696
      %2698 = vmatmul.f32.gmra.mxu0 %v2591
      %v2699 = vpop.f32.mrf.mxu0
      %v2700 = vadd.f32 0.0, %v2699
      %2701 = vmatmul.f32.gmra.mxu0 %v2594
      %v2702 = vpop.f32.mrf.mxu0
      %v2703 = vadd.f32 0.0, %v2702
      %2704 = vmatmul.f32.gmra.mxu0 %v2596
      %v2705 = vpop.f32.mrf.mxu0
      %v2706 = vadd.f32 0.0, %v2705
      %2707 = vmatmul.f32.gmra.mxu0 %v2599
      %v2708 = vpop.f32.mrf.mxu0
      %v2709 = vadd.f32 0.0, %v2708
      %2710 = vmatmul.f32.gmra.mxu0 %v2601
      %v2711 = vpop.f32.mrf.mxu0
      %v2712 = vadd.f32 0.0, %v2711
      %2713 = vmatmul.f32.gmra.mxu0 %v2604
      %v2714 = vpop.f32.mrf.mxu0
      %v2715 = vadd.f32 0.0, %v2714
      %2716 = vmatmul.f32.gmra.mxu0 %v2606
      %v2717 = vpop.f32.mrf.mxu0
      %v2718 = vadd.f32 0.0, %v2717
      %2719 = vmatmul.f32.gmra.mxu0 %v2609
      %v2720 = vpop.f32.mrf.mxu0
      %v2721 = vadd.f32 0.0, %v2720
      %2722 = vmatmul.f32.gmra.mxu0 %v2611
      %v2723 = vpop.f32.mrf.mxu0
      %v2724 = vadd.f32 0.0, %v2723
      %2725 = vmatmul.f32.gmra.mxu0 %v2614
      %v2726 = vpop.f32.mrf.mxu0
      %v2727 = vadd.f32 0.0, %v2726
      %2728 = vmatmul.f32.gmra.mxu0 %v2616
      %v2729 = vpop.f32.mrf.mxu0
      %v2730 = vadd.f32 0.0, %v2729
      %2731 = vmatmul.f32.gmra.mxu0 %v2619
      %v2732 = vpop.f32.mrf.mxu0
      %v2733 = vadd.f32 0.0, %v2732
      %2734 = vmatmul.f32.gmra.mxu0 %v2621
      %v2735 = vpop.f32.mrf.mxu0
      %v2736 = vadd.f32 0.0, %v2735
      %2737 = vmatmul.f32.gmra.mxu0 %v2624
      %v2738 = vpop.f32.mrf.mxu0
      %v2739 = vadd.f32 0.0, %v2738
      %2740 = vmatmul.f32.gmra.mxu0 %v2626
      %v2741 = vpop.f32.mrf.mxu0
      %v2742 = vadd.f32 0.0, %v2741
      %2743 = vmatmul.f32.gmra.mxu0 %v2629
      %v2744 = vpop.f32.mrf.mxu0
      %v2745 = vadd.f32 0.0, %v2744
      %2746 = vdwg.mxu0
      %v2747 = vadd.f32 %v2376, %v2652
      %v2748 = vadd.f32 %v2379, %v2655
      %v2749 = vadd.f32 %v2382, %v2658
      %v2750 = vadd.f32 %v2385, %v2661
      %v2751 = vadd.f32 %v2388, %v2664
      %v2752 = vadd.f32 %v2391, %v2667
      %v2753 = vadd.f32 %v2394, %v2670
      %v2754 = vadd.f32 %v2397, %v2673
      %v2755 = vadd.f32 %v2400, %v2676
      %v2756 = vadd.f32 %v2403, %v2679
      %v2757 = vadd.f32 %v2406, %v2682
      %v2758 = vadd.f32 %v2409, %v2685
      %v2759 = vadd.f32 %v2412, %v2688
      %v2760 = vadd.f32 %v2415, %v2691
      %v2761 = vadd.f32 %v2418, %v2694
      %v2762 = vadd.f32 %v2421, %v2697
      %v2763 = vadd.f32 %v2424, %v2700
      %v2764 = vadd.f32 %v2427, %v2703
      %v2765 = vadd.f32 %v2430, %v2706
      %v2766 = vadd.f32 %v2433, %v2709
      %v2767 = vadd.f32 %v2436, %v2712
      %v2768 = vadd.f32 %v2439, %v2715
      %v2769 = vadd.f32 %v2442, %v2718
      %v2770 = vadd.f32 %v2445, %v2721
      %v2771 = vadd.f32 %v2448, %v2724
      %v2772 = vadd.f32 %v2451, %v2727
      %v2773 = vadd.f32 %v2454, %v2730
      %v2774 = vadd.f32 %v2457, %v2733
      %v2775 = vadd.f32 %v2460, %v2736
      %v2776 = vadd.f32 %v2463, %v2739
      %v2777 = vadd.f32 %v2466, %v2742
      %v2778 = vadd.f32 %v2469, %v2745
      %v2779 = vld [vmem:[%s5] sm:$0x1]
      %v2780 = vld [vmem:[%s6] sm:$0x1]
      %v2781 = vsel %vm539, %v2747, 0.0
      %v2782 = vsel %vm539, %v2748, 0.0
      %v2783 = vadd.f32 %v2781, %v2782
      %v2784 = vsel %vm539, %v2749, 0.0
      %v2785 = vadd.f32 %v2783, %v2784
      %v2786 = vsel %vm539, %v2750, 0.0
      %v2787 = vadd.f32 %v2785, %v2786
      %v2788 = vsel %vm539, %v2751, 0.0
      %v2789 = vadd.f32 %v2787, %v2788
      %v2790 = vsel %vm539, %v2752, 0.0
      %v2791 = vadd.f32 %v2789, %v2790
      %v2792 = vsel %vm539, %v2753, 0.0
      %v2793 = vadd.f32 %v2791, %v2792
      %v2794 = vsel %vm539, %v2754, 0.0
      %v2795 = vadd.f32 %v2793, %v2794
      %v2796 = vsel %vm539, %v2755, 0.0
      %v2797 = vadd.f32 %v2795, %v2796
      %v2798 = vsel %vm539, %v2756, 0.0
      %v2799 = vadd.f32 %v2797, %v2798
      %v2800 = vsel %vm539, %v2757, 0.0
      %v2801 = vadd.f32 %v2799, %v2800
      %v2802 = vsel %vm539, %v2758, 0.0
      %v2803 = vadd.f32 %v2801, %v2802
      %v2804 = vsel %vm539, %v2759, 0.0
      %v2805 = vadd.f32 %v2803, %v2804
      %v2806 = vsel %vm539, %v2760, 0.0
      %v2807 = vadd.f32 %v2805, %v2806
      %v2808 = vsel %vm539, %v2761, 0.0
      %v2809 = vadd.f32 %v2807, %v2808
      %v2810 = vsel %vm539, %v2762, 0.0
      %v2811 = vadd.f32 %v2809, %v2810
      %v2812 = vsel %vm539, %v2763, 0.0
      %v2813 = vadd.f32 %v2811, %v2812
      %v2814 = vsel %vm539, %v2764, 0.0
      %v2815 = vadd.f32 %v2813, %v2814
      %v2816 = vsel %vm539, %v2765, 0.0
      %v2817 = vadd.f32 %v2815, %v2816
      %v2818 = vsel %vm539, %v2766, 0.0
      %v2819 = vadd.f32 %v2817, %v2818
      %v2820 = vsel %vm539, %v2767, 0.0
      %v2821 = vadd.f32 %v2819, %v2820
      %v2822 = vsel %vm539, %v2768, 0.0
      %v2823 = vadd.f32 %v2821, %v2822
      %v2824 = vsel %vm539, %v2769, 0.0
      %v2825 = vadd.f32 %v2823, %v2824
      %v2826 = vsel %vm539, %v2770, 0.0
      %v2827 = vadd.f32 %v2825, %v2826
      %v2828 = vsel %vm539, %v2771, 0.0
      %v2829 = vadd.f32 %v2827, %v2828
      %v2830 = vsel %vm539, %v2772, 0.0
      %v2831 = vadd.f32 %v2829, %v2830
      %v2832 = vsel %vm539, %v2773, 0.0
      %v2833 = vadd.f32 %v2831, %v2832
      %v2834 = vsel %vm539, %v2774, 0.0
      %v2835 = vadd.f32 %v2833, %v2834
      %v2836 = vsel %vm539, %v2775, 0.0
      %v2837 = vadd.f32 %v2835, %v2836
      %v2838 = vsel %vm539, %v2776, 0.0
      %v2839 = vadd.f32 %v2837, %v2838
      %v2840 = vsel %vm539, %v2777, 0.0
      %v2841 = vadd.f32 %v2839, %v2840
      %v2842 = vsel %vm539, %v2778, 0.0
      %v2843 = vadd.f32 %v2841, %v2842
      %v2844 = vrot.slane %v2843, 4
      %v2845 = vadd.f32 %v2843, %v2844
      %v2846 = vrot.slane %v2845, 2
      %v2847 = vadd.f32 %v2845, %v2846
      %v2848 = vrot.slane %v2847, 1
      %v2849 = vadd.f32 %v2847, %v2848
      %v2850 = vmul.f32 %v2849, 0.00390625
      %v2851 = vmul.f32 %v2747, %v2747
      %v2852 = vmul.f32 %v2748, %v2748
      %v2853 = vmul.f32 %v2749, %v2749
      %v2854 = vmul.f32 %v2750, %v2750
      %v2855 = vmul.f32 %v2751, %v2751
      %v2856 = vmul.f32 %v2752, %v2752
      %v2857 = vmul.f32 %v2753, %v2753
      %v2858 = vmul.f32 %v2754, %v2754
      %v2859 = vmul.f32 %v2755, %v2755
      %v2860 = vmul.f32 %v2756, %v2756
      %v2861 = vmul.f32 %v2757, %v2757
      %v2862 = vmul.f32 %v2758, %v2758
      %v2863 = vmul.f32 %v2759, %v2759
      %v2864 = vmul.f32 %v2760, %v2760
      %v2865 = vmul.f32 %v2761, %v2761
      %v2866 = vmul.f32 %v2762, %v2762
      %v2867 = vmul.f32 %v2763, %v2763
      %v2868 = vmul.f32 %v2764, %v2764
      %v2869 = vmul.f32 %v2765, %v2765
      %v2870 = vmul.f32 %v2766, %v2766
      %v2871 = vmul.f32 %v2767, %v2767
      %v2872 = vmul.f32 %v2768, %v2768
      %v2873 = vmul.f32 %v2769, %v2769
      %v2874 = vmul.f32 %v2770, %v2770
      %v2875 = vmul.f32 %v2771, %v2771
      %v2876 = vmul.f32 %v2772, %v2772
      %v2877 = vmul.f32 %v2773, %v2773
      %v2878 = vmul.f32 %v2774, %v2774
      %v2879 = vmul.f32 %v2775, %v2775
      %v2880 = vmul.f32 %v2776, %v2776
      %v2881 = vmul.f32 %v2777, %v2777
      %v2882 = vmul.f32 %v2778, %v2778
      %v2883 = vsel %vm539, %v2851, 0.0
      %v2884 = vsel %vm539, %v2852, 0.0
      %v2885 = vadd.f32 %v2883, %v2884
      %v2886 = vsel %vm539, %v2853, 0.0
      %v2887 = vadd.f32 %v2885, %v2886
      %v2888 = vsel %vm539, %v2854, 0.0
      %v2889 = vadd.f32 %v2887, %v2888
      %v2890 = vsel %vm539, %v2855, 0.0
      %v2891 = vadd.f32 %v2889, %v2890
      %v2892 = vsel %vm539, %v2856, 0.0
      %v2893 = vadd.f32 %v2891, %v2892
      %v2894 = vsel %vm539, %v2857, 0.0
      %v2895 = vadd.f32 %v2893, %v2894
      %v2896 = vsel %vm539, %v2858, 0.0
      %v2897 = vadd.f32 %v2895, %v2896
      %v2898 = vsel %vm539, %v2859, 0.0
      %v2899 = vadd.f32 %v2897, %v2898
      %v2900 = vsel %vm539, %v2860, 0.0
      %v2901 = vadd.f32 %v2899, %v2900
      %v2902 = vsel %vm539, %v2861, 0.0
      %v2903 = vadd.f32 %v2901, %v2902
      %v2904 = vsel %vm539, %v2862, 0.0
      %v2905 = vadd.f32 %v2903, %v2904
      %v2906 = vsel %vm539, %v2863, 0.0
      %v2907 = vadd.f32 %v2905, %v2906
      %v2908 = vsel %vm539, %v2864, 0.0
      %v2909 = vadd.f32 %v2907, %v2908
      %v2910 = vsel %vm539, %v2865, 0.0
      %v2911 = vadd.f32 %v2909, %v2910
      %v2912 = vsel %vm539, %v2866, 0.0
      %v2913 = vadd.f32 %v2911, %v2912
      %v2914 = vsel %vm539, %v2867, 0.0
      %v2915 = vadd.f32 %v2913, %v2914
      %v2916 = vsel %vm539, %v2868, 0.0
      %v2917 = vadd.f32 %v2915, %v2916
      %v2918 = vsel %vm539, %v2869, 0.0
      %v2919 = vadd.f32 %v2917, %v2918
      %v2920 = vsel %vm539, %v2870, 0.0
      %v2921 = vadd.f32 %v2919, %v2920
      %v2922 = vsel %vm539, %v2871, 0.0
      %v2923 = vadd.f32 %v2921, %v2922
      %v2924 = vsel %vm539, %v2872, 0.0
      %v2925 = vadd.f32 %v2923, %v2924
      %v2926 = vsel %vm539, %v2873, 0.0
      %v2927 = vadd.f32 %v2925, %v2926
      %v2928 = vsel %vm539, %v2874, 0.0
      %v2929 = vadd.f32 %v2927, %v2928
      %v2930 = vsel %vm539, %v2875, 0.0
      %v2931 = vadd.f32 %v2929, %v2930
      %v2932 = vsel %vm539, %v2876, 0.0
      %v2933 = vadd.f32 %v2931, %v2932
      %v2934 = vsel %vm539, %v2877, 0.0
      %v2935 = vadd.f32 %v2933, %v2934
      %v2936 = vsel %vm539, %v2878, 0.0
      %v2937 = vadd.f32 %v2935, %v2936
      %v2938 = vsel %vm539, %v2879, 0.0
      %v2939 = vadd.f32 %v2937, %v2938
      %v2940 = vsel %vm539, %v2880, 0.0
      %v2941 = vadd.f32 %v2939, %v2940
      %v2942 = vsel %vm539, %v2881, 0.0
      %v2943 = vadd.f32 %v2941, %v2942
      %v2944 = vsel %vm539, %v2882, 0.0
      %v2945 = vadd.f32 %v2943, %v2944
      %v2946 = vrot.slane %v2945, 4
      %v2947 = vadd.f32 %v2945, %v2946
      %v2948 = vrot.slane %v2947, 2
      %v2949 = vadd.f32 %v2947, %v2948
      %v2950 = vrot.slane %v2949, 1
      %v2951 = vadd.f32 %v2949, %v2950
      %v2952 = vmul.f32 %v2951, 0.00390625
      %v2953 = vmul.f32 %v2850, %v2850
      %v2954 = vsub.f32 %v2952, %v2953
      %v2955 = vadd.f32 %v2954, 1e-05
      %v2956 = vrsqrt.pop %v2955
      %v2957 = vmul.f32 %v2956, %v2955
      %v2958 = vmul.f32 %v2957, %v2956
      %v2959 = vmul.f32 0.5, %v2958
      %v2960 = vsub.f32 1.5, %v2959
      %v2961 = vmul.f32 %v2956, %v2960
      %vm2962 = vweird.f32 %v2955
      %vm2963 = vweird.f32 %v2956
      %vm2964 = vmor %vm2962, %vm2963
      %v2965 = vsel %vm2964, %v2956, %v2961
      %v2966 = vmul.f32 %v2965, %v2779
      %v2967 = vmul.f32 %v2850, %v2966
      %v2968 = vsub.f32 %v2780, %v2967
      %v2969 = vperm.slane %v2966, 0
      %v2970 = vmul.f32 %v2747, %v2969
      %v2971 = vmul.f32 %v2748, %v2969
      %v2972 = vmul.f32 %v2749, %v2969
      %v2973 = vmul.f32 %v2750, %v2969
      %v2974 = vmul.f32 %v2751, %v2969
      %v2975 = vmul.f32 %v2752, %v2969
      %v2976 = vmul.f32 %v2753, %v2969
      %v2977 = vmul.f32 %v2754, %v2969
      %v2978 = vmul.f32 %v2755, %v2969
      %v2979 = vmul.f32 %v2756, %v2969
      %v2980 = vmul.f32 %v2757, %v2969
      %v2981 = vmul.f32 %v2758, %v2969
      %v2982 = vmul.f32 %v2759, %v2969
      %v2983 = vmul.f32 %v2760, %v2969
      %v2984 = vmul.f32 %v2761, %v2969
      %v2985 = vmul.f32 %v2762, %v2969
      %v2986 = vmul.f32 %v2763, %v2969
      %v2987 = vmul.f32 %v2764, %v2969
      %v2988 = vmul.f32 %v2765, %v2969
      %v2989 = vmul.f32 %v2766, %v2969
      %v2990 = vmul.f32 %v2767, %v2969
      %v2991 = vmul.f32 %v2768, %v2969
      %v2992 = vmul.f32 %v2769, %v2969
      %v2993 = vmul.f32 %v2770, %v2969
      %v2994 = vmul.f32 %v2771, %v2969
      %v2995 = vmul.f32 %v2772, %v2969
      %v2996 = vmul.f32 %v2773, %v2969
      %v2997 = vmul.f32 %v2774, %v2969
      %v2998 = vmul.f32 %v2775, %v2969
      %v2999 = vmul.f32 %v2776, %v2969
      %v3000 = vmul.f32 %v2777, %v2969
      %v3001 = vmul.f32 %v2778, %v2969
      %v3003 = vperm.slane %v2968, 0
      %v3005 = vadd.f32 %v2970, %v3003
      %v3006 = vadd.f32 %v2971, %v3003
      %v3007 = vadd.f32 %v2972, %v3003
      %v3008 = vadd.f32 %v2973, %v3003
      %v3009 = vadd.f32 %v2974, %v3003
      %v3010 = vadd.f32 %v2975, %v3003
      %v3011 = vadd.f32 %v2976, %v3003
      %v3012 = vadd.f32 %v2977, %v3003
      %v3013 = vadd.f32 %v2978, %v3003
      %v3014 = vadd.f32 %v2979, %v3003
      %v3015 = vadd.f32 %v2980, %v3003
      %v3016 = vadd.f32 %v2981, %v3003
      %v3017 = vadd.f32 %v2982, %v3003
      %v3018 = vadd.f32 %v2983, %v3003
      %v3019 = vadd.f32 %v2984, %v3003
      %v3020 = vadd.f32 %v2985, %v3003
      %v3021 = vadd.f32 %v2986, %v3003
      %v3022 = vadd.f32 %v2987, %v3003
      %v3023 = vadd.f32 %v2988, %v3003
      %v3024 = vadd.f32 %v2989, %v3003
      %v3025 = vadd.f32 %v2990, %v3003
      %v3026 = vadd.f32 %v2991, %v3003
      %v3027 = vadd.f32 %v2992, %v3003
      %v3028 = vadd.f32 %v2993, %v3003
      %v3029 = vadd.f32 %v2994, %v3003
      %v3030 = vadd.f32 %v2995, %v3003
      %v3031 = vadd.f32 %v2996, %v3003
      %v3032 = vadd.f32 %v2997, %v3003
      %v3033 = vadd.f32 %v2998, %v3003
      %v3034 = vadd.f32 %v2999, %v3003
      %v3035 = vadd.f32 %v3000, %v3003
      %v3036 = vadd.f32 %v3001, %v3003
      %v3037 = vadd.f32 %v279, %v3005
      %v3038 = vadd.f32 %v280, %v3006
      %v3039 = vadd.f32 %v281, %v3007
      %v3040 = vadd.f32 %v282, %v3008
      %v3041 = vadd.f32 %v283, %v3009
      %v3042 = vadd.f32 %v284, %v3010
      %v3043 = vadd.f32 %v285, %v3011
      %v3044 = vadd.f32 %v286, %v3012
      %v3045 = vadd.f32 %v287, %v3013
      %v3046 = vadd.f32 %v288, %v3014
      %v3047 = vadd.f32 %v289, %v3015
      %v3048 = vadd.f32 %v290, %v3016
      %v3049 = vadd.f32 %v291, %v3017
      %v3050 = vadd.f32 %v292, %v3018
      %v3051 = vadd.f32 %v293, %v3019
      %v3052 = vadd.f32 %v294, %v3020
      %v3053 = vadd.f32 %v295, %v3021
      %v3054 = vadd.f32 %v296, %v3022
      %v3055 = vadd.f32 %v297, %v3023
      %v3056 = vadd.f32 %v298, %v3024
      %v3057 = vadd.f32 %v299, %v3025
      %v3058 = vadd.f32 %v300, %v3026
      %v3059 = vadd.f32 %v301, %v3027
      %v3060 = vadd.f32 %v302, %v3028
      %v3061 = vadd.f32 %v303, %v3029
      %v3062 = vadd.f32 %v304, %v3030
      %v3063 = vadd.f32 %v305, %v3031
      %v3064 = vadd.f32 %v306, %v3032
      %v3065 = vadd.f32 %v307, %v3033
      %v3066 = vadd.f32 %v308, %v3034
      %v3067 = vadd.f32 %v309, %v3035
      %v3068 = vadd.f32 %v310, %v3036
      %3069 = vst.msk [vmem:[%s278] sm:$0xff] %vm539, %v3037
      %3070 = vst.msk [vmem:[%s278 + $0x8] sm:$0xff] %vm539, %v3038
      %3071 = vst.msk [vmem:[%s278 + $0x10] sm:$0xff] %vm539, %v3039
      %3072 = vst.msk [vmem:[%s278 + $0x18] sm:$0xff] %vm539, %v3040
      %3073 = vst.msk [vmem:[%s278 + $0x20] sm:$0xff] %vm539, %v3041
      %3074 = vst.msk [vmem:[%s278 + $0x28] sm:$0xff] %vm539, %v3042
      %3075 = vst.msk [vmem:[%s278 + $0x30] sm:$0xff] %vm539, %v3043
      %3076 = vst.msk [vmem:[%s278 + $0x38] sm:$0xff] %vm539, %v3044
      %3077 = vst.msk [vmem:[%s278 + $0x40] sm:$0xff] %vm539, %v3045
      %3078 = vst.msk [vmem:[%s278 + $0x48] sm:$0xff] %vm539, %v3046
      %3079 = vst.msk [vmem:[%s278 + $0x50] sm:$0xff] %vm539, %v3047
      %3080 = vst.msk [vmem:[%s278 + $0x58] sm:$0xff] %vm539, %v3048
      %3081 = vst.msk [vmem:[%s278 + $0x60] sm:$0xff] %vm539, %v3049
      %3082 = vst.msk [vmem:[%s278 + $0x68] sm:$0xff] %vm539, %v3050
      %3083 = vst.msk [vmem:[%s278 + $0x70] sm:$0xff] %vm539, %v3051
      %3084 = vst.msk [vmem:[%s278 + $0x78] sm:$0xff] %vm539, %v3052
      %3085 = vst.msk [vmem:[%s278 + $0x80] sm:$0xff] %vm539, %v3053
      %3086 = vst.msk [vmem:[%s278 + $0x88] sm:$0xff] %vm539, %v3054
      %3087 = vst.msk [vmem:[%s278 + $0x90] sm:$0xff] %vm539, %v3055
      %3088 = vst.msk [vmem:[%s278 + $0x98] sm:$0xff] %vm539, %v3056
      %3089 = vst.msk [vmem:[%s278 + $0xa0] sm:$0xff] %vm539, %v3057
      %3090 = vst.msk [vmem:[%s278 + $0xa8] sm:$0xff] %vm539, %v3058
      %3091 = vst.msk [vmem:[%s278 + $0xb0] sm:$0xff] %vm539, %v3059
      %3092 = vst.msk [vmem:[%s278 + $0xb8] sm:$0xff] %vm539, %v3060
      %3093 = vst.msk [vmem:[%s278 + $0xc0] sm:$0xff] %vm539, %v3061
      %3094 = vst.msk [vmem:[%s278 + $0xc8] sm:$0xff] %vm539, %v3062
      %3095 = vst.msk [vmem:[%s278 + $0xd0] sm:$0xff] %vm539, %v3063
      %3096 = vst.msk [vmem:[%s278 + $0xd8] sm:$0xff] %vm539, %v3064
      %3097 = vst.msk [vmem:[%s278 + $0xe0] sm:$0xff] %vm539, %v3065
      %3098 = vst.msk [vmem:[%s278 + $0xe8] sm:$0xff] %vm539, %v3066
      %3099 = vst.msk [vmem:[%s278 + $0xf0] sm:$0xff] %vm539, %v3067
      %3100 = vst.msk [vmem:[%s278 + $0xf8] sm:$0xff] %vm539, %v3068
      %p3101 = scmp.lt.s32.totalorder %s18, 1
      %s3102 = scalar_select %p3101, %s18, 1
      %s3103 = smul.addr %s3102, 32
      %s3104 = smul.addr %s3103, 8
      %s3105 = scalar_lea.vmem %s7, %s3104
      // Predicated region
      $region49: #{tpu_custom_call.1} parent=47 // pred_check
        %p3106 = pneg %p188
      $region50: #{tpu_custom_call.1} parent=47 // pred_check_branch
        %3108 = sbr.rel (%p3106) target = $region52
      $region51: #{tpu_custom_call.1} parent=47 // pred_region
        _
      $region52: #{tpu_custom_call.1} parent=47 // pred_fallthru
        _
    $region48: #{tpu_custom_call.1} parent=5 // pred_fallthru
      _
    %p3109 = scmp.le.s32.totalorder 2, %s13
    // Predicated region
    $region53: #{tpu_custom_call.1} parent=5 // pred_check
      %p3110 = pneg %p3109
    $region54: #{tpu_custom_call.1} parent=5 // pred_check_branch
      %3112 = sbr.rel (%p3110) target = $region56
    $region55: #{tpu_custom_call.1} parent=5 // pred_region
      %s3113 = ssub.s32 %s13, 2
      // Predicated region
      $region57: #{tpu_custom_call.1} parent=55 // pred_check
        %p3114 = pneg %p194
      $region58: #{tpu_custom_call.1} parent=55 // pred_check_branch
        %3116 = sbr.rel (%p3114) target = $region60
      $region59: #{tpu_custom_call.1} parent=55 // pred_region
        %p3117 = scmp.lt.s32.totalorder %s19, 1
        %s3118 = scalar_select %p3117, %s19, 1
        %s3119 = smul.addr %s3118, 32
        %s3120 = smul.addr %s3119, 8
        %s3121 = scalar_lea.vmem %s7, %s3120
      $region60: #{tpu_custom_call.1} parent=55 // pred_fallthru
        _
    $region56: #{tpu_custom_call.1} parent=5 // pred_fallthru
      _
  $region6: #{tpu_custom_call.1} parent=0 // loop_footer
    %s17 = sadd.s32 1, %s13
  $region7: #{tpu_custom_call.1} parent=0 // loop_footer_branch
    %12 = sbr.rel target = $region3
  $region8: #{tpu_custom_call.1} parent=0 // loop_exit
    _

// kernel: tpu_custom_call.1
$region0: #{tpu_custom_call.1}
  #allocation0 [shape = 'u32[]', space=smem, size = 0x4, offset = 0x4, fixed_abs, tag = 'smem constant byte address 0x4 - core index']
  #allocation1 [shape = 'u32[72,128]{1,0:T(1,128)}', space=vmem, size = 0x9000, scoped, tag = 'internal scratch']
  %s0 = inlined_call_operand.vmem [shape: f32[2,16,16,4], index: 0, kind: input, shape index: {}]
  %s1 = inlined_call_operand.vmem [shape: f32[3,12,4], index: 1, kind: input, shape index: {}]
  %s2 = inlined_call_operand.vmem [shape: f32[1,4], index: 2, kind: input, shape index: {}]
  %s3 = inlined_call_operand.vmem [shape: f32[1,4], index: 3, kind: input, shape index: {}]
  %s4 = inlined_call_operand.vmem [shape: f32[3,12,4], index: 4, kind: input, shape index: {}]
  %s5 = inlined_call_operand.vmem [shape: f32[1,4], index: 5, kind: input, shape index: {}]
  %s6 = inlined_call_operand.vmem [shape: f32[1,4], index: 6, kind: input, shape index: {}]
  %s7 = inlined_call_operand.vmem [shape: f32[2,16,16,4], index: 7, kind: output, shape index: {}]
  %s8 = sld [smem:[#allocation0]]
  $region61: #{tpu_custom_call.1} parent=0
    _
  %s10 = ssub.s32 1, %s8
  %s11 = scalar_select 0, %s10, %s8
  loop: start=0, step=1, limit=4
  $region2: #{tpu_custom_call.1} parent=0 // loop_pre_header
    _
  $region3: #{tpu_custom_call.1} parent=0 // loop_header
    %s13 = sphi 0, %s17
    %p14 = scmp.ge.s32.totalorder %s13, 4
    %s23 = sphi 0, %s25
    %s26 = sphi 0, %s23
    %s27 = sphi 0, %s26
    %s43 = sphi 0, %s27
    %s47 = sphi 0, %s47
    %s49 = sphi 0, %s47
    %s50 = sphi 0, %s49
    %s64 = sphi 0, %s50
    %s68 = sphi 0, %s68
    %s70 = sphi 0, %s68
    %s71 = sphi 0, %s70
    %s85 = sphi 0, %s71
    %s89 = sphi 0, %s89
    %s91 = sphi 0, %s89
    %s92 = sphi 0, %s91
    %s106 = sphi 0, %s92
    %s110 = sphi 0, %s110
    %s112 = sphi 0, %s110
    %s113 = sphi 0, %s112
    %s127 = sphi 0, %s113
    %s131 = sphi 0, %s131
    %s133 = sphi 0, %s131
    %s134 = sphi 0, %s133
    %s148 = sphi 0, %s134
    %s152 = sphi 0, %s152
    %s154 = sphi 0, %s152
    %s155 = sphi 0, %s154
    %s169 = sphi 0, %s155
    %s175 = sphi 0, %s177
    %s178 = sphi 0, %s175
    %s179 = sphi 0, %s178
    %s195 = sphi 0, %s179
  $region4: #{tpu_custom_call.1} parent=0 // loop_header_branch
    %16 = sbr.rel (%p14) target = $region8
  $region5: #{tpu_custom_call.1} parent=0 // loop_body
    %s18 = ssub.s32 %s13, 1
    %s19 = ssub.s32 %s13, 2
    %s20 = sadd.s32 %s13, 1
    %s21 = ssub.s32 %s13, %s20
    %p22 = scmp.eq.s32.totalorder %s21, 0
    %s24 = sadd.s32 %s23, 1
    %s25 = scalar_select %p22, %s23, %s24
    %p28 = pneg %p22
    %p29 = scmp.eq.s32.totalorder %s13, 1
    %p30 = por %p28, %p29
    %p31 = scmp.ne.s32.totalorder %s23, %s26
    %p32 = scmp.eq.s32.totalorder %s13, 0
    %p33 = por %p31, %p32
    %p34 = scmp.ne.s32.totalorder %s23, %s26
    %p35 = scmp.eq.s32.totalorder %s18, 1
    %p36 = por %p34, %p35
    %p37 = scmp.ne.s32.totalorder %s26, %s27
    %p38 = scmp.eq.s32.totalorder %s18, 0
    %p39 = por %p37, %p38
    %p40 = scmp.ne.s32.totalorder %s26, %s27
    %p41 = scmp.eq.s32.totalorder %s19, 1
    %p42 = por %p40, %p41
    %p44 = scmp.ne.s32.totalorder %s27, %s43
    %p45 = scmp.eq.s32.totalorder %s19, 0
    %p46 = por %p44, %p45
    %s48 = sadd.s32 %s47, 1
    %p51 = scmp.eq.s32.totalorder %s13, 1
    %p52 = scmp.ne.s32.totalorder %s47, %s49
    %p53 = scmp.eq.s32.totalorder %s13, 0
    %p54 = por %p52, %p53
    %p55 = scmp.ne.s32.totalorder %s47, %s49
    %p56 = scmp.eq.s32.totalorder %s18, 1
    %p57 = por %p55, %p56
    %p58 = scmp.ne.s32.totalorder %s49, %s50
    %p59 = scmp.eq.s32.totalorder %s18, 0
    %p60 = por %p58, %p59
    %p61 = scmp.ne.s32.totalorder %s49, %s50
    %p62 = scmp.eq.s32.totalorder %s19, 1
    %p63 = por %p61, %p62
    %p65 = scmp.ne.s32.totalorder %s50, %s64
    %p66 = scmp.eq.s32.totalorder %s19, 0
    %p67 = por %p65, %p66
    %s69 = sadd.s32 %s68, 1
    %p72 = scmp.eq.s32.totalorder %s13, 1
    %p73 = scmp.ne.s32.totalorder %s68, %s70
    %p74 = scmp.eq.s32.totalorder %s13, 0
    %p75 = por %p73, %p74
    %p76 = scmp.ne.s32.totalorder %s68, %s70
    %p77 = scmp.eq.s32.totalorder %s18, 1
    %p78 = por %p76, %p77
    %p79 = scmp.ne.s32.totalorder %s70, %s71
    %p80 = scmp.eq.s32.totalorder %s18, 0
    %p81 = por %p79, %p80
    %p82 = scmp.ne.s32.totalorder %s70, %s71
    %p83 = scmp.eq.s32.totalorder %s19, 1
    %p84 = por %p82, %p83
    %p86 = scmp.ne.s32.totalorder %s71, %s85
    %p87 = scmp.eq.s32.totalorder %s19, 0
    %p88 = por %p86, %p87
    %s90 = sadd.s32 %s89, 1
    %p93 = scmp.eq.s32.totalorder %s13, 1
    %p94 = scmp.ne.s32.totalorder %s89, %s91
    %p95 = scmp.eq.s32.totalorder %s13, 0
    %p96 = por %p94, %p95
    %p97 = scmp.ne.s32.totalorder %s89, %s91
    %p98 = scmp.eq.s32.totalorder %s18, 1
    %p99 = por %p97, %p98
    %p100 = scmp.ne.s32.totalorder %s91, %s92
    %p101 = scmp.eq.s32.totalorder %s18, 0
    %p102 = por %p100, %p101
    %p103 = scmp.ne.s32.totalorder %s91, %s92
    %p104 = scmp.eq.s32.totalorder %s19, 1
    %p105 = por %p103, %p104
    %p107 = scmp.ne.s32.totalorder %s92, %s106
    %p108 = scmp.eq.s32.totalorder %s19, 0
    %p109 = por %p107, %p108
    %s111 = sadd.s32 %s110, 1
    %p114 = scmp.eq.s32.totalorder %s13, 1
    %p115 = scmp.ne.s32.totalorder %s110, %s112
    %p116 = scmp.eq.s32.totalorder %s13, 0
    %p117 = por %p115, %p116
    %p118 = scmp.ne.s32.totalorder %s110, %s112
    %p119 = scmp.eq.s32.totalorder %s18, 1
    %p120 = por %p118, %p119
    %p121 = scmp.ne.s32.totalorder %s112, %s113
    %p122 = scmp.eq.s32.totalorder %s18, 0
    %p123 = por %p121, %p122
    %p124 = scmp.ne.s32.totalorder %s112, %s113
    %p125 = scmp.eq.s32.totalorder %s19, 1
    %p126 = por %p124, %p125
    %p128 = scmp.ne.s32.totalorder %s113, %s127
    %p129 = scmp.eq.s32.totalorder %s19, 0
    %p130 = por %p128, %p129
    %s132 = sadd.s32 %s131, 1
    %p135 = scmp.eq.s32.totalorder %s13, 1
    %p136 = scmp.ne.s32.totalorder %s131, %s133
    %p137 = scmp.eq.s32.totalorder %s13, 0
    %p138 = por %p136, %p137
    %p139 = scmp.ne.s32.totalorder %s131, %s133
    %p140 = scmp.eq.s32.totalorder %s18, 1
    %p141 = por %p139, %p140
    %p142 = scmp.ne.s32.totalorder %s133, %s134
    %p143 = scmp.eq.s32.totalorder %s18, 0
    %p144 = por %p142, %p143
    %p145 = scmp.ne.s32.totalorder %s133, %s134
    %p146 = scmp.eq.s32.totalorder %s19, 1
    %p147 = por %p145, %p146
    %p149 = scmp.ne.s32.totalorder %s134, %s148
    %p150 = scmp.eq.s32.totalorder %s19, 0
    %p151 = por %p149, %p150
    %s153 = sadd.s32 %s152, 1
    %p156 = scmp.eq.s32.totalorder %s13, 1
    %p157 = scmp.ne.s32.totalorder %s152, %s154
    %p158 = scmp.eq.s32.totalorder %s13, 0
    %p159 = por %p157, %p158
    %p160 = scmp.ne.s32.totalorder %s152, %s154
    %p161 = scmp.eq.s32.totalorder %s18, 1
    %p162 = por %p160, %p161
    %p163 = scmp.ne.s32.totalorder %s154, %s155
    %p164 = scmp.eq.s32.totalorder %s18, 0
    %p165 = por %p163, %p164
    %p166 = scmp.ne.s32.totalorder %s154, %s155
    %p167 = scmp.eq.s32.totalorder %s19, 1
    %p168 = por %p166, %p167
    %p170 = scmp.ne.s32.totalorder %s155, %s169
    %p171 = scmp.eq.s32.totalorder %s19, 0
    %p172 = por %p170, %p171
    %s173 = ssub.s32 %s13, %s20
    %p174 = scmp.eq.s32.totalorder %s173, 0
    %s176 = sadd.s32 %s175, 1
    %s177 = scalar_select %p174, %s175, %s176
    %p180 = pneg %p174
    %p181 = scmp.eq.s32.totalorder %s13, 1
    %p182 = por %p180, %p181
    %p183 = scmp.ne.s32.totalorder %s175, %s178
    %p184 = scmp.eq.s32.totalorder %s13, 0
    %p185 = por %p183, %p184
    %p186 = scmp.ne.s32.totalorder %s175, %s178
    %p187 = scmp.eq.s32.totalorder %s18, 1
    %p188 = por %p186, %p187
    %p189 = scmp.ne.s32.totalorder %s178, %s179
    %p190 = scmp.eq.s32.totalorder %s18, 0
    %p191 = por %p189, %p190
    %p192 = scmp.ne.s32.totalorder %s178, %s179
    %p193 = scmp.eq.s32.totalorder %s19, 1
    %p194 = por %p192, %p193
    %p196 = scmp.ne.s32.totalorder %s179, %s195
    %p197 = scmp.eq.s32.totalorder %s19, 0
    %p198 = por %p196, %p197
    %p199 = scmp.le.s32.totalorder 1, %s13
    %p200 = scmp.lt.s32.totalorder %s13, 3
    %p201 = pnand %p199, %p200
    %p202 = pneg %p201
    // Predicated region
    $region9: #{tpu_custom_call.1} parent=5 // pred_check
      _
    $region10: #{tpu_custom_call.1} parent=5 // pred_check_branch
      %204 = sbr.rel (%p201) target = $region12
    $region11: #{tpu_custom_call.1} parent=5 // pred_region
      %s205 = ssub.s32 %s13, 1
      // Predicated region
      $region13: #{tpu_custom_call.1} parent=11 // pred_check
        %p206 = pneg %p60
      $region14: #{tpu_custom_call.1} parent=11 // pred_check_branch
        %208 = sbr.rel (%p206) target = $region16
      $region15: #{tpu_custom_call.1} parent=11 // pred_region
        _
      $region16: #{tpu_custom_call.1} parent=11 // pred_fallthru
        _
      // Predicated region
      $region17: #{tpu_custom_call.1} parent=11 // pred_check
        %p209 = pneg %p81
      $region18: #{tpu_custom_call.1} parent=11 // pred_check_branch
        %211 = sbr.rel (%p209) target = $region20
      $region19: #{tpu_custom_call.1} parent=11 // pred_region
        _
      $region20: #{tpu_custom_call.1} parent=11 // pred_fallthru
        _
      // Predicated region
      $region21: #{tpu_custom_call.1} parent=11 // pred_check
        %p212 = pneg %p102
      $region22: #{tpu_custom_call.1} parent=11 // pred_check_branch
        %214 = sbr.rel (%p212) target = $region24
      $region23: #{tpu_custom_call.1} parent=11 // pred_region
        _
      $region24: #{tpu_custom_call.1} parent=11 // pred_fallthru
        _
      // Predicated region
      $region25: #{tpu_custom_call.1} parent=11 // pred_check
        %p215 = pneg %p123
      $region26: #{tpu_custom_call.1} parent=11 // pred_check_branch
        %217 = sbr.rel (%p215) target = $region28
      $region27: #{tpu_custom_call.1} parent=11 // pred_region
        _
      $region28: #{tpu_custom_call.1} parent=11 // pred_fallthru
        _
      // Predicated region
      $region29: #{tpu_custom_call.1} parent=11 // pred_check
        %p218 = pneg %p144
      $region30: #{tpu_custom_call.1} parent=11 // pred_check_branch
        %220 = sbr.rel (%p218) target = $region32
      $region31: #{tpu_custom_call.1} parent=11 // pred_region
        _
      $region32: #{tpu_custom_call.1} parent=11 // pred_fallthru
        _
      // Predicated region
      $region33: #{tpu_custom_call.1} parent=11 // pred_check
        %p221 = pneg %p165
      $region34: #{tpu_custom_call.1} parent=11 // pred_check_branch
        %223 = sbr.rel (%p221) target = $region36
      $region35: #{tpu_custom_call.1} parent=11 // pred_region
        _
      $region36: #{tpu_custom_call.1} parent=11 // pred_fallthru
        _
    $region12: #{tpu_custom_call.1} parent=5 // pred_fallthru
      _
    %p224 = scmp.lt.s32.totalorder %s13, 2
    // Predicated region
    $region37: #{tpu_custom_call.1} parent=5 // pred_check
      %p225 = pneg %p224
    $region38: #{tpu_custom_call.1} parent=5 // pred_check_branch
      %227 = sbr.rel (%p225) target = $region40
    $region39: #{tpu_custom_call.1} parent=5 // pred_region
      // Predicated region
      $region41: #{tpu_custom_call.1} parent=39 // pred_check
        %p228 = pneg %p33
      $region42: #{tpu_custom_call.1} parent=39 // pred_check_branch
        %230 = sbr.rel (%p228) target = $region44
      $region43: #{tpu_custom_call.1} parent=39 // pred_region
        %p231 = scmp.lt.s32.totalorder %s13, 1
        %s232 = scalar_select %p231, %s13, 1
        %s233 = smul.addr %s232, 32
        %s234 = smul.addr %s233, 8
        %s235 = scalar_lea.vmem %s0, %s234
      $region44: #{tpu_custom_call.1} parent=39 // pred_fallthru
        _
    $region40: #{tpu_custom_call.1} parent=5 // pred_fallthru
      _
    %p236 = scmp.le.s32.totalorder 1, %s13
    %p237 = scmp.lt.s32.totalorder %s13, 3
    %p238 = pnand %p236, %p237
    %p239 = pneg %p238
    // Predicated region
    $region45: #{tpu_custom_call.1} parent=5 // pred_check
      _
    $region46: #{tpu_custom_call.1} parent=5 // pred_check_branch
      %241 = sbr.rel (%p238) target = $region48
    $region47: #{tpu_custom_call.1} parent=5 // pred_region
      %s242 = ssub.s32 %s13, 1
      %p243 = scmp.lt.s32.totalorder %s18, 1
      %s244 = scalar_select %p243, %s18, 1
      %s245 = smul.addr %s244, 32
      %s246 = smul.addr %s245, 8
      %s247 = scalar_lea.vmem %s0, %s246
      %p248 = pneg %p39
      %p249 = pneg %p36
      %p250 = pneg %p60
      %p251 = pneg %p57
      %p252 = pneg %p81
      %p253 = pneg %p78
      %p254 = pneg %p102
      %p255 = pneg %p99
      %p256 = pneg %p123
      %p257 = pneg %p120
      %p258 = pneg %p144
      %p259 = pneg %p141
      %p260 = pneg %p165
      %p261 = pneg %p162
      %p262 = pneg %p191
      %p263 = pneg %p188
      %p264 = scmp.lt.s32.totalorder %s18, 1
      %s265 = scalar_select %p264, %s18, 1
      %s266 = smul.addr %s265, 32
      %s267 = smul.addr %s266, 8
      %s268 = scalar_lea.vmem %s7, %s267
      %p269 = scmp.lt.s32.totalorder %s18, 1
      %s270 = scalar_select %p269, %s18, 1
      %s271 = smul.addr %s270, 32
      %s272 = smul.addr %s271, 8
      %s273 = scalar_lea.vmem %s0, %s272
      %p274 = scmp.lt.s32.totalorder %s18, 1
      %s275 = scalar_select %p274, %s18, 1
      %s276 = smul.addr %s275, 32
      %s277 = smul.addr %s276, 8
      %s278 = scalar_lea.vmem %s7, %s277
      %v279 = vld [vmem:[%s273] sm:$0xff]
      %v280 = vld [vmem:[%s273 + $0x8] sm:$0xff]
      %v281 = vld [vmem:[%s273 + $0x10] sm:$0xff]
      %v282 = vld [vmem:[%s273 + $0x18] sm:$0xff]
      %v283 = vld [vmem:[%s273 + $0x20] sm:$0xff]
      %v284 = vld [vmem:[%s273 + $0x28] sm:$0xff]
      %v285 = vld [vmem:[%s273 + $0x30] sm:$0xff]
      %v286 = vld [vmem:[%s273 + $0x38] sm:$0xff]
      %v287 = vld [vmem:[%s273 + $0x40] sm:$0xff]
      %v288 = vld [vmem:[%s273 + $0x48] sm:$0xff]
      %v289 = vld [vmem:[%s273 + $0x50] sm:$0xff]
      %v290 = vld [vmem:[%s273 + $0x58] sm:$0xff]
      %v291 = vld [vmem:[%s273 + $0x60] sm:$0xff]
      %v292 = vld [vmem:[%s273 + $0x68] sm:$0xff]
      %v293 = vld [vmem:[%s273 + $0x70] sm:$0xff]
      %v294 = vld [vmem:[%s273 + $0x78] sm:$0xff]
      %v295 = vld [vmem:[%s273 + $0x80] sm:$0xff]
      %v296 = vld [vmem:[%s273 + $0x88] sm:$0xff]
      %v297 = vld [vmem:[%s273 + $0x90] sm:$0xff]
      %v298 = vld [vmem:[%s273 + $0x98] sm:$0xff]
      %v299 = vld [vmem:[%s273 + $0xa0] sm:$0xff]
      %v300 = vld [vmem:[%s273 + $0xa8] sm:$0xff]
      %v301 = vld [vmem:[%s273 + $0xb0] sm:$0xff]
      %v302 = vld [vmem:[%s273 + $0xb8] sm:$0xff]
      %v303 = vld [vmem:[%s273 + $0xc0] sm:$0xff]
      %v304 = vld [vmem:[%s273 + $0xc8] sm:$0xff]
      %v305 = vld [vmem:[%s273 + $0xd0] sm:$0xff]
      %v306 = vld [vmem:[%s273 + $0xd8] sm:$0xff]
      %v307 = vld [vmem:[%s273 + $0xe0] sm:$0xff]
      %v308 = vld [vmem:[%s273 + $0xe8] sm:$0xff]
      %v309 = vld [vmem:[%s273 + $0xf0] sm:$0xff]
      %v310 = vld [vmem:[%s273 + $0xf8] sm:$0xff]
      %v311 = vld [vmem:[%s1] sm:$0xff]
      %v312 = vld [vmem:[%s1 + $0x8] sm:$0xf]
      %v313 = vld [vmem:[%s1 + $0x10] sm:$0xff]
      %v314 = vld [vmem:[%s1 + $0x18] sm:$0xf]
      %v315 = vld [vmem:[%s1 + $0x20] sm:$0xff]
      %v316 = vld [vmem:[%s1 + $0x28] sm:$0xf]
      %349 = vrot.lane.b32.xlu0 %v279, 4
      %v350 = vpop.permute.xlu0 %349
      %351 = vrot.lane.b32.xlu0 %v280, 4
      %v352 = vpop.permute.xlu0 %351
      %353 = vrot.lane.b32.xlu0 %v281, 4
      %v354 = vpop.permute.xlu0 %353
      %355 = vrot.lane.b32.xlu0 %v282, 4
      %v356 = vpop.permute.xlu0 %355
      %357 = vrot.lane.b32.xlu0 %v283, 4
      %v358 = vpop.permute.xlu0 %357
      %359 = vrot.lane.b32.xlu0 %v284, 4
      %v360 = vpop.permute.xlu0 %359
      %361 = vrot.lane.b32.xlu0 %v285, 4
      %v362 = vpop.permute.xlu0 %361
      %363 = vrot.lane.b32.xlu0 %v286, 4
      %v364 = vpop.permute.xlu0 %363
      %365 = vrot.lane.b32.xlu0 %v287, 4
      %v366 = vpop.permute.xlu0 %365
      %367 = vrot.lane.b32.xlu0 %v288, 4
      %v368 = vpop.permute.xlu0 %367
      %369 = vrot.lane.b32.xlu0 %v289, 4
      %v370 = vpop.permute.xlu0 %369
      %371 = vrot.lane.b32.xlu0 %v290, 4
      %v372 = vpop.permute.xlu0 %371
      %373 = vrot.lane.b32.xlu0 %v291, 4
      %v374 = vpop.permute.xlu0 %373
      %375 = vrot.lane.b32.xlu0 %v292, 4
      %v376 = vpop.permute.xlu0 %375
      %377 = vrot.lane.b32.xlu0 %v293, 4
      %v378 = vpop.permute.xlu0 %377
      %379 = vrot.lane.b32.xlu0 %v294, 4
      %v380 = vpop.permute.xlu0 %379
      %381 = vrot.lane.b32.xlu0 %v295, 4
      %v382 = vpop.permute.xlu0 %381
      %383 = vrot.lane.b32.xlu0 %v296, 4
      %v384 = vpop.permute.xlu0 %383
      %385 = vrot.lane.b32.xlu0 %v297, 4
      %v386 = vpop.permute.xlu0 %385
      %387 = vrot.lane.b32.xlu0 %v298, 4
      %v388 = vpop.permute.xlu0 %387
      %389 = vrot.lane.b32.xlu0 %v299, 4
      %v390 = vpop.permute.xlu0 %389
      %391 = vrot.lane.b32.xlu0 %v300, 4
      %v392 = vpop.permute.xlu0 %391
      %393 = vrot.lane.b32.xlu0 %v301, 4
      %v394 = vpop.permute.xlu0 %393
      %395 = vrot.lane.b32.xlu0 %v302, 4
      %v396 = vpop.permute.xlu0 %395
      %397 = vrot.lane.b32.xlu0 %v303, 4
      %v398 = vpop.permute.xlu0 %397
      %399 = vrot.lane.b32.xlu0 %v304, 4
      %v400 = vpop.permute.xlu0 %399
      %401 = vrot.lane.b32.xlu0 %v305, 4
      %v402 = vpop.permute.xlu0 %401
      %403 = vrot.lane.b32.xlu0 %v306, 4
      %v404 = vpop.permute.xlu0 %403
      %405 = vrot.lane.b32.xlu0 %v307, 4
      %v406 = vpop.permute.xlu0 %405
      %407 = vrot.lane.b32.xlu0 %v308, 4
      %v408 = vpop.permute.xlu0 %407
      %409 = vrot.lane.b32.xlu0 %v309, 4
      %v410 = vpop.permute.xlu0 %409
      %411 = vrot.lane.b32.xlu0 %v310, 4
      %v412 = vpop.permute.xlu0 %411
      %446 = vrot.lane.b32.xlu0 %v281, 8
      %v447 = vpop.permute.xlu0 %446
      %448 = vrot.lane.b32.xlu0 %v282, 8
      %v449 = vpop.permute.xlu0 %448
      %450 = vrot.lane.b32.xlu0 %v283, 8
      %v451 = vpop.permute.xlu0 %450
      %452 = vrot.lane.b32.xlu0 %v284, 8
      %v453 = vpop.permute.xlu0 %452
      %454 = vrot.lane.b32.xlu0 %v285, 8
      %v455 = vpop.permute.xlu0 %454
      %456 = vrot.lane.b32.xlu0 %v286, 8
      %v457 = vpop.permute.xlu0 %456
      %458 = vrot.lane.b32.xlu0 %v287, 8
      %v459 = vpop.permute.xlu0 %458
      %460 = vrot.lane.b32.xlu0 %v288, 8
      %v461 = vpop.permute.xlu0 %460
      %462 = vrot.lane.b32.xlu0 %v289, 8
      %v463 = vpop.permute.xlu0 %462
      %464 = vrot.lane.b32.xlu0 %v290, 8
      %v465 = vpop.permute.xlu0 %464
      %466 = vrot.lane.b32.xlu0 %v291, 8
      %v467 = vpop.permute.xlu0 %466
      %468 = vrot.lane.b32.xlu0 %v292, 8
      %v469 = vpop.permute.xlu0 %468
      %470 = vrot.lane.b32.xlu0 %v293, 8
      %v471 = vpop.permute.xlu0 %470
      %472 = vrot.lane.b32.xlu0 %v294, 8
      %v473 = vpop.permute.xlu0 %472
      %474 = vrot.lane.b32.xlu0 %v295, 8
      %v475 = vpop.permute.xlu0 %474
      %476 = vrot.lane.b32.xlu0 %v296, 8
      %v477 = vpop.permute.xlu0 %476
      %478 = vrot.lane.b32.xlu0 %v297, 8
      %v479 = vpop.permute.xlu0 %478
      %480 = vrot.lane.b32.xlu0 %v298, 8
      %v481 = vpop.permute.xlu0 %480
      %482 = vrot.lane.b32.xlu0 %v299, 8
      %v483 = vpop.permute.xlu0 %482
      %484 = vrot.lane.b32.xlu0 %v300, 8
      %v485 = vpop.permute.xlu0 %484
      %486 = vrot.lane.b32.xlu0 %v301, 8
      %v487 = vpop.permute.xlu0 %486
      %488 = vrot.lane.b32.xlu0 %v302, 8
      %v489 = vpop.permute.xlu0 %488
      %490 = vrot.lane.b32.xlu0 %v303, 8
      %v491 = vpop.permute.xlu0 %490
      %492 = vrot.lane.b32.xlu0 %v304, 8
      %v493 = vpop.permute.xlu0 %492
      %494 = vrot.lane.b32.xlu0 %v305, 8
      %v495 = vpop.permute.xlu0 %494
      %496 = vrot.lane.b32.xlu0 %v306, 8
      %v497 = vpop.permute.xlu0 %496
      %498 = vrot.lane.b32.xlu0 %v307, 8
      %v499 = vpop.permute.xlu0 %498
      %500 = vrot.lane.b32.xlu0 %v308, 8
      %v501 = vpop.permute.xlu0 %500
      %502 = vrot.lane.b32.xlu0 %v309, 8
      %v503 = vpop.permute.xlu0 %502
      %504 = vrot.lane.b32.xlu0 %v310, 8
      %v505 = vpop.permute.xlu0 %504
      %506 = vrot.lane.b32.xlu0 0.0, 8
      %v507 = vpop.permute.xlu0 %506
      %vm539 = vcmask 31744
      %v540 = vsel %vm539, 0.0, %v350
      %v541 = vsel %vm539, 0.0, %v352
      %v542 = vsel %vm539, %v279, %v354
      %v543 = vsel %vm539, %v280, %v356
      %v544 = vsel %vm539, %v281, %v358
      %v545 = vsel %vm539, %v282, %v360
      %v546 = vsel %vm539, %v283, %v362
      %v547 = vsel %vm539, %v284, %v364
      %v548 = vsel %vm539, %v285, %v366
      %v549 = vsel %vm539, %v286, %v368
      %v550 = vsel %vm539, %v287, %v370
      %v551 = vsel %vm539, %v288, %v372
      %v552 = vsel %vm539, %v289, %v374
      %v553 = vsel %vm539, %v290, %v376
      %v554 = vsel %vm539, %v291, %v378
      %v555 = vsel %vm539, %v292, %v380
      %v556 = vsel %vm539, %v293, %v382
      %v557 = vsel %vm539, %v294, %v384
      %v558 = vsel %vm539, %v295, %v386
      %v559 = vsel %vm539, %v296, %v388
      %v560 = vsel %vm539, %v297, %v390
      %v561 = vsel %vm539, %v298, %v392
      %v562 = vsel %vm539, %v299, %v394
      %v563 = vsel %vm539, %v300, %v396
      %v564 = vsel %vm539, %v301, %v398
      %v565 = vsel %vm539, %v302, %v400
      %v566 = vsel %vm539, %v303, %v402
      %v567 = vsel %vm539, %v304, %v404
      %v568 = vsel %vm539, %v305, %v406
      %v569 = vsel %vm539, %v306, %v408
      %v570 = vsel %vm539, %v307, %v410
      %v571 = vsel %vm539, %v308, %v412
      %vm572 = vcmask 64512
      %v573 = vsel %vm572, %v540, %v447
      %v574 = vsel %vm572, %v541, %v449
      %v575 = vsel %vm572, %v542, %v451
      %v576 = vsel %vm572, %v543, %v453
      %v577 = vsel %vm572, %v544, %v455
      %v578 = vsel %vm572, %v545, %v457
      %v579 = vsel %vm572, %v546, %v459
      %v580 = vsel %vm572, %v547, %v461
      %v581 = vsel %vm572, %v548, %v463
      %v582 = vsel %vm572, %v549, %v465
      %v583 = vsel %vm572, %v550, %v467
      %v584 = vsel %vm572, %v551, %v469
      %v585 = vsel %vm572, %v552, %v471
      %v586 = vsel %vm572, %v553, %v473
      %v587 = vsel %vm572, %v554, %v475
      %v588 = vsel %vm572, %v555, %v477
      %v589 = vsel %vm572, %v556, %v479
      %v590 = vsel %vm572, %v557, %v481
      %v591 = vsel %vm572, %v558, %v483
      %v592 = vsel %vm572, %v559, %v485
      %v593 = vsel %vm572, %v560, %v487
      %v594 = vsel %vm572, %v561, %v489
      %v595 = vsel %vm572, %v562, %v491
      %v596 = vsel %vm572, %v563, %v493
      %v597 = vsel %vm572, %v564, %v495
      %v598 = vsel %vm572, %v565, %v497
      %v599 = vsel %vm572, %v566, %v499
      %v600 = vsel %vm572, %v567, %v501
      %v601 = vsel %vm572, %v568, %v503
      %v602 = vsel %vm572, %v569, %v505
      %v603 = vsel %vm572, %v570, %v507
      %v604 = vsel %vm572, %v571, %v507
      %vm637 = vcmask 1040384
      %v638 = vrot.slane %v573, 7
      %v639 = vrot.slane %v574, 7
      %v640 = vsel %vm637, %v638, %v639
      %v641 = vrot.slane %v575, 7
      %v642 = vrot.slane %v576, 7
      %v643 = vsel %vm637, %v641, %v642
      %v644 = vrot.slane %v577, 7
      %v645 = vrot.slane %v578, 7
      %v646 = vsel %vm637, %v644, %v645
      %v647 = vrot.slane %v579, 7
      %v648 = vrot.slane %v580, 7
      %v649 = vsel %vm637, %v647, %v648
      %v650 = vrot.slane %v581, 7
      %v651 = vrot.slane %v582, 7
      %v652 = vsel %vm637, %v650, %v651
      %v653 = vrot.slane %v583, 7
      %v654 = vrot.slane %v584, 7
      %v655 = vsel %vm637, %v653, %v654
      %v656 = vrot.slane %v585, 7
      %v657 = vrot.slane %v586, 7
      %v658 = vsel %vm637, %v656, %v657
      %v659 = vrot.slane %v587, 7
      %v660 = vrot.slane %v588, 7
      %v661 = vsel %vm637, %v659, %v660
      %v662 = vrot.slane %v589, 7
      %v663 = vrot.slane %v590, 7
      %v664 = vsel %vm637, %v662, %v663
      %v665 = vrot.slane %v591, 7
      %v666 = vrot.slane %v592, 7
      %v667 = vsel %vm637, %v665, %v666
      %v668 = vrot.slane %v593, 7
      %v669 = vrot.slane %v594, 7
      %v670 = vsel %vm637, %v668, %v669
      %v671 = vrot.slane %v595, 7
      %v672 = vrot.slane %v596, 7
      %v673 = vsel %vm637, %v671, %v672
      %v674 = vrot.slane %v597, 7
      %v675 = vrot.slane %v598, 7
      %v676 = vsel %vm637, %v674, %v675
      %v677 = vrot.slane %v599, 7
      %v678 = vrot.slane %v600, 7
      %v679 = vsel %vm637, %v677, %v678
      %v680 = vrot.slane %v601, 7
      %v681 = vrot.slane %v602, 7
      %v682 = vsel %vm637, %v680, %v681
      %v683 = vrot.slane %v603, 7
      %v684 = vrot.slane %v604, 7
      %v685 = vsel %vm637, %v683, %v684
      %v702 = vsel %vm637, 0.0, %v638
      %v703 = vsel %vm637, 0.0, %v641
      %v704 = vsel %vm637, 0.0, %v644
      %v705 = vsel %vm637, 0.0, %v647
      %v706 = vsel %vm637, 0.0, %v650
      %v707 = vsel %vm637, 0.0, %v653
      %v708 = vsel %vm637, 0.0, %v656
      %v709 = vsel %vm637, 0.0, %v659
      %v710 = vsel %vm637, 0.0, %v662
      %v711 = vsel %vm637, 0.0, %v665
      %v712 = vsel %vm637, 0.0, %v668
      %v713 = vsel %vm637, 0.0, %v671
      %v714 = vsel %vm637, 0.0, %v674
      %v715 = vsel %vm637, 0.0, %v677
      %v716 = vsel %vm637, 0.0, %v680
      %v717 = vsel %vm637, 0.0, %v683
      %vm718 = vcmask 97280
      %v720 = vsel %vm718, %v702, 0
      %v722 = vsel %vm718, %v640, 0
      %v725 = vsel %vm718, %v703, 0
      %v727 = vsel %vm718, %v643, 0
      %v730 = vsel %vm718, %v704, 0
      %v732 = vsel %vm718, %v646, 0
      %v735 = vsel %vm718, %v705, 0
      %v737 = vsel %vm718, %v649, 0
      %v740 = vsel %vm718, %v706, 0
      %v742 = vsel %vm718, %v652, 0
      %v745 = vsel %vm718, %v707, 0
      %v747 = vsel %vm718, %v655, 0
      %v750 = vsel %vm718, %v708, 0
      %v752 = vsel %vm718, %v658, 0
      %v755 = vsel %vm718, %v709, 0
      %v757 = vsel %vm718, %v661, 0
      %v760 = vsel %vm718, %v710, 0
      %v762 = vsel %vm718, %v664, 0
      %v765 = vsel %vm718, %v711, 0
      %v767 = vsel %vm718, %v667, 0
      %v770 = vsel %vm718, %v712, 0
      %v772 = vsel %vm718, %v670, 0
      %v775 = vsel %vm718, %v713, 0
      %v777 = vsel %vm718, %v673, 0
      %v780 = vsel %vm718, %v714, 0
      %v782 = vsel %vm718, %v676, 0
      %v785 = vsel %vm718, %v715, 0
      %v787 = vsel %vm718, %v679, 0
      %v790 = vsel %vm718, %v716, 0
      %v792 = vsel %vm718, %v682, 0
      %v795 = vsel %vm718, %v717, 0
      %v797 = vsel %vm718, %v685, 0
      %vm799 = vcmask 1043456
      %v801 = vsel %vm799, %v312, 0
      %803 = vmatpush.msra.mxu0 0.0
      %804 = vmatpush.msra.mxu0 0.0
      %805 = vmatpush.msra.mxu0 0.0
      %806 = vmatpush.msra.mxu0 0.0
      %807 = vmatpush.msra.mxu0 0.0
      %808 = vmatpush.msra.mxu0 0.0
      %809 = vmatpush.msra.mxu0 0.0
      %810 = vmatpush.msra.mxu0 0.0
      %811 = vmatpush.msra.mxu0 0.0
      %812 = vmatpush.msra.mxu0 0.0
      %813 = vmatpush.msra.mxu0 0.0
      %814 = vmatpush.msra.mxu0 0.0
      %815 = vmatpush.msra.mxu0 0.0
      %816 = vmatpush.msra.mxu0 0.0
      %817 = vmatpush.msra.mxu0 %v801
      %818 = vmatpush.msra.mxu0 %v311
      %819 = vmatmul.f32.gmra.mxu0 %v720
      %v820 = vpop.f32.mrf.mxu0
      %v821 = vadd.f32 0.0, %v820
      %822 = vmatmul.f32.gmra.mxu0 %v722
      %v823 = vpop.f32.mrf.mxu0
      %v824 = vadd.f32 0.0, %v823
      %825 = vmatmul.f32.gmra.mxu0 %v725
      %v826 = vpop.f32.mrf.mxu0
      %v827 = vadd.f32 0.0, %v826
      %828 = vmatmul.f32.gmra.mxu0 %v727
      %v829 = vpop.f32.mrf.mxu0
      %v830 = vadd.f32 0.0, %v829
      %831 = vmatmul.f32.gmra.mxu0 %v730
      %v832 = vpop.f32.mrf.mxu0
      %v833 = vadd.f32 0.0, %v832
      %834 = vmatmul.f32.gmra.mxu0 %v732
      %v835 = vpop.f32.mrf.mxu0
      %v836 = vadd.f32 0.0, %v835
      %837 = vmatmul.f32.gmra.mxu0 %v735
      %v838 = vpop.f32.mrf.mxu0
      %v839 = vadd.f32 0.0, %v838
      %840 = vmatmul.f32.gmra.mxu0 %v737
      %v841 = vpop.f32.mrf.mxu0
      %v842 = vadd.f32 0.0, %v841
      %843 = vmatmul.f32.gmra.mxu0 %v740
      %v844 = vpop.f32.mrf.mxu0
      %v845 = vadd.f32 0.0, %v844
      %846 = vmatmul.f32.gmra.mxu0 %v742
      %v847 = vpop.f32.mrf.mxu0
      %v848 = vadd.f32 0.0, %v847
      %849 = vmatmul.f32.gmra.mxu0 %v745
      %v850 = vpop.f32.mrf.mxu0
      %v851 = vadd.f32 0.0, %v850
      %852 = vmatmul.f32.gmra.mxu0 %v747
      %v853 = vpop.f32.mrf.mxu0
      %v854 = vadd.f32 0.0, %v853
      %855 = vmatmul.f32.gmra.mxu0 %v750
      %v856 = vpop.f32.mrf.mxu0
      %v857 = vadd.f32 0.0, %v856
      %858 = vmatmul.f32.gmra.mxu0 %v752
      %v859 = vpop.f32.mrf.mxu0
      %v860 = vadd.f32 0.0, %v859
      %861 = vmatmul.f32.gmra.mxu0 %v755
      %v862 = vpop.f32.mrf.mxu0
      %v863 = vadd.f32 0.0, %v862
      %864 = vmatmul.f32.gmra.mxu0 %v757
      %v865 = vpop.f32.mrf.mxu0
      %v866 = vadd.f32 0.0, %v865
      %867 = vmatmul.f32.gmra.mxu0 %v760
      %v868 = vpop.f32.mrf.mxu0
      %v869 = vadd.f32 0.0, %v868
      %870 = vmatmul.f32.gmra.mxu0 %v762
      %v871 = vpop.f32.mrf.mxu0
      %v872 = vadd.f32 0.0, %v871
      %873 = vmatmul.f32.gmra.mxu0 %v765
      %v874 = vpop.f32.mrf.mxu0
      %v875 = vadd.f32 0.0, %v874
      %876 = vmatmul.f32.gmra.mxu0 %v767
      %v877 = vpop.f32.mrf.mxu0
      %v878 = vadd.f32 0.0, %v877
      %879 = vmatmul.f32.gmra.mxu0 %v770
      %v880 = vpop.f32.mrf.mxu0
      %v881 = vadd.f32 0.0, %v880
      %882 = vmatmul.f32.gmra.mxu0 %v772
      %v883 = vpop.f32.mrf.mxu0
      %v884 = vadd.f32 0.0, %v883
      %885 = vmatmul.f32.gmra.mxu0 %v775
      %v886 = vpop.f32.mrf.mxu0
      %v887 = vadd.f32 0.0, %v886
      %888 = vmatmul.f32.gmra.mxu0 %v777
      %v889 = vpop.f32.mrf.mxu0
      %v890 = vadd.f32 0.0, %v889
      %891 = vmatmul.f32.gmra.mxu0 %v780
      %v892 = vpop.f32.mrf.mxu0
      %v893 = vadd.f32 0.0, %v892
      %894 = vmatmul.f32.gmra.mxu0 %v782
      %v895 = vpop.f32.mrf.mxu0
      %v896 = vadd.f32 0.0, %v895
      %897 = vmatmul.f32.gmra.mxu0 %v785
      %v898 = vpop.f32.mrf.mxu0
      %v899 = vadd.f32 0.0, %v898
      %900 = vmatmul.f32.gmra.mxu0 %v787
      %v901 = vpop.f32.mrf.mxu0
      %v902 = vadd.f32 0.0, %v901
      %903 = vmatmul.f32.gmra.mxu0 %v790
      %v904 = vpop.f32.mrf.mxu0
      %v905 = vadd.f32 0.0, %v904
      %906 = vmatmul.f32.gmra.mxu0 %v792
      %v907 = vpop.f32.mrf.mxu0
      %v908 = vadd.f32 0.0, %v907
      %909 = vmatmul.f32.gmra.mxu0 %v795
      %v910 = vpop.f32.mrf.mxu0
      %v911 = vadd.f32 0.0, %v910
      %912 = vmatmul.f32.gmra.mxu0 %v797
      %v913 = vpop.f32.mrf.mxu0
      %v914 = vadd.f32 0.0, %v913
      %915 = vdwg.mxu0
      %v916 = vsel %vm718, %v573, 0
      %v918 = vsel %vm718, %v574, 0
      %v920 = vsel %vm718, %v575, 0
      %v922 = vsel %vm718, %v576, 0
      %v924 = vsel %vm718, %v577, 0
      %v926 = vsel %vm718, %v578, 0
      %v928 = vsel %vm718, %v579, 0
      %v930 = vsel %vm718, %v580, 0
      %v932 = vsel %vm718, %v581, 0
      %v934 = vsel %vm718, %v582, 0
      %v936 = vsel %vm718, %v583, 0
      %v938 = vsel %vm718, %v584, 0
      %v940 = vsel %vm718, %v585, 0
      %v942 = vsel %vm718, %v586, 0
      %v944 = vsel %vm718, %v587, 0
      %v946 = vsel %vm718, %v588, 0
      %v948 = vsel %vm718, %v589, 0
      %v950 = vsel %vm718, %v590, 0
      %v952 = vsel %vm718, %v591, 0
      %v954 = vsel %vm718, %v592, 0
      %v956 = vsel %vm718, %v593, 0
      %v958 = vsel %vm718, %v594, 0
      %v960 = vsel %vm718, %v595, 0
      %v962 = vsel %vm718, %v596, 0
      %v964 = vsel %vm718, %v597, 0
      %v966 = vsel %vm718, %v598, 0
      %v968 = vsel %vm718, %v599, 0
      %v970 = vsel %vm718, %v600, 0
      %v972 = vsel %vm718, %v601, 0
      %v974 = vsel %vm718, %v602, 0
      %v976 = vsel %vm718, %v603, 0
      %v978 = vsel %vm718, %v604, 0
      %v981 = vsel %vm799, %v314, 0
      %983 = vmatpush.msra.mxu0 0.0
      %984 = vmatpush.msra.mxu0 0.0
      %985 = vmatpush.msra.mxu0 0.0
      %986 = vmatpush.msra.mxu0 0.0
      %987 = vmatpush.msra.mxu0 0.0
      %988 = vmatpush.msra.mxu0 0.0
      %989 = vmatpush.msra.mxu0 0.0
      %990 = vmatpush.msra.mxu0 0.0
      %991 = vmatpush.msra.mxu0 0.0
      %992 = vmatpush.msra.mxu0 0.0
      %993 = vmatpush.msra.mxu0 0.0
      %994 = vmatpush.msra.mxu0 0.0
      %995 = vmatpush.msra.mxu0 0.0
      %996 = vmatpush.msra.mxu0 0.0
      %997 = vmatpush.msra.mxu0 %v981
      %998 = vmatpush.msra.mxu0 %v313
      %999 = vmatmul.f32.gmra.mxu0 %v916
      %v1000 = vpop.f32.mrf.mxu0
      %v1001 = vadd.f32 %v821, %v1000
      %1002 = vmatmul.f32.gmra.mxu0 %v918
      %v1003 = vpop.f32.mrf.mxu0
      %v1004 = vadd.f32 %v824, %v1003
      %1005 = vmatmul.f32.gmra.mxu0 %v920
      %v1006 = vpop.f32.mrf.mxu0
      %v1007 = vadd.f32 %v827, %v1006
      %1008 = vmatmul.f32.gmra.mxu0 %v922
      %v1009 = vpop.f32.mrf.mxu0
      %v1010 = vadd.f32 %v830, %v1009
      %1011 = vmatmul.f32.gmra.mxu0 %v924
      %v1012 = vpop.f32.mrf.mxu0
      %v1013 = vadd.f32 %v833, %v1012
      %1014 = vmatmul.f32.gmra.mxu0 %v926
      %v1015 = vpop.f32.mrf.mxu0
      %v1016 = vadd.f32 %v836, %v1015
      %1017 = vmatmul.f32.gmra.mxu0 %v928
      %v1018 = vpop.f32.mrf.mxu0
      %v1019 = vadd.f32 %v839, %v1018
      %1020 = vmatmul.f32.gmra.mxu0 %v930
      %v1021 = vpop.f32.mrf.mxu0
      %v1022 = vadd.f32 %v842, %v1021
      %1023 = vmatmul.f32.gmra.mxu0 %v932
      %v1024 = vpop.f32.mrf.mxu0
      %v1025 = vadd.f32 %v845, %v1024
      %1026 = vmatmul.f32.gmra.mxu0 %v934
      %v1027 = vpop.f32.mrf.mxu0
      %v1028 = vadd.f32 %v848, %v1027
      %1029 = vmatmul.f32.gmra.mxu0 %v936
      %v1030 = vpop.f32.mrf.mxu0
      %v1031 = vadd.f32 %v851, %v1030
      %1032 = vmatmul.f32.gmra.mxu0 %v938
      %v1033 = vpop.f32.mrf.mxu0
      %v1034 = vadd.f32 %v854, %v1033
      %1035 = vmatmul.f32.gmra.mxu0 %v940
      %v1036 = vpop.f32.mrf.mxu0
      %v1037 = vadd.f32 %v857, %v1036
      %1038 = vmatmul.f32.gmra.mxu0 %v942
      %v1039 = vpop.f32.mrf.mxu0
      %v1040 = vadd.f32 %v860, %v1039
      %1041 = vmatmul.f32.gmra.mxu0 %v944
      %v1042 = vpop.f32.mrf.mxu0
      %v1043 = vadd.f32 %v863, %v1042
      %1044 = vmatmul.f32.gmra.mxu0 %v946
      %v1045 = vpop.f32.mrf.mxu0
      %v1046 = vadd.f32 %v866, %v1045
      %1047 = vmatmul.f32.gmra.mxu0 %v948
      %v1048 = vpop.f32.mrf.mxu0
      %v1049 = vadd.f32 %v869, %v1048
      %1050 = vmatmul.f32.gmra.mxu0 %v950
      %v1051 = vpop.f32.mrf.mxu0
      %v1052 = vadd.f32 %v872, %v1051
      %1053 = vmatmul.f32.gmra.mxu0 %v952
      %v1054 = vpop.f32.mrf.mxu0
      %v1055 = vadd.f32 %v875, %v1054
      %1056 = vmatmul.f32.gmra.mxu0 %v954
      %v1057 = vpop.f32.mrf.mxu0
      %v1058 = vadd.f32 %v878, %v1057
      %1059 = vmatmul.f32.gmra.mxu0 %v956
      %v1060 = vpop.f32.mrf.mxu0
      %v1061 = vadd.f32 %v881, %v1060
      %1062 = vmatmul.f32.gmra.mxu0 %v958
      %v1063 = vpop.f32.mrf.mxu0
      %v1064 = vadd.f32 %v884, %v1063
      %1065 = vmatmul.f32.gmra.mxu0 %v960
      %v1066 = vpop.f32.mrf.mxu0
      %v1067 = vadd.f32 %v887, %v1066
      %1068 = vmatmul.f32.gmra.mxu0 %v962
      %v1069 = vpop.f32.mrf.mxu0
      %v1070 = vadd.f32 %v890, %v1069
      %1071 = vmatmul.f32.gmra.mxu0 %v964
      %v1072 = vpop.f32.mrf.mxu0
      %v1073 = vadd.f32 %v893, %v1072
      %1074 = vmatmul.f32.gmra.mxu0 %v966
      %v1075 = vpop.f32.mrf.mxu0
      %v1076 = vadd.f32 %v896, %v1075
      %1077 = vmatmul.f32.gmra.mxu0 %v968
      %v1078 = vpop.f32.mrf.mxu0
      %v1079 = vadd.f32 %v899, %v1078
      %1080 = vmatmul.f32.gmra.mxu0 %v970
      %v1081 = vpop.f32.mrf.mxu0
      %v1082 = vadd.f32 %v902, %v1081
      %1083 = vmatmul.f32.gmra.mxu0 %v972
      %v1084 = vpop.f32.mrf.mxu0
      %v1085 = vadd.f32 %v905, %v1084
      %1086 = vmatmul.f32.gmra.mxu0 %v974
      %v1087 = vpop.f32.mrf.mxu0
      %v1088 = vadd.f32 %v908, %v1087
      %1089 = vmatmul.f32.gmra.mxu0 %v976
      %v1090 = vpop.f32.mrf.mxu0
      %v1091 = vadd.f32 %v911, %v1090
      %1092 = vmatmul.f32.gmra.mxu0 %v978
      %v1093 = vpop.f32.mrf.mxu0
      %v1094 = vadd.f32 %v914, %v1093
      %1095 = vdwg.mxu0
      %vm1096 = vcmask 1046528
      %v1097 = vrot.slane %v573, 1
      %v1098 = vrot.slane %v574, 1
      %v1099 = vsel %vm1096, %v1097, %v1098
      %v1100 = vrot.slane %v575, 1
      %v1101 = vrot.slane %v576, 1
      %v1102 = vsel %vm1096, %v1100, %v1101
      %v1103 = vrot.slane %v577, 1
      %v1104 = vrot.slane %v578, 1
      %v1105 = vsel %vm1096, %v1103, %v1104
      %v1106 = vrot.slane %v579, 1
      %v1107 = vrot.slane %v580, 1
      %v1108 = vsel %vm1096, %v1106, %v1107
      %v1109 = vrot.slane %v581, 1
      %v1110 = vrot.slane %v582, 1
      %v1111 = vsel %vm1096, %v1109, %v1110
      %v1112 = vrot.slane %v583, 1
      %v1113 = vrot.slane %v584, 1
      %v1114 = vsel %vm1096, %v1112, %v1113
      %v1115 = vrot.slane %v585, 1
      %v1116 = vrot.slane %v586, 1
      %v1117 = vsel %vm1096, %v1115, %v1116
      %v1118 = vrot.slane %v587, 1
      %v1119 = vrot.slane %v588, 1
      %v1120 = vsel %vm1096, %v1118, %v1119
      %v1121 = vrot.slane %v589, 1
      %v1122 = vrot.slane %v590, 1
      %v1123 = vsel %vm1096, %v1121, %v1122
      %v1124 = vrot.slane %v591, 1
      %v1125 = vrot.slane %v592, 1
      %v1126 = vsel %vm1096, %v1124, %v1125
      %v1127 = vrot.slane %v593, 1
      %v1128 = vrot.slane %v594, 1
      %v1129 = vsel %vm1096, %v1127, %v1128
      %v1130 = vrot.slane %v595, 1
      %v1131 = vrot.slane %v596, 1
      %v1132 = vsel %vm1096, %v1130, %v1131
      %v1133 = vrot.slane %v597, 1
      %v1134 = vrot.slane %v598, 1
      %v1135 = vsel %vm1096, %v1133, %v1134
      %v1136 = vrot.slane %v599, 1
      %v1137 = vrot.slane %v600, 1
      %v1138 = vsel %vm1096, %v1136, %v1137
      %v1139 = vrot.slane %v601, 1
      %v1140 = vrot.slane %v602, 1
      %v1141 = vsel %vm1096, %v1139, %v1140
      %v1142 = vrot.slane %v603, 1
      %v1143 = vrot.slane %v604, 1
      %v1144 = vsel %vm1096, %v1142, %v1143
      %v1161 = vsel %vm1096, %v1098, 0.0
      %v1162 = vsel %vm1096, %v1101, 0.0
      %v1163 = vsel %vm1096, %v1104, 0.0
      %v1164 = vsel %vm1096, %v1107, 0.0
      %v1165 = vsel %vm1096, %v1110, 0.0
      %v1166 = vsel %vm1096, %v1113, 0.0
      %v1167 = vsel %vm1096, %v1116, 0.0
      %v1168 = vsel %vm1096, %v1119, 0.0
      %v1169 = vsel %vm1096, %v1122, 0.0
      %v1170 = vsel %vm1096, %v1125, 0.0
      %v1171 = vsel %vm1096, %v1128, 0.0
      %v1172 = vsel %vm1096, %v1131, 0.0
      %v1173 = vsel %vm1096, %v1134, 0.0
      %v1174 = vsel %vm1096, %v1137, 0.0
      %v1175 = vsel %vm1096, %v1140, 0.0
      %v1176 = vsel %vm1096, %v1143, 0.0
      %v1177 = vsel %vm718, %v1099, 0
      %v1180 = vsel %vm718, %v1161, 0
      %v1182 = vsel %vm718, %v1102, 0
      %v1185 = vsel %vm718, %v1162, 0
      %v1187 = vsel %vm718, %v1105, 0
      %v1190 = vsel %vm718, %v1163, 0
      %v1192 = vsel %vm718, %v1108, 0
      %v1195 = vsel %vm718, %v1164, 0
      %v1197 = vsel %vm718, %v1111, 0
      %v1200 = vsel %vm718, %v1165, 0
      %v1202 = vsel %vm718, %v1114, 0
      %v1205 = vsel %vm718, %v1166, 0
      %v1207 = vsel %vm718, %v1117, 0
      %v1210 = vsel %vm718, %v1167, 0
      %v1212 = vsel %vm718, %v1120, 0
      %v1215 = vsel %vm718, %v1168, 0
      %v1217 = vsel %vm718, %v1123, 0
      %v1220 = vsel %vm718, %v1169, 0
      %v1222 = vsel %vm718, %v1126, 0
      %v1225 = vsel %vm718, %v1170, 0
      %v1227 = vsel %vm718, %v1129, 0
      %v1230 = vsel %vm718, %v1171, 0
      %v1232 = vsel %vm718, %v1132, 0
      %v1235 = vsel %vm718, %v1172, 0
      %v1237 = vsel %vm718, %v1135, 0
      %v1240 = vsel %vm718, %v1173, 0
      %v1242 = vsel %vm718, %v1138, 0
      %v1245 = vsel %vm718, %v1174, 0
      %v1247 = vsel %vm718, %v1141, 0
      %v1250 = vsel %vm718, %v1175, 0
      %v1252 = vsel %vm718, %v1144, 0
      %v1255 = vsel %vm718, %v1176, 0
      %v1258 = vsel %vm799, %v316, 0
      %1260 = vmatpush.msra.mxu0 0.0
      %1261 = vmatpush.msra.mxu0 0.0
      %1262 = vmatpush.msra.mxu0 0.0
      %1263 = vmatpush.msra.mxu0 0.0
      %1264 = vmatpush.msra.mxu0 0.0
      %1265 = vmatpush.msra.mxu0 0.0
      %1266 = vmatpush.msra.mxu0 0.0
      %1267 = vmatpush.msra.mxu0 0.0
      %1268 = vmatpush.msra.mxu0 0.0
      %1269 = vmatpush.msra.mxu0 0.0
      %1270 = vmatpush.msra.mxu0 0.0
      %1271 = vmatpush.msra.mxu0 0.0
      %1272 = vmatpush.msra.mxu0 0.0
      %1273 = vmatpush.msra.mxu0 0.0
      %1274 = vmatpush.msra.mxu0 %v1258
      %1275 = vmatpush.msra.mxu0 %v315
      %1276 = vmatmul.f32.gmra.mxu0 %v1177
      %v1277 = vpop.f32.mrf.mxu0
      %v1278 = vadd.f32 0.0, %v1277
      %1279 = vmatmul.f32.gmra.mxu0 %v1180
      %v1280 = vpop.f32.mrf.mxu0
      %v1281 = vadd.f32 0.0, %v1280
      %1282 = vmatmul.f32.gmra.mxu0 %v1182
      %v1283 = vpop.f32.mrf.mxu0
      %v1284 = vadd.f32 0.0, %v1283
      %1285 = vmatmul.f32.gmra.mxu0 %v1185
      %v1286 = vpop.f32.mrf.mxu0
      %v1287 = vadd.f32 0.0, %v1286
      %1288 = vmatmul.f32.gmra.mxu0 %v1187
      %v1289 = vpop.f32.mrf.mxu0
      %v1290 = vadd.f32 0.0, %v1289
      %1291 = vmatmul.f32.gmra.mxu0 %v1190
      %v1292 = vpop.f32.mrf.mxu0
      %v1293 = vadd.f32 0.0, %v1292
      %1294 = vmatmul.f32.gmra.mxu0 %v1192
      %v1295 = vpop.f32.mrf.mxu0
      %v1296 = vadd.f32 0.0, %v1295
      %1297 = vmatmul.f32.gmra.mxu0 %v1195
      %v1298 = vpop.f32.mrf.mxu0
      %v1299 = vadd.f32 0.0, %v1298
      %1300 = vmatmul.f32.gmra.mxu0 %v1197
      %v1301 = vpop.f32.mrf.mxu0
      %v1302 = vadd.f32 0.0, %v1301
      %1303 = vmatmul.f32.gmra.mxu0 %v1200
      %v1304 = vpop.f32.mrf.mxu0
      %v1305 = vadd.f32 0.0, %v1304
      %1306 = vmatmul.f32.gmra.mxu0 %v1202
      %v1307 = vpop.f32.mrf.mxu0
      %v1308 = vadd.f32 0.0, %v1307
      %1309 = vmatmul.f32.gmra.mxu0 %v1205
      %v1310 = vpop.f32.mrf.mxu0
      %v1311 = vadd.f32 0.0, %v1310
      %1312 = vmatmul.f32.gmra.mxu0 %v1207
      %v1313 = vpop.f32.mrf.mxu0
      %v1314 = vadd.f32 0.0, %v1313
      %1315 = vmatmul.f32.gmra.mxu0 %v1210
      %v1316 = vpop.f32.mrf.mxu0
      %v1317 = vadd.f32 0.0, %v1316
      %1318 = vmatmul.f32.gmra.mxu0 %v1212
      %v1319 = vpop.f32.mrf.mxu0
      %v1320 = vadd.f32 0.0, %v1319
      %1321 = vmatmul.f32.gmra.mxu0 %v1215
      %v1322 = vpop.f32.mrf.mxu0
      %v1323 = vadd.f32 0.0, %v1322
      %1324 = vmatmul.f32.gmra.mxu0 %v1217
      %v1325 = vpop.f32.mrf.mxu0
      %v1326 = vadd.f32 0.0, %v1325
      %1327 = vmatmul.f32.gmra.mxu0 %v1220
      %v1328 = vpop.f32.mrf.mxu0
      %v1329 = vadd.f32 0.0, %v1328
      %1330 = vmatmul.f32.gmra.mxu0 %v1222
      %v1331 = vpop.f32.mrf.mxu0
      %v1332 = vadd.f32 0.0, %v1331
      %1333 = vmatmul.f32.gmra.mxu0 %v1225
      %v1334 = vpop.f32.mrf.mxu0
      %v1335 = vadd.f32 0.0, %v1334
      %1336 = vmatmul.f32.gmra.mxu0 %v1227
      %v1337 = vpop.f32.mrf.mxu0
      %v1338 = vadd.f32 0.0, %v1337
      %1339 = vmatmul.f32.gmra.mxu0 %v1230
      %v1340 = vpop.f32.mrf.mxu0
      %v1341 = vadd.f32 0.0, %v1340
      %1342 = vmatmul.f32.gmra.mxu0 %v1232
      %v1343 = vpop.f32.mrf.mxu0
      %v1344 = vadd.f32 0.0, %v1343
      %1345 = vmatmul.f32.gmra.mxu0 %v1235
      %v1346 = vpop.f32.mrf.mxu0
      %v1347 = vadd.f32 0.0, %v1346
      %1348 = vmatmul.f32.gmra.mxu0 %v1237
      %v1349 = vpop.f32.mrf.mxu0
      %v1350 = vadd.f32 0.0, %v1349
      %1351 = vmatmul.f32.gmra.mxu0 %v1240
      %v1352 = vpop.f32.mrf.mxu0
      %v1353 = vadd.f32 0.0, %v1352
      %1354 = vmatmul.f32.gmra.mxu0 %v1242
      %v1355 = vpop.f32.mrf.mxu0
      %v1356 = vadd.f32 0.0, %v1355
      %1357 = vmatmul.f32.gmra.mxu0 %v1245
      %v1358 = vpop.f32.mrf.mxu0
      %v1359 = vadd.f32 0.0, %v1358
      %1360 = vmatmul.f32.gmra.mxu0 %v1247
      %v1361 = vpop.f32.mrf.mxu0
      %v1362 = vadd.f32 0.0, %v1361
      %1363 = vmatmul.f32.gmra.mxu0 %v1250
      %v1364 = vpop.f32.mrf.mxu0
      %v1365 = vadd.f32 0.0, %v1364
      %1366 = vmatmul.f32.gmra.mxu0 %v1252
      %v1367 = vpop.f32.mrf.mxu0
      %v1368 = vadd.f32 0.0, %v1367
      %1369 = vmatmul.f32.gmra.mxu0 %v1255
      %v1370 = vpop.f32.mrf.mxu0
      %v1371 = vadd.f32 0.0, %v1370
      %1372 = vdwg.mxu0
      %v1373 = vadd.f32 %v1001, %v1278
      %v1374 = vadd.f32 %v1004, %v1281
      %v1375 = vadd.f32 %v1007, %v1284
      %v1376 = vadd.f32 %v1010, %v1287
      %v1377 = vadd.f32 %v1013, %v1290
      %v1378 = vadd.f32 %v1016, %v1293
      %v1379 = vadd.f32 %v1019, %v1296
      %v1380 = vadd.f32 %v1022, %v1299
      %v1381 = vadd.f32 %v1025, %v1302
      %v1382 = vadd.f32 %v1028, %v1305
      %v1383 = vadd.f32 %v1031, %v1308
      %v1384 = vadd.f32 %v1034, %v1311
      %v1385 = vadd.f32 %v1037, %v1314
      %v1386 = vadd.f32 %v1040, %v1317
      %v1387 = vadd.f32 %v1043, %v1320
      %v1388 = vadd.f32 %v1046, %v1323
      %v1389 = vadd.f32 %v1049, %v1326
      %v1390 = vadd.f32 %v1052, %v1329
      %v1391 = vadd.f32 %v1055, %v1332
      %v1392 = vadd.f32 %v1058, %v1335
      %v1393 = vadd.f32 %v1061, %v1338
      %v1394 = vadd.f32 %v1064, %v1341
      %v1395 = vadd.f32 %v1067, %v1344
      %v1396 = vadd.f32 %v1070, %v1347
      %v1397 = vadd.f32 %v1073, %v1350
      %v1398 = vadd.f32 %v1076, %v1353
      %v1399 = vadd.f32 %v1079, %v1356
      %v1400 = vadd.f32 %v1082, %v1359
      %v1401 = vadd.f32 %v1085, %v1362
      %v1402 = vadd.f32 %v1088, %v1365
      %v1403 = vadd.f32 %v1091, %v1368
      %v1404 = vadd.f32 %v1094, %v1371
      %v1405 = vld [vmem:[%s2] sm:$0x1]
      %v1406 = vld [vmem:[%s3] sm:$0x1]
      %v1407 = vsel %vm539, %v1373, 0.0
      %v1408 = vsel %vm539, %v1374, 0.0
      %v1409 = vadd.f32 %v1407, %v1408
      %v1410 = vsel %vm539, %v1375, 0.0
      %v1411 = vadd.f32 %v1409, %v1410
      %v1412 = vsel %vm539, %v1376, 0.0
      %v1413 = vadd.f32 %v1411, %v1412
      %v1414 = vsel %vm539, %v1377, 0.0
      %v1415 = vadd.f32 %v1413, %v1414
      %v1416 = vsel %vm539, %v1378, 0.0
      %v1417 = vadd.f32 %v1415, %v1416
      %v1418 = vsel %vm539, %v1379, 0.0
      %v1419 = vadd.f32 %v1417, %v1418
      %v1420 = vsel %vm539, %v1380, 0.0
      %v1421 = vadd.f32 %v1419, %v1420
      %v1422 = vsel %vm539, %v1381, 0.0
      %v1423 = vadd.f32 %v1421, %v1422
      %v1424 = vsel %vm539, %v1382, 0.0
      %v1425 = vadd.f32 %v1423, %v1424
      %v1426 = vsel %vm539, %v1383, 0.0
      %v1427 = vadd.f32 %v1425, %v1426
      %v1428 = vsel %vm539, %v1384, 0.0
      %v1429 = vadd.f32 %v1427, %v1428
      %v1430 = vsel %vm539, %v1385, 0.0
      %v1431 = vadd.f32 %v1429, %v1430
      %v1432 = vsel %vm539, %v1386, 0.0
      %v1433 = vadd.f32 %v1431, %v1432
      %v1434 = vsel %vm539, %v1387, 0.0
      %v1435 = vadd.f32 %v1433, %v1434
      %v1436 = vsel %vm539, %v1388, 0.0
      %v1437 = vadd.f32 %v1435, %v1436
      %v1438 = vsel %vm539, %v1389, 0.0
      %v1439 = vadd.f32 %v1437, %v1438
      %v1440 = vsel %vm539, %v1390, 0.0
      %v1441 = vadd.f32 %v1439, %v1440
      %v1442 = vsel %vm539, %v1391, 0.0
      %v1443 = vadd.f32 %v1441, %v1442
      %v1444 = vsel %vm539, %v1392, 0.0
      %v1445 = vadd.f32 %v1443, %v1444
      %v1446 = vsel %vm539, %v1393, 0.0
      %v1447 = vadd.f32 %v1445, %v1446
      %v1448 = vsel %vm539, %v1394, 0.0
      %v1449 = vadd.f32 %v1447, %v1448
      %v1450 = vsel %vm539, %v1395, 0.0
      %v1451 = vadd.f32 %v1449, %v1450
      %v1452 = vsel %vm539, %v1396, 0.0
      %v1453 = vadd.f32 %v1451, %v1452
      %v1454 = vsel %vm539, %v1397, 0.0
      %v1455 = vadd.f32 %v1453, %v1454
      %v1456 = vsel %vm539, %v1398, 0.0
      %v1457 = vadd.f32 %v1455, %v1456
      %v1458 = vsel %vm539, %v1399, 0.0
      %v1459 = vadd.f32 %v1457, %v1458
      %v1460 = vsel %vm539, %v1400, 0.0
      %v1461 = vadd.f32 %v1459, %v1460
      %v1462 = vsel %vm539, %v1401, 0.0
      %v1463 = vadd.f32 %v1461, %v1462
      %v1464 = vsel %vm539, %v1402, 0.0
      %v1465 = vadd.f32 %v1463, %v1464
      %v1466 = vsel %vm539, %v1403, 0.0
      %v1467 = vadd.f32 %v1465, %v1466
      %v1468 = vsel %vm539, %v1404, 0.0
      %v1469 = vadd.f32 %v1467, %v1468
      %v1470 = vrot.slane %v1469, 4
      %v1471 = vadd.f32 %v1469, %v1470
      %v1472 = vrot.slane %v1471, 2
      %v1473 = vadd.f32 %v1471, %v1472
      %v1474 = vrot.slane %v1473, 1
      %v1475 = vadd.f32 %v1473, %v1474
      %v1476 = vmul.f32 %v1475, 0.00390625
      %v1477 = vmul.f32 %v1373, %v1373
      %v1478 = vmul.f32 %v1374, %v1374
      %v1479 = vmul.f32 %v1375, %v1375
      %v1480 = vmul.f32 %v1376, %v1376
      %v1481 = vmul.f32 %v1377, %v1377
      %v1482 = vmul.f32 %v1378, %v1378
      %v1483 = vmul.f32 %v1379, %v1379
      %v1484 = vmul.f32 %v1380, %v1380
      %v1485 = vmul.f32 %v1381, %v1381
      %v1486 = vmul.f32 %v1382, %v1382
      %v1487 = vmul.f32 %v1383, %v1383
      %v1488 = vmul.f32 %v1384, %v1384
      %v1489 = vmul.f32 %v1385, %v1385
      %v1490 = vmul.f32 %v1386, %v1386
      %v1491 = vmul.f32 %v1387, %v1387
      %v1492 = vmul.f32 %v1388, %v1388
      %v1493 = vmul.f32 %v1389, %v1389
      %v1494 = vmul.f32 %v1390, %v1390
      %v1495 = vmul.f32 %v1391, %v1391
      %v1496 = vmul.f32 %v1392, %v1392
      %v1497 = vmul.f32 %v1393, %v1393
      %v1498 = vmul.f32 %v1394, %v1394
      %v1499 = vmul.f32 %v1395, %v1395
      %v1500 = vmul.f32 %v1396, %v1396
      %v1501 = vmul.f32 %v1397, %v1397
      %v1502 = vmul.f32 %v1398, %v1398
      %v1503 = vmul.f32 %v1399, %v1399
      %v1504 = vmul.f32 %v1400, %v1400
      %v1505 = vmul.f32 %v1401, %v1401
      %v1506 = vmul.f32 %v1402, %v1402
      %v1507 = vmul.f32 %v1403, %v1403
      %v1508 = vmul.f32 %v1404, %v1404
      %v1509 = vsel %vm539, %v1477, 0.0
      %v1510 = vsel %vm539, %v1478, 0.0
      %v1511 = vadd.f32 %v1509, %v1510
      %v1512 = vsel %vm539, %v1479, 0.0
      %v1513 = vadd.f32 %v1511, %v1512
      %v1514 = vsel %vm539, %v1480, 0.0
      %v1515 = vadd.f32 %v1513, %v1514
      %v1516 = vsel %vm539, %v1481, 0.0
      %v1517 = vadd.f32 %v1515, %v1516
      %v1518 = vsel %vm539, %v1482, 0.0
      %v1519 = vadd.f32 %v1517, %v1518
      %v1520 = vsel %vm539, %v1483, 0.0
      %v1521 = vadd.f32 %v1519, %v1520
      %v1522 = vsel %vm539, %v1484, 0.0
      %v1523 = vadd.f32 %v1521, %v1522
      %v1524 = vsel %vm539, %v1485, 0.0
      %v1525 = vadd.f32 %v1523, %v1524
      %v1526 = vsel %vm539, %v1486, 0.0
      %v1527 = vadd.f32 %v1525, %v1526
      %v1528 = vsel %vm539, %v1487, 0.0
      %v1529 = vadd.f32 %v1527, %v1528
      %v1530 = vsel %vm539, %v1488, 0.0
      %v1531 = vadd.f32 %v1529, %v1530
      %v1532 = vsel %vm539, %v1489, 0.0
      %v1533 = vadd.f32 %v1531, %v1532
      %v1534 = vsel %vm539, %v1490, 0.0
      %v1535 = vadd.f32 %v1533, %v1534
      %v1536 = vsel %vm539, %v1491, 0.0
      %v1537 = vadd.f32 %v1535, %v1536
      %v1538 = vsel %vm539, %v1492, 0.0
      %v1539 = vadd.f32 %v1537, %v1538
      %v1540 = vsel %vm539, %v1493, 0.0
      %v1541 = vadd.f32 %v1539, %v1540
      %v1542 = vsel %vm539, %v1494, 0.0
      %v1543 = vadd.f32 %v1541, %v1542
      %v1544 = vsel %vm539, %v1495, 0.0
      %v1545 = vadd.f32 %v1543, %v1544
      %v1546 = vsel %vm539, %v1496, 0.0
      %v1547 = vadd.f32 %v1545, %v1546
      %v1548 = vsel %vm539, %v1497, 0.0
      %v1549 = vadd.f32 %v1547, %v1548
      %v1550 = vsel %vm539, %v1498, 0.0
      %v1551 = vadd.f32 %v1549, %v1550
      %v1552 = vsel %vm539, %v1499, 0.0
      %v1553 = vadd.f32 %v1551, %v1552
      %v1554 = vsel %vm539, %v1500, 0.0
      %v1555 = vadd.f32 %v1553, %v1554
      %v1556 = vsel %vm539, %v1501, 0.0
      %v1557 = vadd.f32 %v1555, %v1556
      %v1558 = vsel %vm539, %v1502, 0.0
      %v1559 = vadd.f32 %v1557, %v1558
      %v1560 = vsel %vm539, %v1503, 0.0
      %v1561 = vadd.f32 %v1559, %v1560
      %v1562 = vsel %vm539, %v1504, 0.0
      %v1563 = vadd.f32 %v1561, %v1562
      %v1564 = vsel %vm539, %v1505, 0.0
      %v1565 = vadd.f32 %v1563, %v1564
      %v1566 = vsel %vm539, %v1506, 0.0
      %v1567 = vadd.f32 %v1565, %v1566
      %v1568 = vsel %vm539, %v1507, 0.0
      %v1569 = vadd.f32 %v1567, %v1568
      %v1570 = vsel %vm539, %v1508, 0.0
      %v1571 = vadd.f32 %v1569, %v1570
      %v1572 = vrot.slane %v1571, 4
      %v1573 = vadd.f32 %v1571, %v1572
      %v1574 = vrot.slane %v1573, 2
      %v1575 = vadd.f32 %v1573, %v1574
      %v1576 = vrot.slane %v1575, 1
      %v1577 = vadd.f32 %v1575, %v1576
      %v1578 = vmul.f32 %v1577, 0.00390625
      %v1579 = vmul.f32 %v1476, %v1476
      %v1580 = vsub.f32 %v1578, %v1579
      %v1581 = vadd.f32 %v1580, 1e-05
      %v1582 = vrsqrt.pop %v1581
      %v1583 = vmul.f32 %v1582, %v1581
      %v1584 = vmul.f32 %v1583, %v1582
      %v1585 = vmul.f32 0.5, %v1584
      %v1586 = vsub.f32 1.5, %v1585
      %v1587 = vmul.f32 %v1582, %v1586
      %vm1588 = vweird.f32 %v1581
      %vm1589 = vweird.f32 %v1582
      %vm1590 = vmor %vm1588, %vm1589
      %v1591 = vsel %vm1590, %v1582, %v1587
      %v1592 = vmul.f32 %v1591, %v1405
      %v1593 = vmul.f32 %v1476, %v1592
      %v1594 = vsub.f32 %v1406, %v1593
      %v1595 = vperm.slane %v1592, 0
      %v1596 = vmul.f32 %v1373, %v1595
      %v1597 = vmul.f32 %v1374, %v1595
      %v1598 = vmul.f32 %v1375, %v1595
      %v1599 = vmul.f32 %v1376, %v1595
      %v1600 = vmul.f32 %v1377, %v1595
      %v1601 = vmul.f32 %v1378, %v1595
      %v1602 = vmul.f32 %v1379, %v1595
      %v1603 = vmul.f32 %v1380, %v1595
      %v1604 = vmul.f32 %v1381, %v1595
      %v1605 = vmul.f32 %v1382, %v1595
      %v1606 = vmul.f32 %v1383, %v1595
      %v1607 = vmul.f32 %v1384, %v1595
      %v1608 = vmul.f32 %v1385, %v1595
      %v1609 = vmul.f32 %v1386, %v1595
      %v1610 = vmul.f32 %v1387, %v1595
      %v1611 = vmul.f32 %v1388, %v1595
      %v1612 = vmul.f32 %v1389, %v1595
      %v1613 = vmul.f32 %v1390, %v1595
      %v1614 = vmul.f32 %v1391, %v1595
      %v1615 = vmul.f32 %v1392, %v1595
      %v1616 = vmul.f32 %v1393, %v1595
      %v1617 = vmul.f32 %v1394, %v1595
      %v1618 = vmul.f32 %v1395, %v1595
      %v1619 = vmul.f32 %v1396, %v1595
      %v1620 = vmul.f32 %v1397, %v1595
      %v1621 = vmul.f32 %v1398, %v1595
      %v1622 = vmul.f32 %v1399, %v1595
      %v1623 = vmul.f32 %v1400, %v1595
      %v1624 = vmul.f32 %v1401, %v1595
      %v1625 = vmul.f32 %v1402, %v1595
      %v1626 = vmul.f32 %v1403, %v1595
      %v1627 = vmul.f32 %v1404, %v1595
      %v1629 = vperm.slane %v1594, 0
      %v1631 = vadd.f32 %v1596, %v1629
      %v1632 = vadd.f32 %v1597, %v1629
      %v1633 = vadd.f32 %v1598, %v1629
      %v1634 = vadd.f32 %v1599, %v1629
      %v1635 = vadd.f32 %v1600, %v1629
      %v1636 = vadd.f32 %v1601, %v1629
      %v1637 = vadd.f32 %v1602, %v1629
      %v1638 = vadd.f32 %v1603, %v1629
      %v1639 = vadd.f32 %v1604, %v1629
      %v1640 = vadd.f32 %v1605, %v1629
      %v1641 = vadd.f32 %v1606, %v1629
      %v1642 = vadd.f32 %v1607, %v1629
      %v1643 = vadd.f32 %v1608, %v1629
      %v1644 = vadd.f32 %v1609, %v1629
      %v1645 = vadd.f32 %v1610, %v1629
      %v1646 = vadd.f32 %v1611, %v1629
      %v1647 = vadd.f32 %v1612, %v1629
      %v1648 = vadd.f32 %v1613, %v1629
      %v1649 = vadd.f32 %v1614, %v1629
      %v1650 = vadd.f32 %v1615, %v1629
      %v1651 = vadd.f32 %v1616, %v1629
      %v1652 = vadd.f32 %v1617, %v1629
      %v1653 = vadd.f32 %v1618, %v1629
      %v1654 = vadd.f32 %v1619, %v1629
      %v1655 = vadd.f32 %v1620, %v1629
      %v1656 = vadd.f32 %v1621, %v1629
      %v1657 = vadd.f32 %v1622, %v1629
      %v1658 = vadd.f32 %v1623, %v1629
      %v1659 = vadd.f32 %v1624, %v1629
      %v1660 = vadd.f32 %v1625, %v1629
      %v1661 = vadd.f32 %v1626, %v1629
      %v1662 = vadd.f32 %v1627, %v1629
      %v1663 = vmax.f32 %v1631, 0.0
      %v1664 = vmax.f32 %v1632, 0.0
      %v1665 = vmax.f32 %v1633, 0.0
      %v1666 = vmax.f32 %v1634, 0.0
      %v1667 = vmax.f32 %v1635, 0.0
      %v1668 = vmax.f32 %v1636, 0.0
      %v1669 = vmax.f32 %v1637, 0.0
      %v1670 = vmax.f32 %v1638, 0.0
      %v1671 = vmax.f32 %v1639, 0.0
      %v1672 = vmax.f32 %v1640, 0.0
      %v1673 = vmax.f32 %v1641, 0.0
      %v1674 = vmax.f32 %v1642, 0.0
      %v1675 = vmax.f32 %v1643, 0.0
      %v1676 = vmax.f32 %v1644, 0.0
      %v1677 = vmax.f32 %v1645, 0.0
      %v1678 = vmax.f32 %v1646, 0.0
      %v1679 = vmax.f32 %v1647, 0.0
      %v1680 = vmax.f32 %v1648, 0.0
      %v1681 = vmax.f32 %v1649, 0.0
      %v1682 = vmax.f32 %v1650, 0.0
      %v1683 = vmax.f32 %v1651, 0.0
      %v1684 = vmax.f32 %v1652, 0.0
      %v1685 = vmax.f32 %v1653, 0.0
      %v1686 = vmax.f32 %v1654, 0.0
      %v1687 = vmax.f32 %v1655, 0.0
      %v1688 = vmax.f32 %v1656, 0.0
      %v1689 = vmax.f32 %v1657, 0.0
      %v1690 = vmax.f32 %v1658, 0.0
      %v1691 = vmax.f32 %v1659, 0.0
      %v1692 = vmax.f32 %v1660, 0.0
      %v1693 = vmax.f32 %v1661, 0.0
      %v1694 = vmax.f32 %v1662, 0.0
      %v1695 = vld [vmem:[%s4] sm:$0xff]
      %v1696 = vld [vmem:[%s4 + $0x8] sm:$0xf]
      %v1697 = vld [vmem:[%s4 + $0x10] sm:$0xff]
      %v1698 = vld [vmem:[%s4 + $0x18] sm:$0xf]
      %v1699 = vld [vmem:[%s4 + $0x20] sm:$0xff]
      %v1700 = vld [vmem:[%s4 + $0x28] sm:$0xf]
      %1733 = vrot.lane.b32.xlu0 %v1663, 4
      %v1734 = vpop.permute.xlu0 %1733
      %1735 = vrot.lane.b32.xlu0 %v1664, 4
      %v1736 = vpop.permute.xlu0 %1735
      %1737 = vrot.lane.b32.xlu0 %v1665, 4
      %v1738 = vpop.permute.xlu0 %1737
      %1739 = vrot.lane.b32.xlu0 %v1666, 4
      %v1740 = vpop.permute.xlu0 %1739
      %1741 = vrot.lane.b32.xlu0 %v1667, 4
      %v1742 = vpop.permute.xlu0 %1741
      %1743 = vrot.lane.b32.xlu0 %v1668, 4
      %v1744 = vpop.permute.xlu0 %1743
      %1745 = vrot.lane.b32.xlu0 %v1669, 4
      %v1746 = vpop.permute.xlu0 %1745
      %1747 = vrot.lane.b32.xlu0 %v1670, 4
      %v1748 = vpop.permute.xlu0 %1747
      %1749 = vrot.lane.b32.xlu0 %v1671, 4
      %v1750 = vpop.permute.xlu0 %1749
      %1751 = vrot.lane.b32.xlu0 %v1672, 4
      %v1752 = vpop.permute.xlu0 %1751
      %1753 = vrot.lane.b32.xlu0 %v1673, 4
      %v1754 = vpop.permute.xlu0 %1753
      %1755 = vrot.lane.b32.xlu0 %v1674, 4
      %v1756 = vpop.permute.xlu0 %1755
      %1757 = vrot.lane.b32.xlu0 %v1675, 4
      %v1758 = vpop.permute.xlu0 %1757
      %1759 = vrot.lane.b32.xlu0 %v1676, 4
      %v1760 = vpop.permute.xlu0 %1759
      %1761 = vrot.lane.b32.xlu0 %v1677, 4
      %v1762 = vpop.permute.xlu0 %1761
      %1763 = vrot.lane.b32.xlu0 %v1678, 4
      %v1764 = vpop.permute.xlu0 %1763
      %1765 = vrot.lane.b32.xlu0 %v1679, 4
      %v1766 = vpop.permute.xlu0 %1765
      %1767 = vrot.lane.b32.xlu0 %v1680, 4
      %v1768 = vpop.permute.xlu0 %1767
      %1769 = vrot.lane.b32.xlu0 %v1681, 4
      %v1770 = vpop.permute.xlu0 %1769
      %1771 = vrot.lane.b32.xlu0 %v1682, 4
      %v1772 = vpop.permute.xlu0 %1771
      %1773 = vrot.lane.b32.xlu0 %v1683, 4
      %v1774 = vpop.permute.xlu0 %1773
      %1775 = vrot.lane.b32.xlu0 %v1684, 4
      %v1776 = vpop.permute.xlu0 %1775
      %1777 = vrot.lane.b32.xlu0 %v1685, 4
      %v1778 = vpop.permute.xlu0 %1777
      %1779 = vrot.lane.b32.xlu0 %v1686, 4
      %v1780 = vpop.permute.xlu0 %1779
      %1781 = vrot.lane.b32.xlu0 %v1687, 4
      %v1782 = vpop.permute.xlu0 %1781
      %1783 = vrot.lane.b32.xlu0 %v1688, 4
      %v1784 = vpop.permute.xlu0 %1783
      %1785 = vrot.lane.b32.xlu0 %v1689, 4
      %v1786 = vpop.permute.xlu0 %1785
      %1787 = vrot.lane.b32.xlu0 %v1690, 4
      %v1788 = vpop.permute.xlu0 %1787
      %1789 = vrot.lane.b32.xlu0 %v1691, 4
      %v1790 = vpop.permute.xlu0 %1789
      %1791 = vrot.lane.b32.xlu0 %v1692, 4
      %v1792 = vpop.permute.xlu0 %1791
      %1793 = vrot.lane.b32.xlu0 %v1693, 4
      %v1794 = vpop.permute.xlu0 %1793
      %1795 = vrot.lane.b32.xlu0 %v1694, 4
      %v1796 = vpop.permute.xlu0 %1795
      %1829 = vrot.lane.b32.xlu0 %v1665, 8
      %v1830 = vpop.permute.xlu0 %1829
      %1831 = vrot.lane.b32.xlu0 %v1666, 8
      %v1832 = vpop.permute.xlu0 %1831
      %1833 = vrot.lane.b32.xlu0 %v1667, 8
      %v1834 = vpop.permute.xlu0 %1833
      %1835 = vrot.lane.b32.xlu0 %v1668, 8
      %v1836 = vpop.permute.xlu0 %1835
      %1837 = vrot.lane.b32.xlu0 %v1669, 8
      %v1838 = vpop.permute.xlu0 %1837
      %1839 = vrot.lane.b32.xlu0 %v1670, 8
      %v1840 = vpop.permute.xlu0 %1839
      %1841 = vrot.lane.b32.xlu0 %v1671, 8
      %v1842 = vpop.permute.xlu0 %1841
      %1843 = vrot.lane.b32.xlu0 %v1672, 8
      %v1844 = vpop.permute.xlu0 %1843
      %1845 = vrot.lane.b32.xlu0 %v1673, 8
      %v1846 = vpop.permute.xlu0 %1845
      %1847 = vrot.lane.b32.xlu0 %v1674, 8
      %v1848 = vpop.permute.xlu0 %1847
      %1849 = vrot.lane.b32.xlu0 %v1675, 8
      %v1850 = vpop.permute.xlu0 %1849
      %1851 = vrot.lane.b32.xlu0 %v1676, 8
      %v1852 = vpop.permute.xlu0 %1851
      %1853 = vrot.lane.b32.xlu0 %v1677, 8
      %v1854 = vpop.permute.xlu0 %1853
      %1855 = vrot.lane.b32.xlu0 %v1678, 8
      %v1856 = vpop.permute.xlu0 %1855
      %1857 = vrot.lane.b32.xlu0 %v1679, 8
      %v1858 = vpop.permute.xlu0 %1857
      %1859 = vrot.lane.b32.xlu0 %v1680, 8
      %v1860 = vpop.permute.xlu0 %1859
      %1861 = vrot.lane.b32.xlu0 %v1681, 8
      %v1862 = vpop.permute.xlu0 %1861
      %1863 = vrot.lane.b32.xlu0 %v1682, 8
      %v1864 = vpop.permute.xlu0 %1863
      %1865 = vrot.lane.b32.xlu0 %v1683, 8
      %v1866 = vpop.permute.xlu0 %1865
      %1867 = vrot.lane.b32.xlu0 %v1684, 8
      %v1868 = vpop.permute.xlu0 %1867
      %1869 = vrot.lane.b32.xlu0 %v1685, 8
      %v1870 = vpop.permute.xlu0 %1869
      %1871 = vrot.lane.b32.xlu0 %v1686, 8
      %v1872 = vpop.permute.xlu0 %1871
      %1873 = vrot.lane.b32.xlu0 %v1687, 8
      %v1874 = vpop.permute.xlu0 %1873
      %1875 = vrot.lane.b32.xlu0 %v1688, 8
      %v1876 = vpop.permute.xlu0 %1875
      %1877 = vrot.lane.b32.xlu0 %v1689, 8
      %v1878 = vpop.permute.xlu0 %1877
      %1879 = vrot.lane.b32.xlu0 %v1690, 8
      %v1880 = vpop.permute.xlu0 %1879
      %1881 = vrot.lane.b32.xlu0 %v1691, 8
      %v1882 = vpop.permute.xlu0 %1881
      %1883 = vrot.lane.b32.xlu0 %v1692, 8
      %v1884 = vpop.permute.xlu0 %1883
      %1885 = vrot.lane.b32.xlu0 %v1693, 8
      %v1886 = vpop.permute.xlu0 %1885
      %1887 = vrot.lane.b32.xlu0 %v1694, 8
      %v1888 = vpop.permute.xlu0 %1887
      %v1919 = vsel %vm539, 0.0, %v1734
      %v1920 = vsel %vm539, 0.0, %v1736
      %v1921 = vsel %vm539, %v1663, %v1738
      %v1922 = vsel %vm539, %v1664, %v1740
      %v1923 = vsel %vm539, %v1665, %v1742
      %v1924 = vsel %vm539, %v1666, %v1744
      %v1925 = vsel %vm539, %v1667, %v1746
      %v1926 = vsel %vm539, %v1668, %v1748
      %v1927 = vsel %vm539, %v1669, %v1750
      %v1928 = vsel %vm539, %v1670, %v1752
      %v1929 = vsel %vm539, %v1671, %v1754
      %v1930 = vsel %vm539, %v1672, %v1756
      %v1931 = vsel %vm539, %v1673, %v1758
      %v1932 = vsel %vm539, %v1674, %v1760
      %v1933 = vsel %vm539, %v1675, %v1762
      %v1934 = vsel %vm539, %v1676, %v1764
      %v1935 = vsel %vm539, %v1677, %v1766
      %v1936 = vsel %vm539, %v1678, %v1768
      %v1937 = vsel %vm539, %v1679, %v1770
      %v1938 = vsel %vm539, %v1680, %v1772
      %v1939 = vsel %vm539, %v1681, %v1774
      %v1940 = vsel %vm539, %v1682, %v1776
      %v1941 = vsel %vm539, %v1683, %v1778
      %v1942 = vsel %vm539, %v1684, %v1780
      %v1943 = vsel %vm539, %v1685, %v1782
      %v1944 = vsel %vm539, %v1686, %v1784
      %v1945 = vsel %vm539, %v1687, %v1786
      %v1946 = vsel %vm539, %v1688, %v1788
      %v1947 = vsel %vm539, %v1689, %v1790
      %v1948 = vsel %vm539, %v1690, %v1792
      %v1949 = vsel %vm539, %v1691, %v1794
      %v1950 = vsel %vm539, %v1692, %v1796
      %v1951 = vsel %vm572, %v1919, %v1830
      %v1952 = vsel %vm572, %v1920, %v1832
      %v1953 = vsel %vm572, %v1921, %v1834
      %v1954 = vsel %vm572, %v1922, %v1836
      %v1955 = vsel %vm572, %v1923, %v1838
      %v1956 = vsel %vm572, %v1924, %v1840
      %v1957 = vsel %vm572, %v1925, %v1842
      %v1958 = vsel %vm572, %v1926, %v1844
      %v1959 = vsel %vm572, %v1927, %v1846
      %v1960 = vsel %vm572, %v1928, %v1848
      %v1961 = vsel %vm572, %v1929, %v1850
      %v1962 = vsel %vm572, %v1930, %v1852
      %v1963 = vsel %vm572, %v1931, %v1854
      %v1964 = vsel %vm572, %v1932, %v1856
      %v1965 = vsel %vm572, %v1933, %v1858
      %v1966 = vsel %vm572, %v1934, %v1860
      %v1967 = vsel %vm572, %v1935, %v1862
      %v1968 = vsel %vm572, %v1936, %v1864
      %v1969 = vsel %vm572, %v1937, %v1866
      %v1970 = vsel %vm572, %v1938, %v1868
      %v1971 = vsel %vm572, %v1939, %v1870
      %v1972 = vsel %vm572, %v1940, %v1872
      %v1973 = vsel %vm572, %v1941, %v1874
      %v1974 = vsel %vm572, %v1942, %v1876
      %v1975 = vsel %vm572, %v1943, %v1878
      %v1976 = vsel %vm572, %v1944, %v1880
      %v1977 = vsel %vm572, %v1945, %v1882
      %v1978 = vsel %vm572, %v1946, %v1884
      %v1979 = vsel %vm572, %v1947, %v1886
      %v1980 = vsel %vm572, %v1948, %v1888
      %v1981 = vsel %vm572, %v1949, %v507
      %v1982 = vsel %vm572, %v1950, %v507
      %v2015 = vrot.slane %v1951, 7
      %v2016 = vrot.slane %v1952, 7
      %v2017 = vsel %vm637, %v2015, %v2016
      %v2018 = vrot.slane %v1953, 7
      %v2019 = vrot.slane %v1954, 7
      %v2020 = vsel %vm637, %v2018, %v2019
      %v2021 = vrot.slane %v1955, 7
      %v2022 = vrot.slane %v1956, 7
      %v2023 = vsel %vm637, %v2021, %v2022
      %v2024 = vrot.slane %v1957, 7
      %v2025 = vrot.slane %v1958, 7
      %v2026 = vsel %vm637, %v2024, %v2025
      %v2027 = vrot.slane %v1959, 7
      %v2028 = vrot.slane %v1960, 7
      %v2029 = vsel %vm637, %v2027, %v2028
      %v2030 = vrot.slane %v1961, 7
      %v2031 = vrot.slane %v1962, 7
      %v2032 = vsel %vm637, %v2030, %v2031
      %v2033 = vrot.slane %v1963, 7
      %v2034 = vrot.slane %v1964, 7
      %v2035 = vsel %vm637, %v2033, %v2034
      %v2036 = vrot.slane %v1965, 7
      %v2037 = vrot.slane %v1966, 7
      %v2038 = vsel %vm637, %v2036, %v2037
      %v2039 = vrot.slane %v1967, 7
      %v2040 = vrot.slane %v1968, 7
      %v2041 = vsel %vm637, %v2039, %v2040
      %v2042 = vrot.slane %v1969, 7
      %v2043 = vrot.slane %v1970, 7
      %v2044 = vsel %vm637, %v2042, %v2043
      %v2045 = vrot.slane %v1971, 7
      %v2046 = vrot.slane %v1972, 7
      %v2047 = vsel %vm637, %v2045, %v2046
      %v2048 = vrot.slane %v1973, 7
      %v2049 = vrot.slane %v1974, 7
      %v2050 = vsel %vm637, %v2048, %v2049
      %v2051 = vrot.slane %v1975, 7
      %v2052 = vrot.slane %v1976, 7
      %v2053 = vsel %vm637, %v2051, %v2052
      %v2054 = vrot.slane %v1977, 7
      %v2055 = vrot.slane %v1978, 7
      %v2056 = vsel %vm637, %v2054, %v2055
      %v2057 = vrot.slane %v1979, 7
      %v2058 = vrot.slane %v1980, 7
      %v2059 = vsel %vm637, %v2057, %v2058
      %v2060 = vrot.slane %v1981, 7
      %v2061 = vrot.slane %v1982, 7
      %v2062 = vsel %vm637, %v2060, %v2061
      %v2079 = vsel %vm637, 0.0, %v2015
      %v2080 = vsel %vm637, 0.0, %v2018
      %v2081 = vsel %vm637, 0.0, %v2021
      %v2082 = vsel %vm637, 0.0, %v2024
      %v2083 = vsel %vm637, 0.0, %v2027
      %v2084 = vsel %vm637, 0.0, %v2030
      %v2085 = vsel %vm637, 0.0, %v2033
      %v2086 = vsel %vm637, 0.0, %v2036
      %v2087 = vsel %vm637, 0.0, %v2039
      %v2088 = vsel %vm637, 0.0, %v2042
      %v2089 = vsel %vm637, 0.0, %v2045
      %v2090 = vsel %vm637, 0.0, %v2048
      %v2091 = vsel %vm637, 0.0, %v2051
      %v2092 = vsel %vm637, 0.0, %v2054
      %v2093 = vsel %vm637, 0.0, %v2057
      %v2094 = vsel %vm637, 0.0, %v2060
      %v2096 = vsel %vm718, %v2079, 0
      %v2098 = vsel %vm718, %v2017, 0
      %v2101 = vsel %vm718, %v2080, 0
      %v2103 = vsel %vm718, %v2020, 0
      %v2106 = vsel %vm718, %v2081, 0
      %v2108 = vsel %vm718, %v2023, 0
      %v2111 = vsel %vm718, %v2082, 0
      %v2113 = vsel %vm718, %v2026, 0
      %v2116 = vsel %vm718, %v2083, 0
      %v2118 = vsel %vm718, %v2029, 0
      %v2121 = vsel %vm718, %v2084, 0
      %v2123 = vsel %vm718, %v2032, 0
      %v2126 = vsel %vm718, %v2085, 0
      %v2128 = vsel %vm718, %v2035, 0
      %v2131 = vsel %vm718, %v2086, 0
      %v2133 = vsel %vm718, %v2038, 0
      %v2136 = vsel %vm718, %v2087, 0
      %v2138 = vsel %vm718, %v2041, 0
      %v2141 = vsel %vm718, %v2088, 0
      %v2143 = vsel %vm718, %v2044, 0
      %v2146 = vsel %vm718, %v2089, 0
      %v2148 = vsel %vm718, %v2047, 0
      %v2151 = vsel %vm718, %v2090, 0
      %v2153 = vsel %vm718, %v2050, 0
      %v2156 = vsel %vm718, %v2091, 0
      %v2158 = vsel %vm718, %v2053, 0
      %v2161 = vsel %vm718, %v2092, 0
      %v2163 = vsel %vm718, %v2056, 0
      %v2166 = vsel %vm718, %v2093, 0
      %v2168 = vsel %vm718, %v2059, 0
      %v2171 = vsel %vm718, %v2094, 0
      %v2173 = vsel %vm718, %v2062, 0
      %v2176 = vsel %vm799, %v1696, 0
      %2178 = vmatpush.msra.mxu0 0.0
      %2179 = vmatpush.msra.mxu0 0.0
      %2180 = vmatpush.msra.mxu0 0.0
      %2181 = vmatpush.msra.mxu0 0.0
      %2182 = vmatpush.msra.mxu0 0.0
      %2183 = vmatpush.msra.mxu0 0.0
      %2184 = vmatpush.msra.mxu0 0.0
      %2185 = vmatpush.msra.mxu0 0.0
      %2186 = vmatpush.msra.mxu0 0.0
      %2187 = vmatpush.msra.mxu0 0.0
      %2188 = vmatpush.msra.mxu0 0.0
      %2189 = vmatpush.msra.mxu0 0.0
      %2190 = vmatpush.msra.mxu0 0.0
      %2191 = vmatpush.msra.mxu0 0.0
      %2192 = vmatpush.msra.mxu0 %v2176
      %2193 = vmatpush.msra.mxu0 %v1695
      %2194 = vmatmul.f32.gmra.mxu0 %v2096
      %v2195 = vpop.f32.mrf.mxu0
      %v2196 = vadd.f32 0.0, %v2195
      %2197 = vmatmul.f32.gmra.mxu0 %v2098
      %v2198 = vpop.f32.mrf.mxu0
      %v2199 = vadd.f32 0.0, %v2198
      %2200 = vmatmul.f32.gmra.mxu0 %v2101
      %v2201 = vpop.f32.mrf.mxu0
      %v2202 = vadd.f32 0.0, %v2201
      %2203 = vmatmul.f32.gmra.mxu0 %v2103
      %v2204 = vpop.f32.mrf.mxu0
      %v2205 = vadd.f32 0.0, %v2204
      %2206 = vmatmul.f32.gmra.mxu0 %v2106
      %v2207 = vpop.f32.mrf.mxu0
      %v2208 = vadd.f32 0.0, %v2207
      %2209 = vmatmul.f32.gmra.mxu0 %v2108
      %v2210 = vpop.f32.mrf.mxu0
      %v2211 = vadd.f32 0.0, %v2210
      %2212 = vmatmul.f32.gmra.mxu0 %v2111
      %v2213 = vpop.f32.mrf.mxu0
      %v2214 = vadd.f32 0.0, %v2213
      %2215 = vmatmul.f32.gmra.mxu0 %v2113
      %v2216 = vpop.f32.mrf.mxu0
      %v2217 = vadd.f32 0.0, %v2216
      %2218 = vmatmul.f32.gmra.mxu0 %v2116
      %v2219 = vpop.f32.mrf.mxu0
      %v2220 = vadd.f32 0.0, %v2219
      %2221 = vmatmul.f32.gmra.mxu0 %v2118
      %v2222 = vpop.f32.mrf.mxu0
      %v2223 = vadd.f32 0.0, %v2222
      %2224 = vmatmul.f32.gmra.mxu0 %v2121
      %v2225 = vpop.f32.mrf.mxu0
      %v2226 = vadd.f32 0.0, %v2225
      %2227 = vmatmul.f32.gmra.mxu0 %v2123
      %v2228 = vpop.f32.mrf.mxu0
      %v2229 = vadd.f32 0.0, %v2228
      %2230 = vmatmul.f32.gmra.mxu0 %v2126
      %v2231 = vpop.f32.mrf.mxu0
      %v2232 = vadd.f32 0.0, %v2231
      %2233 = vmatmul.f32.gmra.mxu0 %v2128
      %v2234 = vpop.f32.mrf.mxu0
      %v2235 = vadd.f32 0.0, %v2234
      %2236 = vmatmul.f32.gmra.mxu0 %v2131
      %v2237 = vpop.f32.mrf.mxu0
      %v2238 = vadd.f32 0.0, %v2237
      %2239 = vmatmul.f32.gmra.mxu0 %v2133
      %v2240 = vpop.f32.mrf.mxu0
      %v2241 = vadd.f32 0.0, %v2240
      %2242 = vmatmul.f32.gmra.mxu0 %v2136
      %v2243 = vpop.f32.mrf.mxu0
      %v2244 = vadd.f32 0.0, %v2243
      %2245 = vmatmul.f32.gmra.mxu0 %v2138
      %v2246 = vpop.f32.mrf.mxu0
      %v2247 = vadd.f32 0.0, %v2246
      %2248 = vmatmul.f32.gmra.mxu0 %v2141
      %v2249 = vpop.f32.mrf.mxu0
      %v2250 = vadd.f32 0.0, %v2249
      %2251 = vmatmul.f32.gmra.mxu0 %v2143
      %v2252 = vpop.f32.mrf.mxu0
      %v2253 = vadd.f32 0.0, %v2252
      %2254 = vmatmul.f32.gmra.mxu0 %v2146
      %v2255 = vpop.f32.mrf.mxu0
      %v2256 = vadd.f32 0.0, %v2255
      %2257 = vmatmul.f32.gmra.mxu0 %v2148
      %v2258 = vpop.f32.mrf.mxu0
      %v2259 = vadd.f32 0.0, %v2258
      %2260 = vmatmul.f32.gmra.mxu0 %v2151
      %v2261 = vpop.f32.mrf.mxu0
      %v2262 = vadd.f32 0.0, %v2261
      %2263 = vmatmul.f32.gmra.mxu0 %v2153
      %v2264 = vpop.f32.mrf.mxu0
      %v2265 = vadd.f32 0.0, %v2264
      %2266 = vmatmul.f32.gmra.mxu0 %v2156
      %v2267 = vpop.f32.mrf.mxu0
      %v2268 = vadd.f32 0.0, %v2267
      %2269 = vmatmul.f32.gmra.mxu0 %v2158
      %v2270 = vpop.f32.mrf.mxu0
      %v2271 = vadd.f32 0.0, %v2270
      %2272 = vmatmul.f32.gmra.mxu0 %v2161
      %v2273 = vpop.f32.mrf.mxu0
      %v2274 = vadd.f32 0.0, %v2273
      %2275 = vmatmul.f32.gmra.mxu0 %v2163
      %v2276 = vpop.f32.mrf.mxu0
      %v2277 = vadd.f32 0.0, %v2276
      %2278 = vmatmul.f32.gmra.mxu0 %v2166
      %v2279 = vpop.f32.mrf.mxu0
      %v2280 = vadd.f32 0.0, %v2279
      %2281 = vmatmul.f32.gmra.mxu0 %v2168
      %v2282 = vpop.f32.mrf.mxu0
      %v2283 = vadd.f32 0.0, %v2282
      %2284 = vmatmul.f32.gmra.mxu0 %v2171
      %v2285 = vpop.f32.mrf.mxu0
      %v2286 = vadd.f32 0.0, %v2285
      %2287 = vmatmul.f32.gmra.mxu0 %v2173
      %v2288 = vpop.f32.mrf.mxu0
      %v2289 = vadd.f32 0.0, %v2288
      %2290 = vdwg.mxu0
      %v2291 = vsel %vm718, %v1951, 0
      %v2293 = vsel %vm718, %v1952, 0
      %v2295 = vsel %vm718, %v1953, 0
      %v2297 = vsel %vm718, %v1954, 0
      %v2299 = vsel %vm718, %v1955, 0
      %v2301 = vsel %vm718, %v1956, 0
      %v2303 = vsel %vm718, %v1957, 0
      %v2305 = vsel %vm718, %v1958, 0
      %v2307 = vsel %vm718, %v1959, 0
      %v2309 = vsel %vm718, %v1960, 0
      %v2311 = vsel %vm718, %v1961, 0
      %v2313 = vsel %vm718, %v1962, 0
      %v2315 = vsel %vm718, %v1963, 0
      %v2317 = vsel %vm718, %v1964, 0
      %v2319 = vsel %vm718, %v1965, 0
      %v2321 = vsel %vm718, %v1966, 0
      %v2323 = vsel %vm718, %v1967, 0
      %v2325 = vsel %vm718, %v1968, 0
      %v2327 = vsel %vm718, %v1969, 0
      %v2329 = vsel %vm718, %v1970, 0
      %v2331 = vsel %vm718, %v1971, 0
      %v2333 = vsel %vm718, %v1972, 0
      %v2335 = vsel %vm718, %v1973, 0
      %v2337 = vsel %vm718, %v1974, 0
      %v2339 = vsel %vm718, %v1975, 0
      %v2341 = vsel %vm718, %v1976, 0
      %v2343 = vsel %vm718, %v1977, 0
      %v2345 = vsel %vm718, %v1978, 0
      %v2347 = vsel %vm718, %v1979, 0
      %v2349 = vsel %vm718, %v1980, 0
      %v2351 = vsel %vm718, %v1981, 0
      %v2353 = vsel %vm718, %v1982, 0
      %v2356 = vsel %vm799, %v1698, 0
      %2358 = vmatpush.msra.mxu0 0.0
      %2359 = vmatpush.msra.mxu0 0.0
      %2360 = vmatpush.msra.mxu0 0.0
      %2361 = vmatpush.msra.mxu0 0.0
      %2362 = vmatpush.msra.mxu0 0.0
      %2363 = vmatpush.msra.mxu0 0.0
      %2364 = vmatpush.msra.mxu0 0.0
      %2365 = vmatpush.msra.mxu0 0.0
      %2366 = vmatpush.msra.mxu0 0.0
      %2367 = vmatpush.msra.mxu0 0.0
      %2368 = vmatpush.msra.mxu0 0.0
      %2369 = vmatpush.msra.mxu0 0.0
      %2370 = vmatpush.msra.mxu0 0.0
      %2371 = vmatpush.msra.mxu0 0.0
      %2372 = vmatpush.msra.mxu0 %v2356
      %2373 = vmatpush.msra.mxu0 %v1697
      %2374 = vmatmul.f32.gmra.mxu0 %v2291
      %v2375 = vpop.f32.mrf.mxu0
      %v2376 = vadd.f32 %v2196, %v2375
      %2377 = vmatmul.f32.gmra.mxu0 %v2293
      %v2378 = vpop.f32.mrf.mxu0
      %v2379 = vadd.f32 %v2199, %v2378
      %2380 = vmatmul.f32.gmra.mxu0 %v2295
      %v2381 = vpop.f32.mrf.mxu0
      %v2382 = vadd.f32 %v2202, %v2381
      %2383 = vmatmul.f32.gmra.mxu0 %v2297
      %v2384 = vpop.f32.mrf.mxu0
      %v2385 = vadd.f32 %v2205, %v2384
      %2386 = vmatmul.f32.gmra.mxu0 %v2299
      %v2387 = vpop.f32.mrf.mxu0
      %v2388 = vadd.f32 %v2208, %v2387
      %2389 = vmatmul.f32.gmra.mxu0 %v2301
      %v2390 = vpop.f32.mrf.mxu0
      %v2391 = vadd.f32 %v2211, %v2390
      %2392 = vmatmul.f32.gmra.mxu0 %v2303
      %v2393 = vpop.f32.mrf.mxu0
      %v2394 = vadd.f32 %v2214, %v2393
      %2395 = vmatmul.f32.gmra.mxu0 %v2305
      %v2396 = vpop.f32.mrf.mxu0
      %v2397 = vadd.f32 %v2217, %v2396
      %2398 = vmatmul.f32.gmra.mxu0 %v2307
      %v2399 = vpop.f32.mrf.mxu0
      %v2400 = vadd.f32 %v2220, %v2399
      %2401 = vmatmul.f32.gmra.mxu0 %v2309
      %v2402 = vpop.f32.mrf.mxu0
      %v2403 = vadd.f32 %v2223, %v2402
      %2404 = vmatmul.f32.gmra.mxu0 %v2311
      %v2405 = vpop.f32.mrf.mxu0
      %v2406 = vadd.f32 %v2226, %v2405
      %2407 = vmatmul.f32.gmra.mxu0 %v2313
      %v2408 = vpop.f32.mrf.mxu0
      %v2409 = vadd.f32 %v2229, %v2408
      %2410 = vmatmul.f32.gmra.mxu0 %v2315
      %v2411 = vpop.f32.mrf.mxu0
      %v2412 = vadd.f32 %v2232, %v2411
      %2413 = vmatmul.f32.gmra.mxu0 %v2317
      %v2414 = vpop.f32.mrf.mxu0
      %v2415 = vadd.f32 %v2235, %v2414
      %2416 = vmatmul.f32.gmra.mxu0 %v2319
      %v2417 = vpop.f32.mrf.mxu0
      %v2418 = vadd.f32 %v2238, %v2417
      %2419 = vmatmul.f32.gmra.mxu0 %v2321
      %v2420 = vpop.f32.mrf.mxu0
      %v2421 = vadd.f32 %v2241, %v2420
      %2422 = vmatmul.f32.gmra.mxu0 %v2323
      %v2423 = vpop.f32.mrf.mxu0
      %v2424 = vadd.f32 %v2244, %v2423
      %2425 = vmatmul.f32.gmra.mxu0 %v2325
      %v2426 = vpop.f32.mrf.mxu0
      %v2427 = vadd.f32 %v2247, %v2426
      %2428 = vmatmul.f32.gmra.mxu0 %v2327
      %v2429 = vpop.f32.mrf.mxu0
      %v2430 = vadd.f32 %v2250, %v2429
      %2431 = vmatmul.f32.gmra.mxu0 %v2329
      %v2432 = vpop.f32.mrf.mxu0
      %v2433 = vadd.f32 %v2253, %v2432
      %2434 = vmatmul.f32.gmra.mxu0 %v2331
      %v2435 = vpop.f32.mrf.mxu0
      %v2436 = vadd.f32 %v2256, %v2435
      %2437 = vmatmul.f32.gmra.mxu0 %v2333
      %v2438 = vpop.f32.mrf.mxu0
      %v2439 = vadd.f32 %v2259, %v2438
      %2440 = vmatmul.f32.gmra.mxu0 %v2335
      %v2441 = vpop.f32.mrf.mxu0
      %v2442 = vadd.f32 %v2262, %v2441
      %2443 = vmatmul.f32.gmra.mxu0 %v2337
      %v2444 = vpop.f32.mrf.mxu0
      %v2445 = vadd.f32 %v2265, %v2444
      %2446 = vmatmul.f32.gmra.mxu0 %v2339
      %v2447 = vpop.f32.mrf.mxu0
      %v2448 = vadd.f32 %v2268, %v2447
      %2449 = vmatmul.f32.gmra.mxu0 %v2341
      %v2450 = vpop.f32.mrf.mxu0
      %v2451 = vadd.f32 %v2271, %v2450
      %2452 = vmatmul.f32.gmra.mxu0 %v2343
      %v2453 = vpop.f32.mrf.mxu0
      %v2454 = vadd.f32 %v2274, %v2453
      %2455 = vmatmul.f32.gmra.mxu0 %v2345
      %v2456 = vpop.f32.mrf.mxu0
      %v2457 = vadd.f32 %v2277, %v2456
      %2458 = vmatmul.f32.gmra.mxu0 %v2347
      %v2459 = vpop.f32.mrf.mxu0
      %v2460 = vadd.f32 %v2280, %v2459
      %2461 = vmatmul.f32.gmra.mxu0 %v2349
      %v2462 = vpop.f32.mrf.mxu0
      %v2463 = vadd.f32 %v2283, %v2462
      %2464 = vmatmul.f32.gmra.mxu0 %v2351
      %v2465 = vpop.f32.mrf.mxu0
      %v2466 = vadd.f32 %v2286, %v2465
      %2467 = vmatmul.f32.gmra.mxu0 %v2353
      %v2468 = vpop.f32.mrf.mxu0
      %v2469 = vadd.f32 %v2289, %v2468
      %2470 = vdwg.mxu0
      %v2471 = vrot.slane %v1951, 1
      %v2472 = vrot.slane %v1952, 1
      %v2473 = vsel %vm1096, %v2471, %v2472
      %v2474 = vrot.slane %v1953, 1
      %v2475 = vrot.slane %v1954, 1
      %v2476 = vsel %vm1096, %v2474, %v2475
      %v2477 = vrot.slane %v1955, 1
      %v2478 = vrot.slane %v1956, 1
      %v2479 = vsel %vm1096, %v2477, %v2478
      %v2480 = vrot.slane %v1957, 1
      %v2481 = vrot.slane %v1958, 1
      %v2482 = vsel %vm1096, %v2480, %v2481
      %v2483 = vrot.slane %v1959, 1
      %v2484 = vrot.slane %v1960, 1
      %v2485 = vsel %vm1096, %v2483, %v2484
      %v2486 = vrot.slane %v1961, 1
      %v2487 = vrot.slane %v1962, 1
      %v2488 = vsel %vm1096, %v2486, %v2487
      %v2489 = vrot.slane %v1963, 1
      %v2490 = vrot.slane %v1964, 1
      %v2491 = vsel %vm1096, %v2489, %v2490
      %v2492 = vrot.slane %v1965, 1
      %v2493 = vrot.slane %v1966, 1
      %v2494 = vsel %vm1096, %v2492, %v2493
      %v2495 = vrot.slane %v1967, 1
      %v2496 = vrot.slane %v1968, 1
      %v2497 = vsel %vm1096, %v2495, %v2496
      %v2498 = vrot.slane %v1969, 1
      %v2499 = vrot.slane %v1970, 1
      %v2500 = vsel %vm1096, %v2498, %v2499
      %v2501 = vrot.slane %v1971, 1
      %v2502 = vrot.slane %v1972, 1
      %v2503 = vsel %vm1096, %v2501, %v2502
      %v2504 = vrot.slane %v1973, 1
      %v2505 = vrot.slane %v1974, 1
      %v2506 = vsel %vm1096, %v2504, %v2505
      %v2507 = vrot.slane %v1975, 1
      %v2508 = vrot.slane %v1976, 1
      %v2509 = vsel %vm1096, %v2507, %v2508
      %v2510 = vrot.slane %v1977, 1
      %v2511 = vrot.slane %v1978, 1
      %v2512 = vsel %vm1096, %v2510, %v2511
      %v2513 = vrot.slane %v1979, 1
      %v2514 = vrot.slane %v1980, 1
      %v2515 = vsel %vm1096, %v2513, %v2514
      %v2516 = vrot.slane %v1981, 1
      %v2517 = vrot.slane %v1982, 1
      %v2518 = vsel %vm1096, %v2516, %v2517
      %v2535 = vsel %vm1096, %v2472, 0.0
      %v2536 = vsel %vm1096, %v2475, 0.0
      %v2537 = vsel %vm1096, %v2478, 0.0
      %v2538 = vsel %vm1096, %v2481, 0.0
      %v2539 = vsel %vm1096, %v2484, 0.0
      %v2540 = vsel %vm1096, %v2487, 0.0
      %v2541 = vsel %vm1096, %v2490, 0.0
      %v2542 = vsel %vm1096, %v2493, 0.0
      %v2543 = vsel %vm1096, %v2496, 0.0
      %v2544 = vsel %vm1096, %v2499, 0.0
      %v2545 = vsel %vm1096, %v2502, 0.0
      %v2546 = vsel %vm1096, %v2505, 0.0
      %v2547 = vsel %vm1096, %v2508, 0.0
      %v2548 = vsel %vm1096, %v2511, 0.0
      %v2549 = vsel %vm1096, %v2514, 0.0
      %v2550 = vsel %vm1096, %v2517, 0.0
      %v2551 = vsel %vm718, %v2473, 0
      %v2554 = vsel %vm718, %v2535, 0
      %v2556 = vsel %vm718, %v2476, 0
      %v2559 = vsel %vm718, %v2536, 0
      %v2561 = vsel %vm718, %v2479, 0
      %v2564 = vsel %vm718, %v2537, 0
      %v2566 = vsel %vm718, %v2482, 0
      %v2569 = vsel %vm718, %v2538, 0
      %v2571 = vsel %vm718, %v2485, 0
      %v2574 = vsel %vm718, %v2539, 0
      %v2576 = vsel %vm718, %v2488, 0
      %v2579 = vsel %vm718, %v2540, 0
      %v2581 = vsel %vm718, %v2491, 0
      %v2584 = vsel %vm718, %v2541, 0
      %v2586 = vsel %vm718, %v2494, 0
      %v2589 = vsel %vm718, %v2542, 0
      %v2591 = vsel %vm718, %v2497, 0
      %v2594 = vsel %vm718, %v2543, 0
      %v2596 = vsel %vm718, %v2500, 0
      %v2599 = vsel %vm718, %v2544, 0
      %v2601 = vsel %vm718, %v2503, 0
      %v2604 = vsel %vm718, %v2545, 0
      %v2606 = vsel %vm718, %v2506, 0
      %v2609 = vsel %vm718, %v2546, 0
      %v2611 = vsel %vm718, %v2509, 0
      %v2614 = vsel %vm718, %v2547, 0
      %v2616 = vsel %vm718, %v2512, 0
      %v2619 = vsel %vm718, %v2548, 0
      %v2621 = vsel %vm718, %v2515, 0
      %v2624 = vsel %vm718, %v2549, 0
      %v2626 = vsel %vm718, %v2518, 0
      %v2629 = vsel %vm718, %v2550, 0
      %v2632 = vsel %vm799, %v1700, 0
      %2634 = vmatpush.msra.mxu0 0.0
      %2635 = vmatpush.msra.mxu0 0.0
      %2636 = vmatpush.msra.mxu0 0.0
      %2637 = vmatpush.msra.mxu0 0.0
      %2638 = vmatpush.msra.mxu0 0.0
      %2639 = vmatpush.msra.mxu0 0.0
      %2640 = vmatpush.msra.mxu0 0.0
      %2641 = vmatpush.msra.mxu0 0.0
      %2642 = vmatpush.msra.mxu0 0.0
      %2643 = vmatpush.msra.mxu0 0.0
      %2644 = vmatpush.msra.mxu0 0.0
      %2645 = vmatpush.msra.mxu0 0.0
      %2646 = vmatpush.msra.mxu0 0.0
      %2647 = vmatpush.msra.mxu0 0.0
      %2648 = vmatpush.msra.mxu0 %v2632
      %2649 = vmatpush.msra.mxu0 %v1699
      %2650 = vmatmul.f32.gmra.mxu0 %v2551
      %v2651 = vpop.f32.mrf.mxu0
      %v2652 = vadd.f32 0.0, %v2651
      %2653 = vmatmul.f32.gmra.mxu0 %v2554
      %v2654 = vpop.f32.mrf.mxu0
      %v2655 = vadd.f32 0.0, %v2654
      %2656 = vmatmul.f32.gmra.mxu0 %v2556
      %v2657 = vpop.f32.mrf.mxu0
      %v2658 = vadd.f32 0.0, %v2657
      %2659 = vmatmul.f32.gmra.mxu0 %v2559
      %v2660 = vpop.f32.mrf.mxu0
      %v2661 = vadd.f32 0.0, %v2660
      %2662 = vmatmul.f32.gmra.mxu0 %v2561
      %v2663 = vpop.f32.mrf.mxu0
      %v2664 = vadd.f32 0.0, %v2663
      %2665 = vmatmul.f32.gmra.mxu0 %v2564
      %v2666 = vpop.f32.mrf.mxu0
      %v2667 = vadd.f32 0.0, %v2666
      %2668 = vmatmul.f32.gmra.mxu0 %v2566
      %v2669 = vpop.f32.mrf.mxu0
      %v2670 = vadd.f32 0.0, %v2669
      %2671 = vmatmul.f32.gmra.mxu0 %v2569
      %v2672 = vpop.f32.mrf.mxu0
      %v2673 = vadd.f32 0.0, %v2672
      %2674 = vmatmul.f32.gmra.mxu0 %v2571
      %v2675 = vpop.f32.mrf.mxu0
      %v2676 = vadd.f32 0.0, %v2675
      %2677 = vmatmul.f32.gmra.mxu0 %v2574
      %v2678 = vpop.f32.mrf.mxu0
      %v2679 = vadd.f32 0.0, %v2678
      %2680 = vmatmul.f32.gmra.mxu0 %v2576
      %v2681 = vpop.f32.mrf.mxu0
      %v2682 = vadd.f32 0.0, %v2681
      %2683 = vmatmul.f32.gmra.mxu0 %v2579
      %v2684 = vpop.f32.mrf.mxu0
      %v2685 = vadd.f32 0.0, %v2684
      %2686 = vmatmul.f32.gmra.mxu0 %v2581
      %v2687 = vpop.f32.mrf.mxu0
      %v2688 = vadd.f32 0.0, %v2687
      %2689 = vmatmul.f32.gmra.mxu0 %v2584
      %v2690 = vpop.f32.mrf.mxu0
      %v2691 = vadd.f32 0.0, %v2690
      %2692 = vmatmul.f32.gmra.mxu0 %v2586
      %v2693 = vpop.f32.mrf.mxu0
      %v2694 = vadd.f32 0.0, %v2693
      %2695 = vmatmul.f32.gmra.mxu0 %v2589
      %v2696 = vpop.f32.mrf.mxu0
      %v2697 = vadd.f32 0.0, %v2696
      %2698 = vmatmul.f32.gmra.mxu0 %v2591
      %v2699 = vpop.f32.mrf.mxu0
      %v2700 = vadd.f32 0.0, %v2699
      %2701 = vmatmul.f32.gmra.mxu0 %v2594
      %v2702 = vpop.f32.mrf.mxu0
      %v2703 = vadd.f32 0.0, %v2702
      %2704 = vmatmul.f32.gmra.mxu0 %v2596
      %v2705 = vpop.f32.mrf.mxu0
      %v2706 = vadd.f32 0.0, %v2705
      %2707 = vmatmul.f32.gmra.mxu0 %v2599
      %v2708 = vpop.f32.mrf.mxu0
      %v2709 = vadd.f32 0.0, %v2708
      %2710 = vmatmul.f32.gmra.mxu0 %v2601
      %v2711 = vpop.f32.mrf.mxu0
      %v2712 = vadd.f32 0.0, %v2711
      %2713 = vmatmul.f32.gmra.mxu0 %v2604
      %v2714 = vpop.f32.mrf.mxu0
      %v2715 = vadd.f32 0.0, %v2714
      %2716 = vmatmul.f32.gmra.mxu0 %v2606
      %v2717 = vpop.f32.mrf.mxu0
      %v2718 = vadd.f32 0.0, %v2717
      %2719 = vmatmul.f32.gmra.mxu0 %v2609
      %v2720 = vpop.f32.mrf.mxu0
      %v2721 = vadd.f32 0.0, %v2720
      %2722 = vmatmul.f32.gmra.mxu0 %v2611
      %v2723 = vpop.f32.mrf.mxu0
      %v2724 = vadd.f32 0.0, %v2723
      %2725 = vmatmul.f32.gmra.mxu0 %v2614
      %v2726 = vpop.f32.mrf.mxu0
      %v2727 = vadd.f32 0.0, %v2726
      %2728 = vmatmul.f32.gmra.mxu0 %v2616
      %v2729 = vpop.f32.mrf.mxu0
      %v2730 = vadd.f32 0.0, %v2729
      %2731 = vmatmul.f32.gmra.mxu0 %v2619
      %v2732 = vpop.f32.mrf.mxu0
      %v2733 = vadd.f32 0.0, %v2732
      %2734 = vmatmul.f32.gmra.mxu0 %v2621
      %v2735 = vpop.f32.mrf.mxu0
      %v2736 = vadd.f32 0.0, %v2735
      %2737 = vmatmul.f32.gmra.mxu0 %v2624
      %v2738 = vpop.f32.mrf.mxu0
      %v2739 = vadd.f32 0.0, %v2738
      %2740 = vmatmul.f32.gmra.mxu0 %v2626
      %v2741 = vpop.f32.mrf.mxu0
      %v2742 = vadd.f32 0.0, %v2741
      %2743 = vmatmul.f32.gmra.mxu0 %v2629
      %v2744 = vpop.f32.mrf.mxu0
      %v2745 = vadd.f32 0.0, %v2744
      %2746 = vdwg.mxu0
      %v2747 = vadd.f32 %v2376, %v2652
      %v2748 = vadd.f32 %v2379, %v2655
      %v2749 = vadd.f32 %v2382, %v2658
      %v2750 = vadd.f32 %v2385, %v2661
      %v2751 = vadd.f32 %v2388, %v2664
      %v2752 = vadd.f32 %v2391, %v2667
      %v2753 = vadd.f32 %v2394, %v2670
      %v2754 = vadd.f32 %v2397, %v2673
      %v2755 = vadd.f32 %v2400, %v2676
      %v2756 = vadd.f32 %v2403, %v2679
      %v2757 = vadd.f32 %v2406, %v2682
      %v2758 = vadd.f32 %v2409, %v2685
      %v2759 = vadd.f32 %v2412, %v2688
      %v2760 = vadd.f32 %v2415, %v2691
      %v2761 = vadd.f32 %v2418, %v2694
      %v2762 = vadd.f32 %v2421, %v2697
      %v2763 = vadd.f32 %v2424, %v2700
      %v2764 = vadd.f32 %v2427, %v2703
      %v2765 = vadd.f32 %v2430, %v2706
      %v2766 = vadd.f32 %v2433, %v2709
      %v2767 = vadd.f32 %v2436, %v2712
      %v2768 = vadd.f32 %v2439, %v2715
      %v2769 = vadd.f32 %v2442, %v2718
      %v2770 = vadd.f32 %v2445, %v2721
      %v2771 = vadd.f32 %v2448, %v2724
      %v2772 = vadd.f32 %v2451, %v2727
      %v2773 = vadd.f32 %v2454, %v2730
      %v2774 = vadd.f32 %v2457, %v2733
      %v2775 = vadd.f32 %v2460, %v2736
      %v2776 = vadd.f32 %v2463, %v2739
      %v2777 = vadd.f32 %v2466, %v2742
      %v2778 = vadd.f32 %v2469, %v2745
      %v2779 = vld [vmem:[%s5] sm:$0x1]
      %v2780 = vld [vmem:[%s6] sm:$0x1]
      %v2781 = vsel %vm539, %v2747, 0.0
      %v2782 = vsel %vm539, %v2748, 0.0
      %v2783 = vadd.f32 %v2781, %v2782
      %v2784 = vsel %vm539, %v2749, 0.0
      %v2785 = vadd.f32 %v2783, %v2784
      %v2786 = vsel %vm539, %v2750, 0.0
      %v2787 = vadd.f32 %v2785, %v2786
      %v2788 = vsel %vm539, %v2751, 0.0
      %v2789 = vadd.f32 %v2787, %v2788
      %v2790 = vsel %vm539, %v2752, 0.0
      %v2791 = vadd.f32 %v2789, %v2790
      %v2792 = vsel %vm539, %v2753, 0.0
      %v2793 = vadd.f32 %v2791, %v2792
      %v2794 = vsel %vm539, %v2754, 0.0
      %v2795 = vadd.f32 %v2793, %v2794
      %v2796 = vsel %vm539, %v2755, 0.0
      %v2797 = vadd.f32 %v2795, %v2796
      %v2798 = vsel %vm539, %v2756, 0.0
      %v2799 = vadd.f32 %v2797, %v2798
      %v2800 = vsel %vm539, %v2757, 0.0
      %v2801 = vadd.f32 %v2799, %v2800
      %v2802 = vsel %vm539, %v2758, 0.0
      %v2803 = vadd.f32 %v2801, %v2802
      %v2804 = vsel %vm539, %v2759, 0.0
      %v2805 = vadd.f32 %v2803, %v2804
      %v2806 = vsel %vm539, %v2760, 0.0
      %v2807 = vadd.f32 %v2805, %v2806
      %v2808 = vsel %vm539, %v2761, 0.0
      %v2809 = vadd.f32 %v2807, %v2808
      %v2810 = vsel %vm539, %v2762, 0.0
      %v2811 = vadd.f32 %v2809, %v2810
      %v2812 = vsel %vm539, %v2763, 0.0
      %v2813 = vadd.f32 %v2811, %v2812
      %v2814 = vsel %vm539, %v2764, 0.0
      %v2815 = vadd.f32 %v2813, %v2814
      %v2816 = vsel %vm539, %v2765, 0.0
      %v2817 = vadd.f32 %v2815, %v2816
      %v2818 = vsel %vm539, %v2766, 0.0
      %v2819 = vadd.f32 %v2817, %v2818
      %v2820 = vsel %vm539, %v2767, 0.0
      %v2821 = vadd.f32 %v2819, %v2820
      %v2822 = vsel %vm539, %v2768, 0.0
      %v2823 = vadd.f32 %v2821, %v2822
      %v2824 = vsel %vm539, %v2769, 0.0
      %v2825 = vadd.f32 %v2823, %v2824
      %v2826 = vsel %vm539, %v2770, 0.0
      %v2827 = vadd.f32 %v2825, %v2826
      %v2828 = vsel %vm539, %v2771, 0.0
      %v2829 = vadd.f32 %v2827, %v2828
      %v2830 = vsel %vm539, %v2772, 0.0
      %v2831 = vadd.f32 %v2829, %v2830
      %v2832 = vsel %vm539, %v2773, 0.0
      %v2833 = vadd.f32 %v2831, %v2832
      %v2834 = vsel %vm539, %v2774, 0.0
      %v2835 = vadd.f32 %v2833, %v2834
      %v2836 = vsel %vm539, %v2775, 0.0
      %v2837 = vadd.f32 %v2835, %v2836
      %v2838 = vsel %vm539, %v2776, 0.0
      %v2839 = vadd.f32 %v2837, %v2838
      %v2840 = vsel %vm539, %v2777, 0.0
      %v2841 = vadd.f32 %v2839, %v2840
      %v2842 = vsel %vm539, %v2778, 0.0
      %v2843 = vadd.f32 %v2841, %v2842
      %v2844 = vrot.slane %v2843, 4
      %v2845 = vadd.f32 %v2843, %v2844
      %v2846 = vrot.slane %v2845, 2
      %v2847 = vadd.f32 %v2845, %v2846
      %v2848 = vrot.slane %v2847, 1
      %v2849 = vadd.f32 %v2847, %v2848
      %v2850 = vmul.f32 %v2849, 0.00390625
      %v2851 = vmul.f32 %v2747, %v2747
      %v2852 = vmul.f32 %v2748, %v2748
      %v2853 = vmul.f32 %v2749, %v2749
      %v2854 = vmul.f32 %v2750, %v2750
      %v2855 = vmul.f32 %v2751, %v2751
      %v2856 = vmul.f32 %v2752, %v2752
      %v2857 = vmul.f32 %v2753, %v2753
      %v2858 = vmul.f32 %v2754, %v2754
      %v2859 = vmul.f32 %v2755, %v2755
      %v2860 = vmul.f32 %v2756, %v2756
      %v2861 = vmul.f32 %v2757, %v2757
      %v2862 = vmul.f32 %v2758, %v2758
      %v2863 = vmul.f32 %v2759, %v2759
      %v2864 = vmul.f32 %v2760, %v2760
      %v2865 = vmul.f32 %v2761, %v2761
      %v2866 = vmul.f32 %v2762, %v2762
      %v2867 = vmul.f32 %v2763, %v2763
      %v2868 = vmul.f32 %v2764, %v2764
      %v2869 = vmul.f32 %v2765, %v2765
      %v2870 = vmul.f32 %v2766, %v2766
      %v2871 = vmul.f32 %v2767, %v2767
      %v2872 = vmul.f32 %v2768, %v2768
      %v2873 = vmul.f32 %v2769, %v2769
      %v2874 = vmul.f32 %v2770, %v2770
      %v2875 = vmul.f32 %v2771, %v2771
      %v2876 = vmul.f32 %v2772, %v2772
      %v2877 = vmul.f32 %v2773, %v2773
      %v2878 = vmul.f32 %v2774, %v2774
      %v2879 = vmul.f32 %v2775, %v2775
      %v2880 = vmul.f32 %v2776, %v2776
      %v2881 = vmul.f32 %v2777, %v2777
      %v2882 = vmul.f32 %v2778, %v2778
      %v2883 = vsel %vm539, %v2851, 0.0
      %v2884 = vsel %vm539, %v2852, 0.0
      %v2885 = vadd.f32 %v2883, %v2884
      %v2886 = vsel %vm539, %v2853, 0.0
      %v2887 = vadd.f32 %v2885, %v2886
      %v2888 = vsel %vm539, %v2854, 0.0
      %v2889 = vadd.f32 %v2887, %v2888
      %v2890 = vsel %vm539, %v2855, 0.0
      %v2891 = vadd.f32 %v2889, %v2890
      %v2892 = vsel %vm539, %v2856, 0.0
      %v2893 = vadd.f32 %v2891, %v2892
      %v2894 = vsel %vm539, %v2857, 0.0
      %v2895 = vadd.f32 %v2893, %v2894
      %v2896 = vsel %vm539, %v2858, 0.0
      %v2897 = vadd.f32 %v2895, %v2896
      %v2898 = vsel %vm539, %v2859, 0.0
      %v2899 = vadd.f32 %v2897, %v2898
      %v2900 = vsel %vm539, %v2860, 0.0
      %v2901 = vadd.f32 %v2899, %v2900
      %v2902 = vsel %vm539, %v2861, 0.0
      %v2903 = vadd.f32 %v2901, %v2902
      %v2904 = vsel %vm539, %v2862, 0.0
      %v2905 = vadd.f32 %v2903, %v2904
      %v2906 = vsel %vm539, %v2863, 0.0
      %v2907 = vadd.f32 %v2905, %v2906
      %v2908 = vsel %vm539, %v2864, 0.0
      %v2909 = vadd.f32 %v2907, %v2908
      %v2910 = vsel %vm539, %v2865, 0.0
      %v2911 = vadd.f32 %v2909, %v2910
      %v2912 = vsel %vm539, %v2866, 0.0
      %v2913 = vadd.f32 %v2911, %v2912
      %v2914 = vsel %vm539, %v2867, 0.0
      %v2915 = vadd.f32 %v2913, %v2914
      %v2916 = vsel %vm539, %v2868, 0.0
      %v2917 = vadd.f32 %v2915, %v2916
      %v2918 = vsel %vm539, %v2869, 0.0
      %v2919 = vadd.f32 %v2917, %v2918
      %v2920 = vsel %vm539, %v2870, 0.0
      %v2921 = vadd.f32 %v2919, %v2920
      %v2922 = vsel %vm539, %v2871, 0.0
      %v2923 = vadd.f32 %v2921, %v2922
      %v2924 = vsel %vm539, %v2872, 0.0
      %v2925 = vadd.f32 %v2923, %v2924
      %v2926 = vsel %vm539, %v2873, 0.0
      %v2927 = vadd.f32 %v2925, %v2926
      %v2928 = vsel %vm539, %v2874, 0.0
      %v2929 = vadd.f32 %v2927, %v2928
      %v2930 = vsel %vm539, %v2875, 0.0
      %v2931 = vadd.f32 %v2929, %v2930
      %v2932 = vsel %vm539, %v2876, 0.0
      %v2933 = vadd.f32 %v2931, %v2932
      %v2934 = vsel %vm539, %v2877, 0.0
      %v2935 = vadd.f32 %v2933, %v2934
      %v2936 = vsel %vm539, %v2878, 0.0
      %v2937 = vadd.f32 %v2935, %v2936
      %v2938 = vsel %vm539, %v2879, 0.0
      %v2939 = vadd.f32 %v2937, %v2938
      %v2940 = vsel %vm539, %v2880, 0.0
      %v2941 = vadd.f32 %v2939, %v2940
      %v2942 = vsel %vm539, %v2881, 0.0
      %v2943 = vadd.f32 %v2941, %v2942
      %v2944 = vsel %vm539, %v2882, 0.0
      %v2945 = vadd.f32 %v2943, %v2944
      %v2946 = vrot.slane %v2945, 4
      %v2947 = vadd.f32 %v2945, %v2946
      %v2948 = vrot.slane %v2947, 2
      %v2949 = vadd.f32 %v2947, %v2948
      %v2950 = vrot.slane %v2949, 1
      %v2951 = vadd.f32 %v2949, %v2950
      %v2952 = vmul.f32 %v2951, 0.00390625
      %v2953 = vmul.f32 %v2850, %v2850
      %v2954 = vsub.f32 %v2952, %v2953
      %v2955 = vadd.f32 %v2954, 1e-05
      %v2956 = vrsqrt.pop %v2955
      %v2957 = vmul.f32 %v2956, %v2955
      %v2958 = vmul.f32 %v2957, %v2956
      %v2959 = vmul.f32 0.5, %v2958
      %v2960 = vsub.f32 1.5, %v2959
      %v2961 = vmul.f32 %v2956, %v2960
      %vm2962 = vweird.f32 %v2955
      %vm2963 = vweird.f32 %v2956
      %vm2964 = vmor %vm2962, %vm2963
      %v2965 = vsel %vm2964, %v2956, %v2961
      %v2966 = vmul.f32 %v2965, %v2779
      %v2967 = vmul.f32 %v2850, %v2966
      %v2968 = vsub.f32 %v2780, %v2967
      %v2969 = vperm.slane %v2966, 0
      %v2970 = vmul.f32 %v2747, %v2969
      %v2971 = vmul.f32 %v2748, %v2969
      %v2972 = vmul.f32 %v2749, %v2969
      %v2973 = vmul.f32 %v2750, %v2969
      %v2974 = vmul.f32 %v2751, %v2969
      %v2975 = vmul.f32 %v2752, %v2969
      %v2976 = vmul.f32 %v2753, %v2969
      %v2977 = vmul.f32 %v2754, %v2969
      %v2978 = vmul.f32 %v2755, %v2969
      %v2979 = vmul.f32 %v2756, %v2969
      %v2980 = vmul.f32 %v2757, %v2969
      %v2981 = vmul.f32 %v2758, %v2969
      %v2982 = vmul.f32 %v2759, %v2969
      %v2983 = vmul.f32 %v2760, %v2969
      %v2984 = vmul.f32 %v2761, %v2969
      %v2985 = vmul.f32 %v2762, %v2969
      %v2986 = vmul.f32 %v2763, %v2969
      %v2987 = vmul.f32 %v2764, %v2969
      %v2988 = vmul.f32 %v2765, %v2969
      %v2989 = vmul.f32 %v2766, %v2969
      %v2990 = vmul.f32 %v2767, %v2969
      %v2991 = vmul.f32 %v2768, %v2969
      %v2992 = vmul.f32 %v2769, %v2969
      %v2993 = vmul.f32 %v2770, %v2969
      %v2994 = vmul.f32 %v2771, %v2969
      %v2995 = vmul.f32 %v2772, %v2969
      %v2996 = vmul.f32 %v2773, %v2969
      %v2997 = vmul.f32 %v2774, %v2969
      %v2998 = vmul.f32 %v2775, %v2969
      %v2999 = vmul.f32 %v2776, %v2969
      %v3000 = vmul.f32 %v2777, %v2969
      %v3001 = vmul.f32 %v2778, %v2969
      %v3003 = vperm.slane %v2968, 0
      %v3005 = vadd.f32 %v2970, %v3003
      %v3006 = vadd.f32 %v2971, %v3003
      %v3007 = vadd.f32 %v2972, %v3003
      %v3008 = vadd.f32 %v2973, %v3003
      %v3009 = vadd.f32 %v2974, %v3003
      %v3010 = vadd.f32 %v2975, %v3003
      %v3011 = vadd.f32 %v2976, %v3003
      %v3012 = vadd.f32 %v2977, %v3003
      %v3013 = vadd.f32 %v2978, %v3003
      %v3014 = vadd.f32 %v2979, %v3003
      %v3015 = vadd.f32 %v2980, %v3003
      %v3016 = vadd.f32 %v2981, %v3003
      %v3017 = vadd.f32 %v2982, %v3003
      %v3018 = vadd.f32 %v2983, %v3003
      %v3019 = vadd.f32 %v2984, %v3003
      %v3020 = vadd.f32 %v2985, %v3003
      %v3021 = vadd.f32 %v2986, %v3003
      %v3022 = vadd.f32 %v2987, %v3003
      %v3023 = vadd.f32 %v2988, %v3003
      %v3024 = vadd.f32 %v2989, %v3003
      %v3025 = vadd.f32 %v2990, %v3003
      %v3026 = vadd.f32 %v2991, %v3003
      %v3027 = vadd.f32 %v2992, %v3003
      %v3028 = vadd.f32 %v2993, %v3003
      %v3029 = vadd.f32 %v2994, %v3003
      %v3030 = vadd.f32 %v2995, %v3003
      %v3031 = vadd.f32 %v2996, %v3003
      %v3032 = vadd.f32 %v2997, %v3003
      %v3033 = vadd.f32 %v2998, %v3003
      %v3034 = vadd.f32 %v2999, %v3003
      %v3035 = vadd.f32 %v3000, %v3003
      %v3036 = vadd.f32 %v3001, %v3003
      %v3037 = vadd.f32 %v279, %v3005
      %v3038 = vadd.f32 %v280, %v3006
      %v3039 = vadd.f32 %v281, %v3007
      %v3040 = vadd.f32 %v282, %v3008
      %v3041 = vadd.f32 %v283, %v3009
      %v3042 = vadd.f32 %v284, %v3010
      %v3043 = vadd.f32 %v285, %v3011
      %v3044 = vadd.f32 %v286, %v3012
      %v3045 = vadd.f32 %v287, %v3013
      %v3046 = vadd.f32 %v288, %v3014
      %v3047 = vadd.f32 %v289, %v3015
      %v3048 = vadd.f32 %v290, %v3016
      %v3049 = vadd.f32 %v291, %v3017
      %v3050 = vadd.f32 %v292, %v3018
      %v3051 = vadd.f32 %v293, %v3019
      %v3052 = vadd.f32 %v294, %v3020
      %v3053 = vadd.f32 %v295, %v3021
      %v3054 = vadd.f32 %v296, %v3022
      %v3055 = vadd.f32 %v297, %v3023
      %v3056 = vadd.f32 %v298, %v3024
      %v3057 = vadd.f32 %v299, %v3025
      %v3058 = vadd.f32 %v300, %v3026
      %v3059 = vadd.f32 %v301, %v3027
      %v3060 = vadd.f32 %v302, %v3028
      %v3061 = vadd.f32 %v303, %v3029
      %v3062 = vadd.f32 %v304, %v3030
      %v3063 = vadd.f32 %v305, %v3031
      %v3064 = vadd.f32 %v306, %v3032
      %v3065 = vadd.f32 %v307, %v3033
      %v3066 = vadd.f32 %v308, %v3034
      %v3067 = vadd.f32 %v309, %v3035
      %v3068 = vadd.f32 %v310, %v3036
      %3069 = vst.msk [vmem:[%s278] sm:$0xff] %vm539, %v3037
      %3070 = vst.msk [vmem:[%s278 + $0x8] sm:$0xff] %vm539, %v3038
      %3071 = vst.msk [vmem:[%s278 + $0x10] sm:$0xff] %vm539, %v3039
      %3072 = vst.msk [vmem:[%s278 + $0x18] sm:$0xff] %vm539, %v3040
      %3073 = vst.msk [vmem:[%s278 + $0x20] sm:$0xff] %vm539, %v3041
      %3074 = vst.msk [vmem:[%s278 + $0x28] sm:$0xff] %vm539, %v3042
      %3075 = vst.msk [vmem:[%s278 + $0x30] sm:$0xff] %vm539, %v3043
      %3076 = vst.msk [vmem:[%s278 + $0x38] sm:$0xff] %vm539, %v3044
      %3077 = vst.msk [vmem:[%s278 + $0x40] sm:$0xff] %vm539, %v3045
      %3078 = vst.msk [vmem:[%s278 + $0x48] sm:$0xff] %vm539, %v3046
      %3079 = vst.msk [vmem:[%s278 + $0x50] sm:$0xff] %vm539, %v3047
      %3080 = vst.msk [vmem:[%s278 + $0x58] sm:$0xff] %vm539, %v3048
      %3081 = vst.msk [vmem:[%s278 + $0x60] sm:$0xff] %vm539, %v3049
      %3082 = vst.msk [vmem:[%s278 + $0x68] sm:$0xff] %vm539, %v3050
      %3083 = vst.msk [vmem:[%s278 + $0x70] sm:$0xff] %vm539, %v3051
      %3084 = vst.msk [vmem:[%s278 + $0x78] sm:$0xff] %vm539, %v3052
      %3085 = vst.msk [vmem:[%s278 + $0x80] sm:$0xff] %vm539, %v3053
      %3086 = vst.msk [vmem:[%s278 + $0x88] sm:$0xff] %vm539, %v3054
      %3087 = vst.msk [vmem:[%s278 + $0x90] sm:$0xff] %vm539, %v3055
      %3088 = vst.msk [vmem:[%s278 + $0x98] sm:$0xff] %vm539, %v3056
      %3089 = vst.msk [vmem:[%s278 + $0xa0] sm:$0xff] %vm539, %v3057
      %3090 = vst.msk [vmem:[%s278 + $0xa8] sm:$0xff] %vm539, %v3058
      %3091 = vst.msk [vmem:[%s278 + $0xb0] sm:$0xff] %vm539, %v3059
      %3092 = vst.msk [vmem:[%s278 + $0xb8] sm:$0xff] %vm539, %v3060
      %3093 = vst.msk [vmem:[%s278 + $0xc0] sm:$0xff] %vm539, %v3061
      %3094 = vst.msk [vmem:[%s278 + $0xc8] sm:$0xff] %vm539, %v3062
      %3095 = vst.msk [vmem:[%s278 + $0xd0] sm:$0xff] %vm539, %v3063
      %3096 = vst.msk [vmem:[%s278 + $0xd8] sm:$0xff] %vm539, %v3064
      %3097 = vst.msk [vmem:[%s278 + $0xe0] sm:$0xff] %vm539, %v3065
      %3098 = vst.msk [vmem:[%s278 + $0xe8] sm:$0xff] %vm539, %v3066
      %3099 = vst.msk [vmem:[%s278 + $0xf0] sm:$0xff] %vm539, %v3067
      %3100 = vst.msk [vmem:[%s278 + $0xf8] sm:$0xff] %vm539, %v3068
      %p3101 = scmp.lt.s32.totalorder %s18, 1
      %s3102 = scalar_select %p3101, %s18, 1
      %s3103 = smul.addr %s3102, 32
      %s3104 = smul.addr %s3103, 8
      %s3105 = scalar_lea.vmem %s7, %s3104
      // Predicated region
      $region49: #{tpu_custom_call.1} parent=47 // pred_check
        %p3106 = pneg %p188
      $region50: #{tpu_custom_call.1} parent=47 // pred_check_branch
        %3108 = sbr.rel (%p3106) target = $region52
      $region51: #{tpu_custom_call.1} parent=47 // pred_region
        _
      $region52: #{tpu_custom_call.1} parent=47 // pred_fallthru
        _
    $region48: #{tpu_custom_call.1} parent=5 // pred_fallthru
      _
    %p3109 = scmp.le.s32.totalorder 2, %s13
    // Predicated region
    $region53: #{tpu_custom_call.1} parent=5 // pred_check
      %p3110 = pneg %p3109
    $region54: #{tpu_custom_call.1} parent=5 // pred_check_branch
      %3112 = sbr.rel (%p3110) target = $region56
    $region55: #{tpu_custom_call.1} parent=5 // pred_region
      %s3113 = ssub.s32 %s13, 2
      // Predicated region
      $region57: #{tpu_custom_call.1} parent=55 // pred_check
        %p3114 = pneg %p194
      $region58: #{tpu_custom_call.1} parent=55 // pred_check_branch
        %3116 = sbr.rel (%p3114) target = $region60
      $region59: #{tpu_custom_call.1} parent=55 // pred_region
        %p3117 = scmp.lt.s32.totalorder %s19, 1
        %s3118 = scalar_select %p3117, %s19, 1
        %s3119 = smul.addr %s3118, 32
        %s3120 = smul.addr %s3119, 8
        %s3121 = scalar_lea.vmem %s7, %s3120
      $region60: #{tpu_custom_call.1} parent=55 // pred_fallthru
        _
    $region56: #{tpu_custom_call.1} parent=5 // pred_fallthru
      _
  $region6: #{tpu_custom_call.1} parent=0 // loop_footer
    %s17 = sadd.s32 1, %s13
  $region7: #{tpu_custom_call.1} parent=0 // loop_footer_branch
    %12 = sbr.rel target = $region3
  $region8: #{tpu_custom_call.1} parent=0 // loop_exit
    _

</llo_original>
